<compile_context>
chip_gen: v7x
topology: tpu7x:2x2x1
jax: 0.10.0
libtpu: 0.0.40
codegen_flags: <defaults>
</compile_context>

<pallas_src>
import functools

import jax
import jax.numpy as jnp
import numpy as np
from jax.experimental import pallas as pl
from jax.experimental.pallas import tpu as pltpu

COUT = 32      # real output channels of every conv layer
CPAD = 128     # lane-padded output-channel count used inside the kernel


def _round_up(x, m):
    return (x + m - 1) // m * m


# ------------------------------ Pallas kernel --------------------------------
def _encoder_kernel(xin_ref, w0_ref, w123_ref, b_ref, o_ref, *, hh, wh, block_n):
    """Fused 4-layer conv+ReLU encoder over one block of `block_n` samples.

    All samples of the block are processed as ONE concatenated flat raster
    (row = b*hh*wh + i*wh + j), so each conv tap is a single big MXU matmul.

    xin_ref : (block_n*hh*wh, cin_s2d) bf16  raw-pixel space-to-depth raster
    w0_ref  : (4, cin_s2d, CPAD)       bf16  layer-0 weights (norm folded), 2x2 taps
    w123_ref: (3, 9, COUT, CPAD)       bf16  layers 1..3 weights, 3x3 taps, K = 32
    b_ref   : (4, CPAD)                f32   per-layer bias (layer-0 norm folded)
    o_ref   : (1, m3c, CPAD)           f32   last-layer activations, flat raster rows
    """
    f32 = jnp.float32
    s = wh                                   # raster row stride
    R = hh * wh                              # per-sample row stride
    bias = b_ref[...]                        # (4, CPAD) f32

    # -------- layer 0: 3x3 stride-2 conv == 2x2 taps over the s2d raster --------
    oh, ow = hh - 1, wh - 1
    m = (block_n - 1) * R + (oh - 1) * s + ow
    xb = xin_ref[...]                        # raw pixels; /255 & -0.5 folded into w0/b0
    acc = jnp.broadcast_to(bias[0:1, :], (m, CPAD))
    for dh in range(2):
        for dw in range(2):
            off = dh * s + dw
            acc = acc + jnp.dot(xb[off:off + m, :], w0_ref[dh * 2 + dw],
                                preferred_element_type=f32)
    act = jnp.maximum(acc, 0.0)              # (m, CPAD) f32; lanes >= 32 are zero

    # -------- layers 1..3: 3x3 stride-1 convs, VMEM/vreg resident ---------------
    for l in range(3):
        oh, ow = oh - 2, ow - 2
        m = (block_n - 1) * R + (oh - 1) * s + ow
        xb = act[:, :COUT].astype(w123_ref.dtype)    # contract only the 32 real channels
        acc = jnp.broadcast_to(bias[l + 1:l + 2, :], (m, CPAD))
        for kh in range(3):
            for kw in range(3):
                off = kh * s + kw
                acc = acc + jnp.dot(xb[off:off + m, :], w123_ref[l, kh * 3 + kw],
                                    preferred_element_type=f32)
        act = jnp.maximum(acc, 0.0)

    o_ref[0] = act.astype(o_ref.dtype)       # single lane-dense (m3c, 128) store


# ------------------------------ Weight packing --------------------------------
def pack_encoder_weights(params, matmul_dtype=jnp.bfloat16):
    """Fold /255 - 0.5 into layer 0, fold the stride-2 layer into 2x2 taps over the
    space-to-depth input (channel index = (ph*2+pw)*C + ci), pad output lanes to 128,
    and keep layers 1..3 at their real K=32 contraction width."""
    c_in = params[0]["w_hwio"].shape[2]
    cin_s2d = _round_up(4 * c_in, 8)

    w0 = params[0]["w_hwio"] * (1.0 / 255.0)                   # (3,3,C,32): /255 folded
    w0p = jnp.zeros((2, 2, 2, 2, c_in, CPAD), jnp.float32)     # (dh,dw,ph,pw,ci,co)
    for dh in range(2):
        for dw in range(2):
            for ph in range(2):
                for pw in range(2):
                    kh, kw = 2 * dh + ph, 2 * dw + pw
                    if kh < 3 and kw < 3:
                        w0p = w0p.at[dh, dw, ph, pw, :, :COUT].set(w0[kh, kw])
    w0p = w0p.reshape(4, 4 * c_in, CPAD)
    if cin_s2d != 4 * c_in:
        w0p = jnp.pad(w0p, ((0, 0), (0, cin_s2d - 4 * c_in), (0, 0)))
    w0p = w0p.astype(matmul_dtype)

    w123 = jnp.zeros((3, 3, 3, COUT, CPAD), jnp.float32)       # K kept at 32 (no zero pad)
    for l, layer in enumerate(params[1:]):
        w123 = w123.at[l, :, :, :, :COUT].set(layer["w_hwio"])
    w123 = w123.reshape(3, 9, COUT, CPAD).astype(matmul_dtype)

    b = jnp.zeros((4, CPAD), jnp.float32)
    for l, layer in enumerate(params):
        bias = layer["b"]
        if l == 0:   # fold the -0.5 normalization shift into the layer-0 bias
            bias = bias - 0.5 * jnp.sum(params[0]["w_hwio"], axis=(0, 1, 2))
        b = b.at[l, :COUT].set(bias)
    return w0p, w123, b, cin_s2d


# ------------------------------ Forward wrapper --------------------------------
def encoder_forward(obs_nchw, params, *, block_n=8, matmul_dtype=jnp.bfloat16):
    """obs_nchw: (N, C, H, W) raw pixel values (0..255)."""
    N, C, H, W = obs_nchw.shape
    assert H % 2 == 0 and W % 2 == 0 and H >= 16 and W >= 16
    hh, wh = H // 2, W // 2
    s, R = wh, hh * wh

    w0p, w123, b, cin_s2d = pack_encoder_weights(params, matmul_dtype)

    # NCHW -> NHWC raw pixels in the matmul dtype (bf16: 2x less input DMA), then the
    # space-to-depth phase split (pure permutation), flattened to the kernel's raster
    # layout: row = i*wh + j, channel = (ph*2 + pw)*C + c.
    x = jnp.transpose(obs_nchw, (0, 2, 3, 1)).astype(matmul_dtype)
    xe = x.reshape(N, hh, 2, wh, 2, C).transpose(0, 1, 3, 2, 4, 5).reshape(N, R, 4 * C)
    if cin_s2d != 4 * C:
        xe = jnp.pad(xe, ((0, 0), (0, 0), (0, cin_s2d - 4 * C)))

    # Spatial chain: stride-2 conv then three stride-1 "valid" convs.
    oh3, ow3 = (hh - 1) - 6, (wh - 1) - 6
    m3 = (oh3 - 1) * s + ow3

    # Samples per grid step; keep >= 2 grid steps so both v7x TensorCores get work.
    bn = max(1, min(block_n, N))
    if N > 1:
        bn = min(bn, pl.cdiv(N, 2))
    n_pad = _round_up(N, bn)
    if n_pad != N:
        xe = jnp.pad(xe, ((0, n_pad - N), (0, 0), (0, 0)))
    grid_n = n_pad // bn

    xe_flat = xe.reshape(n_pad * R, cin_s2d)       # concatenated flat raster
    m3c = (bn - 1) * R + m3                        # last-layer raster rows per block

    # NOTE: at realistic resolutions (84-96 px) with block_n=8 the in-kernel f32
    # act/acc temporaries reach ~15-20 MiB; cap block_n lower on v7x (64 MiB VMEM)
    # or raise vmem_limit_bytes.  At these small test shapes defaults are ample.
    kernel = functools.partial(_encoder_kernel, hh=hh, wh=wh, block_n=bn)
    out = pl.pallas_call(
        kernel,
        out_shape=jax.ShapeDtypeStruct((grid_n, m3c, CPAD), jnp.float32),
        grid=(grid_n,),
        in_specs=[
            pl.BlockSpec((bn * R, cin_s2d), lambda n: (n, 0)),
            pl.BlockSpec((4, cin_s2d, CPAD), lambda n: (0, 0, 0)),
            pl.BlockSpec((3, 9, COUT, CPAD), lambda n: (0, 0, 0, 0)),
            pl.BlockSpec((4, CPAD), lambda n: (0, 0)),
        ],
        out_specs=pl.BlockSpec((1, m3c, CPAD), lambda n: (n, 0, 0)),
        compiler_params=pltpu.CompilerParams(dimension_semantics=("parallel",)),
    )(xe_flat, w0p, w123, b)

    # Gather the valid raster rows (row = b*R + oh*s + ow) and the 32 real channels,
    # and emit PyTorch's NCHW .view(N, -1) flatten order (c, oh, ow).
    row_idx = (jnp.arange(oh3)[:, None] * s + jnp.arange(ow3)[None, :]).reshape(-1)
    n_idx = jnp.arange(N)
    rows = (n_idx % bn)[:, None] * R + row_idx[None, :]            # (N, P)
    h = out[(n_idx // bn)[:, None], rows, :COUT]                   # (N, P, 32)
    return jnp.transpose(h, (0, 2, 1)).reshape(N, COUT * oh3 * ow3)


# ------------------------------ Reference & init -------------------------------
def init_encoder_params(key, in_channels):
    """Deterministic synthetic init mirroring the PyTorch module's conv shapes."""
    specs = [(32, 2), (32, 1), (32, 1), (32, 1)]            # (out_channels, stride)
    layers = []
    cin = in_channels
    for cout, stride in specs:
        key, wk, bk = jax.random.split(key, 3)
        fan_in = cin * 9
        w = jax.random.normal(wk, (3, 3, cin, cout), jnp.float32) / np.sqrt(fan_in)
        bias = jax.random.normal(bk, (cout,), jnp.float32) * 0.1
        layers.append(dict(w_hwio=w, b=bias, stride=stride))
        cin = cout
    return layers


def _conv_chain_ref(x_nhwc, params, matmul_dtype, fold_norm):
    x = x_nhwc
    for l, layer in enumerate(params):
        w, bias, stride = layer["w_hwio"], layer["b"], layer["stride"]
        if l == 0 and fold_norm:
            bias = bias - 0.5 * jnp.sum(w, axis=(0, 1, 2))
            w = w * (1.0 / 255.0)
        y = jax.lax.conv_general_dilated(
            x.astype(matmul_dtype), w.astype(matmul_dtype),
            window_strides=(stride, stride), padding="VALID",
            dimension_numbers=("NHWC", "HWIO", "NHWC"),
            preferred_element_type=jnp.float32)
        x = jnp.maximum(y + bias, 0.0)
    return jnp.transpose(x, (0, 3, 1, 2)).reshape(x.shape[0], -1)


def encoder_forward_ref(obs_nchw, params):
    """Pure-JAX f32 reference with the module's exact semantics."""
    x = jnp.transpose(obs_nchw, (0, 2, 3, 1)).astype(jnp.float32) / 255.0 - 0.5
    return _conv_chain_ref(x, params, jnp.float32, fold_norm=False)


def encoder_forward_ref_matched(obs_nchw, params, matmul_dtype=jnp.bfloat16):
    """Reference matching the kernel's numerics: raw-pixel bf16 operands,
    normalization folded into layer-0 weights/bias, f32 accumulation."""
    x = jnp.transpose(obs_nchw, (0, 2, 3, 1)).astype(jnp.float32)
    return _conv_chain_ref(x, params, matmul_dtype, fold_norm=True)


if __name__ == "__main__":
    key = jax.random.PRNGKey(0)
    k_obs, k_params = jax.random.split(key)

    # Small shapes consistent with the module: obs_shape = (C=4, H=16, W=16).
    # Spatial chain: 16 -(s2)-> 7 -> 5 -> 3 -> 1; repr dim = 32*1*1 = 32.
    N, C, H, W = 4, 4, 16, 16
    obs = jax.random.uniform(k_obs, (N, C, H, W), jnp.float32, 0.0, 255.0)
    params = init_encoder_params(k_params, C)

    fwd = jax.jit(encoder_forward, static_argnames=("block_n", "matmul_dtype"))
    out = jax.block_until_ready(fwd(obs, params, block_n=8))
    assert out.shape == (N, 32 * 1 * 1)

    # Precision-matched reference (same bf16 operands & folded normalization): tight.
    ref_m = jax.block_until_ready(encoder_forward_ref_matched(obs, params))
    np.testing.assert_allclose(np.asarray(out), np.asarray(ref_m), rtol=5e-3, atol=5e-3)

    # Full-f32 module semantics: loose check (kernel feeds the MXU bf16 operands).
    ref_f32 = jax.block_until_ready(encoder_forward_ref(obs, params))
    np.testing.assert_allclose(np.asarray(out), np.asarray(ref_f32), rtol=5e-2, atol=5e-2)

    print("KERNEL_OK")
</pallas_src>

<mosaic_0001>
module attributes {stable_mosaic.version = 11 : i64} {
  func.func @_encoder_kernel(%arg0: i32, %arg1: memref<128x16xbf16, #tpu.memory_space<vmem>>, %arg2: memref<4x16x128xbf16, #tpu.memory_space<vmem>>, %arg3: memref<3x9x32x128xbf16, #tpu.memory_space<vmem>>, %arg4: memref<4x128xf32, #tpu.memory_space<vmem>>, %arg5: memref<1x65x128xf32, #tpu.memory_space<vmem>>) attributes {dimension_semantics = [#tpu.dimension_semantics<parallel>], iteration_bounds = array<i64: 2>, scalar_prefetch = 0 : i64, scratch_operands = 0 : i64, tpu.core_type = #tpu.core_type<tc>, window_params = [{transform_indices = @transform_0, window_bounds = array<i64: 128, 16>}, {pipeline_mode = #tpu.pipeline_mode<synchronous>, transform_indices = @transform_1, window_bounds = array<i64: 4, 16, 128>}, {pipeline_mode = #tpu.pipeline_mode<synchronous>, transform_indices = @transform_2, window_bounds = array<i64: 3, 9, 32, 128>}, {pipeline_mode = #tpu.pipeline_mode<synchronous>, transform_indices = @transform_3, window_bounds = array<i64: 4, 128>}, {transform_indices = @transform_4, window_bounds = array<i64: 1, 65, 128>}]} {
    %c0 = arith.constant 0 : index
    %c0_0 = arith.constant 0 : index
    %0 = vector.load %arg4[%c0, %c0_0] : memref<4x128xf32, #tpu.memory_space<vmem>>, vector<4x128xf32>
    %c0_1 = arith.constant 0 : index
    %c0_2 = arith.constant 0 : index
    %1 = vector.load %arg1[%c0_1, %c0_2] : memref<128x16xbf16, #tpu.memory_space<vmem>>, vector<128x16xbf16>
    %2 = vector.extract_strided_slice %0 {offsets = [0, 0], sizes = [1, 128], strides = [1, 1]} : vector<4x128xf32> to vector<1x128xf32>
    %3 = vector.shape_cast %2 : vector<1x128xf32> to vector<1x128xf32>
    %4 = vector.broadcast %3 : vector<1x128xf32> to vector<119x128xf32>
    %5 = vector.extract_strided_slice %1 {offsets = [0, 0], sizes = [119, 16], strides = [1, 1]} : vector<128x16xbf16> to vector<119x16xbf16>
    %c0_3 = arith.constant 0 : index
    %c0_4 = arith.constant 0 : index
    %c0_5 = arith.constant 0 : index
    %6 = vector.load %arg2[%c0_3, %c0_4, %c0_5] : memref<4x16x128xbf16, #tpu.memory_space<vmem>>, vector<1x16x128xbf16>
    %7 = vector.shape_cast %6 : vector<1x16x128xbf16> to vector<16x128xbf16>
    %cst = arith.constant dense<0.000000e+00> : vector<119x128xf32>
    %8 = tpu.matmul %5, %7, %cst {dimension_numbers = #tpu.dot_dimension_numbers<[1], [0], [0], [1], [0, 0, 1, 1], [], []>} : vector<119x16xbf16>, vector<16x128xbf16>, vector<119x128xf32> -> vector<119x128xf32>
    %9 = arith.addf %4, %8 : vector<119x128xf32>
    %10 = vector.extract_strided_slice %1 {offsets = [1, 0], sizes = [119, 16], strides = [1, 1]} : vector<128x16xbf16> to vector<119x16xbf16>
    %c1 = arith.constant 1 : index
    %c0_6 = arith.constant 0 : index
    %c0_7 = arith.constant 0 : index
    %11 = vector.load %arg2[%c1, %c0_6, %c0_7] : memref<4x16x128xbf16, #tpu.memory_space<vmem>>, vector<1x16x128xbf16>
    %12 = vector.shape_cast %11 : vector<1x16x128xbf16> to vector<16x128xbf16>
    %cst_8 = arith.constant dense<0.000000e+00> : vector<119x128xf32>
    %13 = tpu.matmul %10, %12, %cst_8 {dimension_numbers = #tpu.dot_dimension_numbers<[1], [0], [0], [1], [0, 0, 1, 1], [], []>} : vector<119x16xbf16>, vector<16x128xbf16>, vector<119x128xf32> -> vector<119x128xf32>
    %14 = arith.addf %9, %13 : vector<119x128xf32>
    %15 = vector.extract_strided_slice %1 {offsets = [8, 0], sizes = [119, 16], strides = [1, 1]} : vector<128x16xbf16> to vector<119x16xbf16>
    %c2 = arith.constant 2 : index
    %c0_9 = arith.constant 0 : index
    %c0_10 = arith.constant 0 : index
    %16 = vector.load %arg2[%c2, %c0_9, %c0_10] : memref<4x16x128xbf16, #tpu.memory_space<vmem>>, vector<1x16x128xbf16>
    %17 = vector.shape_cast %16 : vector<1x16x128xbf16> to vector<16x128xbf16>
    %cst_11 = arith.constant dense<0.000000e+00> : vector<119x128xf32>
    %18 = tpu.matmul %15, %17, %cst_11 {dimension_numbers = #tpu.dot_dimension_numbers<[1], [0], [0], [1], [0, 0, 1, 1], [], []>} : vector<119x16xbf16>, vector<16x128xbf16>, vector<119x128xf32> -> vector<119x128xf32>
    %19 = arith.addf %14, %18 : vector<119x128xf32>
    %20 = vector.extract_strided_slice %1 {offsets = [9, 0], sizes = [119, 16], strides = [1, 1]} : vector<128x16xbf16> to vector<119x16xbf16>
    %c3 = arith.constant 3 : index
    %c0_12 = arith.constant 0 : index
    %c0_13 = arith.constant 0 : index
    %21 = vector.load %arg2[%c3, %c0_12, %c0_13] : memref<4x16x128xbf16, #tpu.memory_space<vmem>>, vector<1x16x128xbf16>
    %22 = vector.shape_cast %21 : vector<1x16x128xbf16> to vector<16x128xbf16>
    %cst_14 = arith.constant dense<0.000000e+00> : vector<119x128xf32>
    %23 = tpu.matmul %20, %22, %cst_14 {dimension_numbers = #tpu.dot_dimension_numbers<[1], [0], [0], [1], [0, 0, 1, 1], [], []>} : vector<119x16xbf16>, vector<16x128xbf16>, vector<119x128xf32> -> vector<119x128xf32>
    %24 = arith.addf %19, %23 : vector<119x128xf32>
    %cst_15 = arith.constant 0.000000e+00 : f32
    %25 = vector.broadcast %cst_15 : f32 to vector<119x128xf32>
    %26 = arith.maximumf %24, %25 : vector<119x128xf32>
    %27 = vector.extract_strided_slice %26 {offsets = [0, 0], sizes = [119, 32], strides = [1, 1]} : vector<119x128xf32> to vector<119x32xf32>
    %28 = arith.truncf %27 : vector<119x32xf32> to vector<119x32xbf16>
    %29 = vector.extract_strided_slice %0 {offsets = [1, 0], sizes = [1, 128], strides = [1, 1]} : vector<4x128xf32> to vector<1x128xf32>
    %30 = vector.shape_cast %29 : vector<1x128xf32> to vector<1x128xf32>
    %31 = vector.broadcast %30 : vector<1x128xf32> to vector<101x128xf32>
    %32 = vector.extract_strided_slice %28 {offsets = [0, 0], sizes = [101, 32], strides = [1, 1]} : vector<119x32xbf16> to vector<101x32xbf16>
    %c0_16 = arith.constant 0 : index
    %c0_17 = arith.constant 0 : index
    %c0_18 = arith.constant 0 : index
    %c0_19 = arith.constant 0 : index
    %33 = vector.load %arg3[%c0_16, %c0_17, %c0_18, %c0_19] : memref<3x9x32x128xbf16, #tpu.memory_space<vmem>>, vector<1x1x32x128xbf16>
    %34 = vector.shape_cast %33 : vector<1x1x32x128xbf16> to vector<32x128xbf16>
    %cst_20 = arith.constant dense<0.000000e+00> : vector<101x128xf32>
    %35 = tpu.matmul %32, %34, %cst_20 {dimension_numbers = #tpu.dot_dimension_numbers<[1], [0], [0], [1], [0, 0, 1, 1], [], []>} : vector<101x32xbf16>, vector<32x128xbf16>, vector<101x128xf32> -> vector<101x128xf32>
    %36 = arith.addf %31, %35 : vector<101x128xf32>
    %37 = vector.extract_strided_slice %28 {offsets = [1, 0], sizes = [101, 32], strides = [1, 1]} : vector<119x32xbf16> to vector<101x32xbf16>
    %c0_21 = arith.constant 0 : index
    %c1_22 = arith.constant 1 : index
    %c0_23 = arith.constant 0 : index
    %c0_24 = arith.constant 0 : index
    %38 = vector.load %arg3[%c0_21, %c1_22, %c0_23, %c0_24] : memref<3x9x32x128xbf16, #tpu.memory_space<vmem>>, vector<1x1x32x128xbf16>
    %39 = vector.shape_cast %38 : vector<1x1x32x128xbf16> to vector<32x128xbf16>
    %cst_25 = arith.constant dense<0.000000e+00> : vector<101x128xf32>
    %40 = tpu.matmul %37, %39, %cst_25 {dimension_numbers = #tpu.dot_dimension_numbers<[1], [0], [0], [1], [0, 0, 1, 1], [], []>} : vector<101x32xbf16>, vector<32x128xbf16>, vector<101x128xf32> -> vector<101x128xf32>
    %41 = arith.addf %36, %40 : vector<101x128xf32>
    %42 = vector.extract_strided_slice %28 {offsets = [2, 0], sizes = [101, 32], strides = [1, 1]} : vector<119x32xbf16> to vector<101x32xbf16>
    %c0_26 = arith.constant 0 : index
    %c2_27 = arith.constant 2 : index
    %c0_28 = arith.constant 0 : index
    %c0_29 = arith.constant 0 : index
    %43 = vector.load %arg3[%c0_26, %c2_27, %c0_28, %c0_29] : memref<3x9x32x128xbf16, #tpu.memory_space<vmem>>, vector<1x1x32x128xbf16>
    %44 = vector.shape_cast %43 : vector<1x1x32x128xbf16> to vector<32x128xbf16>
    %cst_30 = arith.constant dense<0.000000e+00> : vector<101x128xf32>
    %45 = tpu.matmul %42, %44, %cst_30 {dimension_numbers = #tpu.dot_dimension_numbers<[1], [0], [0], [1], [0, 0, 1, 1], [], []>} : vector<101x32xbf16>, vector<32x128xbf16>, vector<101x128xf32> -> vector<101x128xf32>
    %46 = arith.addf %41, %45 : vector<101x128xf32>
    %47 = vector.extract_strided_slice %28 {offsets = [8, 0], sizes = [101, 32], strides = [1, 1]} : vector<119x32xbf16> to vector<101x32xbf16>
    %c0_31 = arith.constant 0 : index
    %c3_32 = arith.constant 3 : index
    %c0_33 = arith.constant 0 : index
    %c0_34 = arith.constant 0 : index
    %48 = vector.load %arg3[%c0_31, %c3_32, %c0_33, %c0_34] : memref<3x9x32x128xbf16, #tpu.memory_space<vmem>>, vector<1x1x32x128xbf16>
    %49 = vector.shape_cast %48 : vector<1x1x32x128xbf16> to vector<32x128xbf16>
    %cst_35 = arith.constant dense<0.000000e+00> : vector<101x128xf32>
    %50 = tpu.matmul %47, %49, %cst_35 {dimension_numbers = #tpu.dot_dimension_numbers<[1], [0], [0], [1], [0, 0, 1, 1], [], []>} : vector<101x32xbf16>, vector<32x128xbf16>, vector<101x128xf32> -> vector<101x128xf32>
    %51 = arith.addf %46, %50 : vector<101x128xf32>
    %52 = vector.extract_strided_slice %28 {offsets = [9, 0], sizes = [101, 32], strides = [1, 1]} : vector<119x32xbf16> to vector<101x32xbf16>
    %c0_36 = arith.constant 0 : index
    %c4 = arith.constant 4 : index
    %c0_37 = arith.constant 0 : index
    %c0_38 = arith.constant 0 : index
    %53 = vector.load %arg3[%c0_36, %c4, %c0_37, %c0_38] : memref<3x9x32x128xbf16, #tpu.memory_space<vmem>>, vector<1x1x32x128xbf16>
    %54 = vector.shape_cast %53 : vector<1x1x32x128xbf16> to vector<32x128xbf16>
    %cst_39 = arith.constant dense<0.000000e+00> : vector<101x128xf32>
    %55 = tpu.matmul %52, %54, %cst_39 {dimension_numbers = #tpu.dot_dimension_numbers<[1], [0], [0], [1], [0, 0, 1, 1], [], []>} : vector<101x32xbf16>, vector<32x128xbf16>, vector<101x128xf32> -> vector<101x128xf32>
    %56 = arith.addf %51, %55 : vector<101x128xf32>
    %57 = vector.extract_strided_slice %28 {offsets = [10, 0], sizes = [101, 32], strides = [1, 1]} : vector<119x32xbf16> to vector<101x32xbf16>
    %c0_40 = arith.constant 0 : index
    %c5 = arith.constant 5 : index
    %c0_41 = arith.constant 0 : index
    %c0_42 = arith.constant 0 : index
    %58 = vector.load %arg3[%c0_40, %c5, %c0_41, %c0_42] : memref<3x9x32x128xbf16, #tpu.memory_space<vmem>>, vector<1x1x32x128xbf16>
    %59 = vector.shape_cast %58 : vector<1x1x32x128xbf16> to vector<32x128xbf16>
    %cst_43 = arith.constant dense<0.000000e+00> : vector<101x128xf32>
    %60 = tpu.matmul %57, %59, %cst_43 {dimension_numbers = #tpu.dot_dimension_numbers<[1], [0], [0], [1], [0, 0, 1, 1], [], []>} : vector<101x32xbf16>, vector<32x128xbf16>, vector<101x128xf32> -> vector<101x128xf32>
    %61 = arith.addf %56, %60 : vector<101x128xf32>
    %62 = vector.extract_strided_slice %28 {offsets = [16, 0], sizes = [101, 32], strides = [1, 1]} : vector<119x32xbf16> to vector<101x32xbf16>
    %c0_44 = arith.constant 0 : index
    %c6 = arith.constant 6 : index
    %c0_45 = arith.constant 0 : index
    %c0_46 = arith.constant 0 : index
    %63 = vector.load %arg3[%c0_44, %c6, %c0_45, %c0_46] : memref<3x9x32x128xbf16, #tpu.memory_space<vmem>>, vector<1x1x32x128xbf16>
    %64 = vector.shape_cast %63 : vector<1x1x32x128xbf16> to vector<32x128xbf16>
    %cst_47 = arith.constant dense<0.000000e+00> : vector<101x128xf32>
    %65 = tpu.matmul %62, %64, %cst_47 {dimension_numbers = #tpu.dot_dimension_numbers<[1], [0], [0], [1], [0, 0, 1, 1], [], []>} : vector<101x32xbf16>, vector<32x128xbf16>, vector<101x128xf32> -> vector<101x128xf32>
    %66 = arith.addf %61, %65 : vector<101x128xf32>
    %67 = vector.extract_strided_slice %28 {offsets = [17, 0], sizes = [101, 32], strides = [1, 1]} : vector<119x32xbf16> to vector<101x32xbf16>
    %c0_48 = arith.constant 0 : index
    %c7 = arith.constant 7 : index
    %c0_49 = arith.constant 0 : index
    %c0_50 = arith.constant 0 : index
    %68 = vector.load %arg3[%c0_48, %c7, %c0_49, %c0_50] : memref<3x9x32x128xbf16, #tpu.memory_space<vmem>>, vector<1x1x32x128xbf16>
    %69 = vector.shape_cast %68 : vector<1x1x32x128xbf16> to vector<32x128xbf16>
    %cst_51 = arith.constant dense<0.000000e+00> : vector<101x128xf32>
    %70 = tpu.matmul %67, %69, %cst_51 {dimension_numbers = #tpu.dot_dimension_numbers<[1], [0], [0], [1], [0, 0, 1, 1], [], []>} : vector<101x32xbf16>, vector<32x128xbf16>, vector<101x128xf32> -> vector<101x128xf32>
    %71 = arith.addf %66, %70 : vector<101x128xf32>
    %72 = vector.extract_strided_slice %28 {offsets = [18, 0], sizes = [101, 32], strides = [1, 1]} : vector<119x32xbf16> to vector<101x32xbf16>
    %c0_52 = arith.constant 0 : index
    %c8 = arith.constant 8 : index
    %c0_53 = arith.constant 0 : index
    %c0_54 = arith.constant 0 : index
    %73 = vector.load %arg3[%c0_52, %c8, %c0_53, %c0_54] : memref<3x9x32x128xbf16, #tpu.memory_space<vmem>>, vector<1x1x32x128xbf16>
    %74 = vector.shape_cast %73 : vector<1x1x32x128xbf16> to vector<32x128xbf16>
    %cst_55 = arith.constant dense<0.000000e+00> : vector<101x128xf32>
    %75 = tpu.matmul %72, %74, %cst_55 {dimension_numbers = #tpu.dot_dimension_numbers<[1], [0], [0], [1], [0, 0, 1, 1], [], []>} : vector<101x32xbf16>, vector<32x128xbf16>, vector<101x128xf32> -> vector<101x128xf32>
    %76 = arith.addf %71, %75 : vector<101x128xf32>
    %cst_56 = arith.constant 0.000000e+00 : f32
    %77 = vector.broadcast %cst_56 : f32 to vector<101x128xf32>
    %78 = arith.maximumf %76, %77 : vector<101x128xf32>
    %79 = vector.extract_strided_slice %78 {offsets = [0, 0], sizes = [101, 32], strides = [1, 1]} : vector<101x128xf32> to vector<101x32xf32>
    %80 = arith.truncf %79 : vector<101x32xf32> to vector<101x32xbf16>
    %81 = vector.extract_strided_slice %0 {offsets = [2, 0], sizes = [1, 128], strides = [1, 1]} : vector<4x128xf32> to vector<1x128xf32>
    %82 = vector.shape_cast %81 : vector<1x128xf32> to vector<1x128xf32>
    %83 = vector.broadcast %82 : vector<1x128xf32> to vector<83x128xf32>
    %84 = vector.extract_strided_slice %80 {offsets = [0, 0], sizes = [83, 32], strides = [1, 1]} : vector<101x32xbf16> to vector<83x32xbf16>
    %c1_57 = arith.constant 1 : index
    %c0_58 = arith.constant 0 : index
    %c0_59 = arith.constant 0 : index
    %c0_60 = arith.constant 0 : index
    %85 = vector.load %arg3[%c1_57, %c0_58, %c0_59, %c0_60] : memref<3x9x32x128xbf16, #tpu.memory_space<vmem>>, vector<1x1x32x128xbf16>
    %86 = vector.shape_cast %85 : vector<1x1x32x128xbf16> to vector<32x128xbf16>
    %cst_61 = arith.constant dense<0.000000e+00> : vector<83x128xf32>
    %87 = tpu.matmul %84, %86, %cst_61 {dimension_numbers = #tpu.dot_dimension_numbers<[1], [0], [0], [1], [0, 0, 1, 1], [], []>} : vector<83x32xbf16>, vector<32x128xbf16>, vector<83x128xf32> -> vector<83x128xf32>
    %88 = arith.addf %83, %87 : vector<83x128xf32>
    %89 = vector.extract_strided_slice %80 {offsets = [1, 0], sizes = [83, 32], strides = [1, 1]} : vector<101x32xbf16> to vector<83x32xbf16>
    %c1_62 = arith.constant 1 : index
    %c1_63 = arith.constant 1 : index
    %c0_64 = arith.constant 0 : index
    %c0_65 = arith.constant 0 : index
    %90 = vector.load %arg3[%c1_62, %c1_63, %c0_64, %c0_65] : memref<3x9x32x128xbf16, #tpu.memory_space<vmem>>, vector<1x1x32x128xbf16>
    %91 = vector.shape_cast %90 : vector<1x1x32x128xbf16> to vector<32x128xbf16>
    %cst_66 = arith.constant dense<0.000000e+00> : vector<83x128xf32>
    %92 = tpu.matmul %89, %91, %cst_66 {dimension_numbers = #tpu.dot_dimension_numbers<[1], [0], [0], [1], [0, 0, 1, 1], [], []>} : vector<83x32xbf16>, vector<32x128xbf16>, vector<83x128xf32> -> vector<83x128xf32>
    %93 = arith.addf %88, %92 : vector<83x128xf32>
    %94 = vector.extract_strided_slice %80 {offsets = [2, 0], sizes = [83, 32], strides = [1, 1]} : vector<101x32xbf16> to vector<83x32xbf16>
    %c1_67 = arith.constant 1 : index
    %c2_68 = arith.constant 2 : index
    %c0_69 = arith.constant 0 : index
    %c0_70 = arith.constant 0 : index
    %95 = vector.load %arg3[%c1_67, %c2_68, %c0_69, %c0_70] : memref<3x9x32x128xbf16, #tpu.memory_space<vmem>>, vector<1x1x32x128xbf16>
    %96 = vector.shape_cast %95 : vector<1x1x32x128xbf16> to vector<32x128xbf16>
    %cst_71 = arith.constant dense<0.000000e+00> : vector<83x128xf32>
    %97 = tpu.matmul %94, %96, %cst_71 {dimension_numbers = #tpu.dot_dimension_numbers<[1], [0], [0], [1], [0, 0, 1, 1], [], []>} : vector<83x32xbf16>, vector<32x128xbf16>, vector<83x128xf32> -> vector<83x128xf32>
    %98 = arith.addf %93, %97 : vector<83x128xf32>
    %99 = vector.extract_strided_slice %80 {offsets = [8, 0], sizes = [83, 32], strides = [1, 1]} : vector<101x32xbf16> to vector<83x32xbf16>
    %c1_72 = arith.constant 1 : index
    %c3_73 = arith.constant 3 : index
    %c0_74 = arith.constant 0 : index
    %c0_75 = arith.constant 0 : index
    %100 = vector.load %arg3[%c1_72, %c3_73, %c0_74, %c0_75] : memref<3x9x32x128xbf16, #tpu.memory_space<vmem>>, vector<1x1x32x128xbf16>
    %101 = vector.shape_cast %100 : vector<1x1x32x128xbf16> to vector<32x128xbf16>
    %cst_76 = arith.constant dense<0.000000e+00> : vector<83x128xf32>
    %102 = tpu.matmul %99, %101, %cst_76 {dimension_numbers = #tpu.dot_dimension_numbers<[1], [0], [0], [1], [0, 0, 1, 1], [], []>} : vector<83x32xbf16>, vector<32x128xbf16>, vector<83x128xf32> -> vector<83x128xf32>
    %103 = arith.addf %98, %102 : vector<83x128xf32>
    %104 = vector.extract_strided_slice %80 {offsets = [9, 0], sizes = [83, 32], strides = [1, 1]} : vector<101x32xbf16> to vector<83x32xbf16>
    %c1_77 = arith.constant 1 : index
    %c4_78 = arith.constant 4 : index
    %c0_79 = arith.constant 0 : index
    %c0_80 = arith.constant 0 : index
    %105 = vector.load %arg3[%c1_77, %c4_78, %c0_79, %c0_80] : memref<3x9x32x128xbf16, #tpu.memory_space<vmem>>, vector<1x1x32x128xbf16>
    %106 = vector.shape_cast %105 : vector<1x1x32x128xbf16> to vector<32x128xbf16>
    %cst_81 = arith.constant dense<0.000000e+00> : vector<83x128xf32>
    %107 = tpu.matmul %104, %106, %cst_81 {dimension_numbers = #tpu.dot_dimension_numbers<[1], [0], [0], [1], [0, 0, 1, 1], [], []>} : vector<83x32xbf16>, vector<32x128xbf16>, vector<83x128xf32> -> vector<83x128xf32>
    %108 = arith.addf %103, %107 : vector<83x128xf32>
    %109 = vector.extract_strided_slice %80 {offsets = [10, 0], sizes = [83, 32], strides = [1, 1]} : vector<101x32xbf16> to vector<83x32xbf16>
    %c1_82 = arith.constant 1 : index
    %c5_83 = arith.constant 5 : index
    %c0_84 = arith.constant 0 : index
    %c0_85 = arith.constant 0 : index
    %110 = vector.load %arg3[%c1_82, %c5_83, %c0_84, %c0_85] : memref<3x9x32x128xbf16, #tpu.memory_space<vmem>>, vector<1x1x32x128xbf16>
    %111 = vector.shape_cast %110 : vector<1x1x32x128xbf16> to vector<32x128xbf16>
    %cst_86 = arith.constant dense<0.000000e+00> : vector<83x128xf32>
    %112 = tpu.matmul %109, %111, %cst_86 {dimension_numbers = #tpu.dot_dimension_numbers<[1], [0], [0], [1], [0, 0, 1, 1], [], []>} : vector<83x32xbf16>, vector<32x128xbf16>, vector<83x128xf32> -> vector<83x128xf32>
    %113 = arith.addf %108, %112 : vector<83x128xf32>
    %114 = vector.extract_strided_slice %80 {offsets = [16, 0], sizes = [83, 32], strides = [1, 1]} : vector<101x32xbf16> to vector<83x32xbf16>
    %c1_87 = arith.constant 1 : index
    %c6_88 = arith.constant 6 : index
    %c0_89 = arith.constant 0 : index
    %c0_90 = arith.constant 0 : index
    %115 = vector.load %arg3[%c1_87, %c6_88, %c0_89, %c0_90] : memref<3x9x32x128xbf16, #tpu.memory_space<vmem>>, vector<1x1x32x128xbf16>
    %116 = vector.shape_cast %115 : vector<1x1x32x128xbf16> to vector<32x128xbf16>
    %cst_91 = arith.constant dense<0.000000e+00> : vector<83x128xf32>
    %117 = tpu.matmul %114, %116, %cst_91 {dimension_numbers = #tpu.dot_dimension_numbers<[1], [0], [0], [1], [0, 0, 1, 1], [], []>} : vector<83x32xbf16>, vector<32x128xbf16>, vector<83x128xf32> -> vector<83x128xf32>
    %118 = arith.addf %113, %117 : vector<83x128xf32>
    %119 = vector.extract_strided_slice %80 {offsets = [17, 0], sizes = [83, 32], strides = [1, 1]} : vector<101x32xbf16> to vector<83x32xbf16>
    %c1_92 = arith.constant 1 : index
    %c7_93 = arith.constant 7 : index
    %c0_94 = arith.constant 0 : index
    %c0_95 = arith.constant 0 : index
    %120 = vector.load %arg3[%c1_92, %c7_93, %c0_94, %c0_95] : memref<3x9x32x128xbf16, #tpu.memory_space<vmem>>, vector<1x1x32x128xbf16>
    %121 = vector.shape_cast %120 : vector<1x1x32x128xbf16> to vector<32x128xbf16>
    %cst_96 = arith.constant dense<0.000000e+00> : vector<83x128xf32>
    %122 = tpu.matmul %119, %121, %cst_96 {dimension_numbers = #tpu.dot_dimension_numbers<[1], [0], [0], [1], [0, 0, 1, 1], [], []>} : vector<83x32xbf16>, vector<32x128xbf16>, vector<83x128xf32> -> vector<83x128xf32>
    %123 = arith.addf %118, %122 : vector<83x128xf32>
    %124 = vector.extract_strided_slice %80 {offsets = [18, 0], sizes = [83, 32], strides = [1, 1]} : vector<101x32xbf16> to vector<83x32xbf16>
    %c1_97 = arith.constant 1 : index
    %c8_98 = arith.constant 8 : index
    %c0_99 = arith.constant 0 : index
    %c0_100 = arith.constant 0 : index
    %125 = vector.load %arg3[%c1_97, %c8_98, %c0_99, %c0_100] : memref<3x9x32x128xbf16, #tpu.memory_space<vmem>>, vector<1x1x32x128xbf16>
    %126 = vector.shape_cast %125 : vector<1x1x32x128xbf16> to vector<32x128xbf16>
    %cst_101 = arith.constant dense<0.000000e+00> : vector<83x128xf32>
    %127 = tpu.matmul %124, %126, %cst_101 {dimension_numbers = #tpu.dot_dimension_numbers<[1], [0], [0], [1], [0, 0, 1, 1], [], []>} : vector<83x32xbf16>, vector<32x128xbf16>, vector<83x128xf32> -> vector<83x128xf32>
    %128 = arith.addf %123, %127 : vector<83x128xf32>
    %cst_102 = arith.constant 0.000000e+00 : f32
    %129 = vector.broadcast %cst_102 : f32 to vector<83x128xf32>
    %130 = arith.maximumf %128, %129 : vector<83x128xf32>
    %131 = vector.extract_strided_slice %130 {offsets = [0, 0], sizes = [83, 32], strides = [1, 1]} : vector<83x128xf32> to vector<83x32xf32>
    %132 = arith.truncf %131 : vector<83x32xf32> to vector<83x32xbf16>
    %133 = vector.extract_strided_slice %0 {offsets = [3, 0], sizes = [1, 128], strides = [1, 1]} : vector<4x128xf32> to vector<1x128xf32>
    %134 = vector.shape_cast %133 : vector<1x128xf32> to vector<1x128xf32>
    %135 = vector.broadcast %134 : vector<1x128xf32> to vector<65x128xf32>
    %136 = vector.extract_strided_slice %132 {offsets = [0, 0], sizes = [65, 32], strides = [1, 1]} : vector<83x32xbf16> to vector<65x32xbf16>
    %c2_103 = arith.constant 2 : index
    %c0_104 = arith.constant 0 : index
    %c0_105 = arith.constant 0 : index
    %c0_106 = arith.constant 0 : index
    %137 = vector.load %arg3[%c2_103, %c0_104, %c0_105, %c0_106] : memref<3x9x32x128xbf16, #tpu.memory_space<vmem>>, vector<1x1x32x128xbf16>
    %138 = vector.shape_cast %137 : vector<1x1x32x128xbf16> to vector<32x128xbf16>
    %cst_107 = arith.constant dense<0.000000e+00> : vector<65x128xf32>
    %139 = tpu.matmul %136, %138, %cst_107 {dimension_numbers = #tpu.dot_dimension_numbers<[1], [0], [0], [1], [0, 0, 1, 1], [], []>} : vector<65x32xbf16>, vector<32x128xbf16>, vector<65x128xf32> -> vector<65x128xf32>
    %140 = arith.addf %135, %139 : vector<65x128xf32>
    %141 = vector.extract_strided_slice %132 {offsets = [1, 0], sizes = [65, 32], strides = [1, 1]} : vector<83x32xbf16> to vector<65x32xbf16>
    %c2_108 = arith.constant 2 : index
    %c1_109 = arith.constant 1 : index
    %c0_110 = arith.constant 0 : index
    %c0_111 = arith.constant 0 : index
    %142 = vector.load %arg3[%c2_108, %c1_109, %c0_110, %c0_111] : memref<3x9x32x128xbf16, #tpu.memory_space<vmem>>, vector<1x1x32x128xbf16>
    %143 = vector.shape_cast %142 : vector<1x1x32x128xbf16> to vector<32x128xbf16>
    %cst_112 = arith.constant dense<0.000000e+00> : vector<65x128xf32>
    %144 = tpu.matmul %141, %143, %cst_112 {dimension_numbers = #tpu.dot_dimension_numbers<[1], [0], [0], [1], [0, 0, 1, 1], [], []>} : vector<65x32xbf16>, vector<32x128xbf16>, vector<65x128xf32> -> vector<65x128xf32>
    %145 = arith.addf %140, %144 : vector<65x128xf32>
    %146 = vector.extract_strided_slice %132 {offsets = [2, 0], sizes = [65, 32], strides = [1, 1]} : vector<83x32xbf16> to vector<65x32xbf16>
    %c2_113 = arith.constant 2 : index
    %c2_114 = arith.constant 2 : index
    %c0_115 = arith.constant 0 : index
    %c0_116 = arith.constant 0 : index
    %147 = vector.load %arg3[%c2_113, %c2_114, %c0_115, %c0_116] : memref<3x9x32x128xbf16, #tpu.memory_space<vmem>>, vector<1x1x32x128xbf16>
    %148 = vector.shape_cast %147 : vector<1x1x32x128xbf16> to vector<32x128xbf16>
    %cst_117 = arith.constant dense<0.000000e+00> : vector<65x128xf32>
    %149 = tpu.matmul %146, %148, %cst_117 {dimension_numbers = #tpu.dot_dimension_numbers<[1], [0], [0], [1], [0, 0, 1, 1], [], []>} : vector<65x32xbf16>, vector<32x128xbf16>, vector<65x128xf32> -> vector<65x128xf32>
    %150 = arith.addf %145, %149 : vector<65x128xf32>
    %151 = vector.extract_strided_slice %132 {offsets = [8, 0], sizes = [65, 32], strides = [1, 1]} : vector<83x32xbf16> to vector<65x32xbf16>
    %c2_118 = arith.constant 2 : index
    %c3_119 = arith.constant 3 : index
    %c0_120 = arith.constant 0 : index
    %c0_121 = arith.constant 0 : index
    %152 = vector.load %arg3[%c2_118, %c3_119, %c0_120, %c0_121] : memref<3x9x32x128xbf16, #tpu.memory_space<vmem>>, vector<1x1x32x128xbf16>
    %153 = vector.shape_cast %152 : vector<1x1x32x128xbf16> to vector<32x128xbf16>
    %cst_122 = arith.constant dense<0.000000e+00> : vector<65x128xf32>
    %154 = tpu.matmul %151, %153, %cst_122 {dimension_numbers = #tpu.dot_dimension_numbers<[1], [0], [0], [1], [0, 0, 1, 1], [], []>} : vector<65x32xbf16>, vector<32x128xbf16>, vector<65x128xf32> -> vector<65x128xf32>
    %155 = arith.addf %150, %154 : vector<65x128xf32>
    %156 = vector.extract_strided_slice %132 {offsets = [9, 0], sizes = [65, 32], strides = [1, 1]} : vector<83x32xbf16> to vector<65x32xbf16>
    %c2_123 = arith.constant 2 : index
    %c4_124 = arith.constant 4 : index
    %c0_125 = arith.constant 0 : index
    %c0_126 = arith.constant 0 : index
    %157 = vector.load %arg3[%c2_123, %c4_124, %c0_125, %c0_126] : memref<3x9x32x128xbf16, #tpu.memory_space<vmem>>, vector<1x1x32x128xbf16>
    %158 = vector.shape_cast %157 : vector<1x1x32x128xbf16> to vector<32x128xbf16>
    %cst_127 = arith.constant dense<0.000000e+00> : vector<65x128xf32>
    %159 = tpu.matmul %156, %158, %cst_127 {dimension_numbers = #tpu.dot_dimension_numbers<[1], [0], [0], [1], [0, 0, 1, 1], [], []>} : vector<65x32xbf16>, vector<32x128xbf16>, vector<65x128xf32> -> vector<65x128xf32>
    %160 = arith.addf %155, %159 : vector<65x128xf32>
    %161 = vector.extract_strided_slice %132 {offsets = [10, 0], sizes = [65, 32], strides = [1, 1]} : vector<83x32xbf16> to vector<65x32xbf16>
    %c2_128 = arith.constant 2 : index
    %c5_129 = arith.constant 5 : index
    %c0_130 = arith.constant 0 : index
    %c0_131 = arith.constant 0 : index
    %162 = vector.load %arg3[%c2_128, %c5_129, %c0_130, %c0_131] : memref<3x9x32x128xbf16, #tpu.memory_space<vmem>>, vector<1x1x32x128xbf16>
    %163 = vector.shape_cast %162 : vector<1x1x32x128xbf16> to vector<32x128xbf16>
    %cst_132 = arith.constant dense<0.000000e+00> : vector<65x128xf32>
    %164 = tpu.matmul %161, %163, %cst_132 {dimension_numbers = #tpu.dot_dimension_numbers<[1], [0], [0], [1], [0, 0, 1, 1], [], []>} : vector<65x32xbf16>, vector<32x128xbf16>, vector<65x128xf32> -> vector<65x128xf32>
    %165 = arith.addf %160, %164 : vector<65x128xf32>
    %166 = vector.extract_strided_slice %132 {offsets = [16, 0], sizes = [65, 32], strides = [1, 1]} : vector<83x32xbf16> to vector<65x32xbf16>
    %c2_133 = arith.constant 2 : index
    %c6_134 = arith.constant 6 : index
    %c0_135 = arith.constant 0 : index
    %c0_136 = arith.constant 0 : index
    %167 = vector.load %arg3[%c2_133, %c6_134, %c0_135, %c0_136] : memref<3x9x32x128xbf16, #tpu.memory_space<vmem>>, vector<1x1x32x128xbf16>
    %168 = vector.shape_cast %167 : vector<1x1x32x128xbf16> to vector<32x128xbf16>
    %cst_137 = arith.constant dense<0.000000e+00> : vector<65x128xf32>
    %169 = tpu.matmul %166, %168, %cst_137 {dimension_numbers = #tpu.dot_dimension_numbers<[1], [0], [0], [1], [0, 0, 1, 1], [], []>} : vector<65x32xbf16>, vector<32x128xbf16>, vector<65x128xf32> -> vector<65x128xf32>
    %170 = arith.addf %165, %169 : vector<65x128xf32>
    %171 = vector.extract_strided_slice %132 {offsets = [17, 0], sizes = [65, 32], strides = [1, 1]} : vector<83x32xbf16> to vector<65x32xbf16>
    %c2_138 = arith.constant 2 : index
    %c7_139 = arith.constant 7 : index
    %c0_140 = arith.constant 0 : index
    %c0_141 = arith.constant 0 : index
    %172 = vector.load %arg3[%c2_138, %c7_139, %c0_140, %c0_141] : memref<3x9x32x128xbf16, #tpu.memory_space<vmem>>, vector<1x1x32x128xbf16>
    %173 = vector.shape_cast %172 : vector<1x1x32x128xbf16> to vector<32x128xbf16>
    %cst_142 = arith.constant dense<0.000000e+00> : vector<65x128xf32>
    %174 = tpu.matmul %171, %173, %cst_142 {dimension_numbers = #tpu.dot_dimension_numbers<[1], [0], [0], [1], [0, 0, 1, 1], [], []>} : vector<65x32xbf16>, vector<32x128xbf16>, vector<65x128xf32> -> vector<65x128xf32>
    %175 = arith.addf %170, %174 : vector<65x128xf32>
    %176 = vector.extract_strided_slice %132 {offsets = [18, 0], sizes = [65, 32], strides = [1, 1]} : vector<83x32xbf16> to vector<65x32xbf16>
    %c2_143 = arith.constant 2 : index
    %c8_144 = arith.constant 8 : index
    %c0_145 = arith.constant 0 : index
    %c0_146 = arith.constant 0 : index
    %177 = vector.load %arg3[%c2_143, %c8_144, %c0_145, %c0_146] : memref<3x9x32x128xbf16, #tpu.memory_space<vmem>>, vector<1x1x32x128xbf16>
    %178 = vector.shape_cast %177 : vector<1x1x32x128xbf16> to vector<32x128xbf16>
    %cst_147 = arith.constant dense<0.000000e+00> : vector<65x128xf32>
    %179 = tpu.matmul %176, %178, %cst_147 {dimension_numbers = #tpu.dot_dimension_numbers<[1], [0], [0], [1], [0, 0, 1, 1], [], []>} : vector<65x32xbf16>, vector<32x128xbf16>, vector<65x128xf32> -> vector<65x128xf32>
    %180 = arith.addf %175, %179 : vector<65x128xf32>
    %cst_148 = arith.constant 0.000000e+00 : f32
    %181 = vector.broadcast %cst_148 : f32 to vector<65x128xf32>
    %182 = arith.maximumf %180, %181 : vector<65x128xf32>
    %c0_149 = arith.constant 0 : index
    %c0_150 = arith.constant 0 : index
    %c0_151 = arith.constant 0 : index
    %183 = vector.load %arg5[%c0_149, %c0_150, %c0_151] : memref<1x65x128xf32, #tpu.memory_space<vmem>>, vector<1x65x128xf32>
    %184 = vector.shape_cast %183 : vector<1x65x128xf32> to vector<65x128xf32>
    %185 = vector.shape_cast %182 : vector<65x128xf32> to vector<1x65x128xf32>
    tpu.vector_store %arg5[%c0_149, %c0_150, %c0_151], %185 {strides = array<i32>} : memref<1x65x128xf32, #tpu.memory_space<vmem>>, vector<1x65x128xf32>,
    return
  }
  func.func @transform_0(%arg0: i32) -> (i32, i32) {
    %c0_i32 = arith.constant 0 : i32
    %c0_i32_0 = arith.constant 0 : i32
    return %arg0, %c0_i32 : i32, i32
  }
  func.func @transform_1(%arg0: i32) -> (i32, i32, i32) {
    %c0_i32 = arith.constant 0 : i32
    %c0_i32_0 = arith.constant 0 : i32
    %c0_i32_1 = arith.constant 0 : i32
    %c0_i32_2 = arith.constant 0 : i32
    return %c0_i32, %c0_i32_0, %c0_i32_1 : i32, i32, i32
  }
  func.func @transform_2(%arg0: i32) -> (i32, i32, i32, i32) {
    %c0_i32 = arith.constant 0 : i32
    %c0_i32_0 = arith.constant 0 : i32
    %c0_i32_1 = arith.constant 0 : i32
    %c0_i32_2 = arith.constant 0 : i32
    %c0_i32_3 = arith.constant 0 : i32
    return %c0_i32, %c0_i32_0, %c0_i32_1, %c0_i32_2 : i32, i32, i32, i32
  }
  func.func @transform_3(%arg0: i32) -> (i32, i32) {
    %c0_i32 = arith.constant 0 : i32
    %c0_i32_0 = arith.constant 0 : i32
    %c0_i32_1 = arith.constant 0 : i32
    return %c0_i32, %c0_i32_0 : i32, i32
  }
  func.func @transform_4(%arg0: i32) -> (i32, i32, i32) {
    %c0_i32 = arith.constant 0 : i32
    %c0_i32_0 = arith.constant 0 : i32
    %c0_i32_1 = arith.constant 0 : i32
    return %arg0, %c0_i32, %c0_i32_0 : i32, i32, i32
  }
}

</mosaic_0001>

<llo_original>
// kernel: custom-call
$region0: #{custom-call}
  %s0 = inlined_call_operand.hbm [shape: f32[4,32], index: 0, kind: output, shape index: {}]

// kernel: encoder_forward.1
$region0: #{encoder_forward.1}
  #allocation0 [shape = 'u32[]', space=smem, size = 0x4, offset = 0x4, fixed_abs, tag = 'smem constant byte address 0x4 - core index']
  #allocation1 [shape = 'u32[144,128]{1,0:T(1,128)}', space=vmem, size = 0x12000, scoped, tag = 'internal scratch']
  %s0 = inlined_call_operand.vmem [shape: bf16[256,16], index: 0, kind: input, shape index: {}]
  %s1 = inlined_call_operand.vmem [shape: bf16[4,16,128], index: 1, kind: input, shape index: {}]
  %s2 = inlined_call_operand.vmem [shape: bf16[3,9,32,128], index: 2, kind: input, shape index: {}]
  %s3 = inlined_call_operand.vmem [shape: f32[4,128], index: 3, kind: input, shape index: {}]
  %s4 = inlined_call_operand.vmem [shape: f32[2,65,128], index: 4, kind: output, shape index: {}]
  %s5 = sld [smem:[#allocation0]]
  $region49: #{encoder_forward.1} parent=0
    _
  %s7 = ssub.s32 1, %s5
  %s8 = scalar_select 0, %s7, %s5
  loop: start=0, step=1, limit=4
  $region2: #{encoder_forward.1} parent=0 // loop_pre_header
    _
  $region3: #{encoder_forward.1} parent=0 // loop_header
    %s10 = sphi 0, %s14
    %p11 = scmp.ge.s32.totalorder %s10, 4
    %s20 = sphi 0, %s22
    %s23 = sphi 0, %s20
    %s24 = sphi 0, %s23
    %s40 = sphi 0, %s24
    %s44 = sphi 0, %s44
    %s46 = sphi 0, %s44
    %s47 = sphi 0, %s46
    %s61 = sphi 0, %s47
    %s65 = sphi 0, %s65
    %s67 = sphi 0, %s65
    %s68 = sphi 0, %s67
    %s82 = sphi 0, %s68
    %s86 = sphi 0, %s86
    %s88 = sphi 0, %s86
    %s89 = sphi 0, %s88
    %s103 = sphi 0, %s89
    %s109 = sphi 0, %s111
    %s112 = sphi 0, %s109
    %s113 = sphi 0, %s112
    %s129 = sphi 0, %s113
  $region4: #{encoder_forward.1} parent=0 // loop_header_branch
    %13 = sbr.rel (%p11) target = $region8
  $region5: #{encoder_forward.1} parent=0 // loop_body
    %s15 = ssub.s32 %s10, 1
    %s16 = ssub.s32 %s10, 2
    %s17 = sadd.s32 %s10, 1
    %s18 = ssub.s32 %s10, %s17
    %p19 = scmp.eq.s32.totalorder %s18, 0
    %s21 = sadd.s32 %s20, 1
    %s22 = scalar_select %p19, %s20, %s21
    %p25 = pneg %p19
    %p26 = scmp.eq.s32.totalorder %s10, 1
    %p27 = por %p25, %p26
    %p28 = scmp.ne.s32.totalorder %s20, %s23
    %p29 = scmp.eq.s32.totalorder %s10, 0
    %p30 = por %p28, %p29
    %p31 = scmp.ne.s32.totalorder %s20, %s23
    %p32 = scmp.eq.s32.totalorder %s15, 1
    %p33 = por %p31, %p32
    %p34 = scmp.ne.s32.totalorder %s23, %s24
    %p35 = scmp.eq.s32.totalorder %s15, 0
    %p36 = por %p34, %p35
    %p37 = scmp.ne.s32.totalorder %s23, %s24
    %p38 = scmp.eq.s32.totalorder %s16, 1
    %p39 = por %p37, %p38
    %p41 = scmp.ne.s32.totalorder %s24, %s40
    %p42 = scmp.eq.s32.totalorder %s16, 0
    %p43 = por %p41, %p42
    %s45 = sadd.s32 %s44, 1
    %p48 = scmp.eq.s32.totalorder %s10, 1
    %p49 = scmp.ne.s32.totalorder %s44, %s46
    %p50 = scmp.eq.s32.totalorder %s10, 0
    %p51 = por %p49, %p50
    %p52 = scmp.ne.s32.totalorder %s44, %s46
    %p53 = scmp.eq.s32.totalorder %s15, 1
    %p54 = por %p52, %p53
    %p55 = scmp.ne.s32.totalorder %s46, %s47
    %p56 = scmp.eq.s32.totalorder %s15, 0
    %p57 = por %p55, %p56
    %p58 = scmp.ne.s32.totalorder %s46, %s47
    %p59 = scmp.eq.s32.totalorder %s16, 1
    %p60 = por %p58, %p59
    %p62 = scmp.ne.s32.totalorder %s47, %s61
    %p63 = scmp.eq.s32.totalorder %s16, 0
    %p64 = por %p62, %p63
    %s66 = sadd.s32 %s65, 1
    %p69 = scmp.eq.s32.totalorder %s10, 1
    %p70 = scmp.ne.s32.totalorder %s65, %s67
    %p71 = scmp.eq.s32.totalorder %s10, 0
    %p72 = por %p70, %p71
    %p73 = scmp.ne.s32.totalorder %s65, %s67
    %p74 = scmp.eq.s32.totalorder %s15, 1
    %p75 = por %p73, %p74
    %p76 = scmp.ne.s32.totalorder %s67, %s68
    %p77 = scmp.eq.s32.totalorder %s15, 0
    %p78 = por %p76, %p77
    %p79 = scmp.ne.s32.totalorder %s67, %s68
    %p80 = scmp.eq.s32.totalorder %s16, 1
    %p81 = por %p79, %p80
    %p83 = scmp.ne.s32.totalorder %s68, %s82
    %p84 = scmp.eq.s32.totalorder %s16, 0
    %p85 = por %p83, %p84
    %s87 = sadd.s32 %s86, 1
    %p90 = scmp.eq.s32.totalorder %s10, 1
    %p91 = scmp.ne.s32.totalorder %s86, %s88
    %p92 = scmp.eq.s32.totalorder %s10, 0
    %p93 = por %p91, %p92
    %p94 = scmp.ne.s32.totalorder %s86, %s88
    %p95 = scmp.eq.s32.totalorder %s15, 1
    %p96 = por %p94, %p95
    %p97 = scmp.ne.s32.totalorder %s88, %s89
    %p98 = scmp.eq.s32.totalorder %s15, 0
    %p99 = por %p97, %p98
    %p100 = scmp.ne.s32.totalorder %s88, %s89
    %p101 = scmp.eq.s32.totalorder %s16, 1
    %p102 = por %p100, %p101
    %p104 = scmp.ne.s32.totalorder %s89, %s103
    %p105 = scmp.eq.s32.totalorder %s16, 0
    %p106 = por %p104, %p105
    %s107 = ssub.s32 %s10, %s17
    %p108 = scmp.eq.s32.totalorder %s107, 0
    %s110 = sadd.s32 %s109, 1
    %s111 = scalar_select %p108, %s109, %s110
    %p114 = pneg %p108
    %p115 = scmp.eq.s32.totalorder %s10, 1
    %p116 = por %p114, %p115
    %p117 = scmp.ne.s32.totalorder %s109, %s112
    %p118 = scmp.eq.s32.totalorder %s10, 0
    %p119 = por %p117, %p118
    %p120 = scmp.ne.s32.totalorder %s109, %s112
    %p121 = scmp.eq.s32.totalorder %s15, 1
    %p122 = por %p120, %p121
    %p123 = scmp.ne.s32.totalorder %s112, %s113
    %p124 = scmp.eq.s32.totalorder %s15, 0
    %p125 = por %p123, %p124
    %p126 = scmp.ne.s32.totalorder %s112, %s113
    %p127 = scmp.eq.s32.totalorder %s16, 1
    %p128 = por %p126, %p127
    %p130 = scmp.ne.s32.totalorder %s113, %s129
    %p131 = scmp.eq.s32.totalorder %s16, 0
    %p132 = por %p130, %p131
    %p133 = scmp.le.s32.totalorder 1, %s10
    %p134 = scmp.lt.s32.totalorder %s10, 3
    %p135 = pnand %p133, %p134
    %p136 = pneg %p135
    // Predicated region
    $region9: #{encoder_forward.1} parent=5 // pred_check
      _
    $region10: #{encoder_forward.1} parent=5 // pred_check_branch
      %138 = sbr.rel (%p135) target = $region12
    $region11: #{encoder_forward.1} parent=5 // pred_region
      %s139 = ssub.s32 %s10, 1
      // Predicated region
      $region13: #{encoder_forward.1} parent=11 // pred_check
        %p140 = pneg %p57
      $region14: #{encoder_forward.1} parent=11 // pred_check_branch
        %142 = sbr.rel (%p140) target = $region16
      $region15: #{encoder_forward.1} parent=11 // pred_region
        _
      $region16: #{encoder_forward.1} parent=11 // pred_fallthru
        _
      // Predicated region
      $region17: #{encoder_forward.1} parent=11 // pred_check
        %p143 = pneg %p78
      $region18: #{encoder_forward.1} parent=11 // pred_check_branch
        %145 = sbr.rel (%p143) target = $region20
      $region19: #{encoder_forward.1} parent=11 // pred_region
        _
      $region20: #{encoder_forward.1} parent=11 // pred_fallthru
        _
      // Predicated region
      $region21: #{encoder_forward.1} parent=11 // pred_check
        %p146 = pneg %p99
      $region22: #{encoder_forward.1} parent=11 // pred_check_branch
        %148 = sbr.rel (%p146) target = $region24
      $region23: #{encoder_forward.1} parent=11 // pred_region
        _
      $region24: #{encoder_forward.1} parent=11 // pred_fallthru
        _
    $region12: #{encoder_forward.1} parent=5 // pred_fallthru
      _
    %p149 = scmp.lt.s32.totalorder %s10, 2
    // Predicated region
    $region25: #{encoder_forward.1} parent=5 // pred_check
      %p150 = pneg %p149
    $region26: #{encoder_forward.1} parent=5 // pred_check_branch
      %152 = sbr.rel (%p150) target = $region28
    $region27: #{encoder_forward.1} parent=5 // pred_region
      // Predicated region
      $region29: #{encoder_forward.1} parent=27 // pred_check
        %p153 = pneg %p30
      $region30: #{encoder_forward.1} parent=27 // pred_check_branch
        %155 = sbr.rel (%p153) target = $region32
      $region31: #{encoder_forward.1} parent=27 // pred_region
        %s156 = smul.u32 16, %s10
        %p157 = scmp.lt.s32.totalorder %s156, 31
        %s158 = scalar_select %p157, %s156, 31
        %s159 = smul.addr %s158, 4
        %s160 = scalar_lea.vmem %s0, %s159
        %s161 = smul.u32 16, %s10
      $region32: #{encoder_forward.1} parent=27 // pred_fallthru
        _
    $region28: #{encoder_forward.1} parent=5 // pred_fallthru
      _
    %p162 = scmp.le.s32.totalorder 1, %s10
    %p163 = scmp.lt.s32.totalorder %s10, 3
    %p164 = pnand %p162, %p163
    %p165 = pneg %p164
    // Predicated region
    $region33: #{encoder_forward.1} parent=5 // pred_check
      _
    $region34: #{encoder_forward.1} parent=5 // pred_check_branch
      %167 = sbr.rel (%p164) target = $region36
    $region35: #{encoder_forward.1} parent=5 // pred_region
      %s168 = ssub.s32 %s10, 1
      %s169 = smul.u32 16, %s15
      %p170 = scmp.lt.s32.totalorder %s169, 31
      %s171 = scalar_select %p170, %s169, 31
      %s172 = smul.addr %s171, 4
      %s173 = scalar_lea.vmem %s0, %s172
      %p174 = pneg %p36
      %p175 = pneg %p33
      %p176 = pneg %p57
      %p177 = pneg %p54
      %p178 = pneg %p78
      %p179 = pneg %p75
      %p180 = pneg %p99
      %p181 = pneg %p96
      %p182 = pneg %p125
      %p183 = pneg %p122
      %p184 = scmp.lt.s32.totalorder %s15, 1
      %s185 = scalar_select %p184, %s15, 1
      %s186 = smul.addr %s185, 9
      %s187 = smul.addr %s186, 8
      %s188 = scalar_lea.vmem %s4, %s187
      %s189 = smul.u32 16, %s15
      %p190 = scmp.lt.s32.totalorder %s189, 31
      %s191 = scalar_select %p190, %s189, 31
      %s192 = smul.addr %s191, 4
      %s193 = scalar_lea.vmem %s0, %s192
      %s194 = smul.u32 16, %s15
      %p195 = scmp.lt.s32.totalorder %s15, 1
      %s196 = scalar_select %p195, %s15, 1
      %s197 = smul.addr %s196, 9
      %s198 = smul.addr %s197, 8
      %s199 = scalar_lea.vmem %s4, %s198
      %v201 = vld [vmem:[%s3] sm:$0xf]
      %v202 = vld [vmem:[%s193] sm:$0xf]
      %v203 = vld [vmem:[%s193 + $0x4] sm:$0xf]
      %v204 = vld [vmem:[%s193 + $0x8] sm:$0xf]
      %v205 = vld [vmem:[%s193 + $0xc] sm:$0xf]
      %v206 = vld [vmem:[%s193 + $0x10] sm:$0xf]
      %v207 = vld [vmem:[%s193 + $0x14] sm:$0xf]
      %v208 = vld [vmem:[%s193 + $0x18] sm:$0xf]
      %v209 = vld [vmem:[%s193 + $0x1c] sm:$0xf]
      %v210 = vld [vmem:[%s193 + $0x20] sm:$0xf]
      %v211 = vld [vmem:[%s193 + $0x24] sm:$0xf]
      %v212 = vld [vmem:[%s193 + $0x28] sm:$0xf]
      %v213 = vld [vmem:[%s193 + $0x2c] sm:$0xf]
      %v214 = vld [vmem:[%s193 + $0x30] sm:$0xf]
      %v215 = vld [vmem:[%s193 + $0x34] sm:$0xf]
      %v216 = vld [vmem:[%s193 + $0x38] sm:$0xf]
      %v217 = vld [vmem:[%s193 + $0x3c] sm:$0xf]
      %v218 = vlaneseq
      %v219 = vshrl.u32 %v218, 7
      %v220 = vsub.s32 0, %v219
      %v221 = vrot.slane %v201, %v220
      %v222 = vld [vmem:[%s1] sm:$0xf]
      %v223 = vld [vmem:[%s1 + $0x4] sm:$0xf]
      %v239 = vunpack.c.l.b16 %v202
      %v240 = vunpack.c.l.b16 %v203
      %v241 = vunpack.c.l.b16 %v204
      %v242 = vunpack.c.l.b16 %v205
      %v243 = vunpack.c.l.b16 %v206
      %v244 = vunpack.c.l.b16 %v207
      %v245 = vunpack.c.l.b16 %v208
      %v246 = vunpack.c.l.b16 %v209
      %v247 = vunpack.c.l.b16 %v210
      %v248 = vunpack.c.l.b16 %v211
      %v249 = vunpack.c.l.b16 %v212
      %v250 = vunpack.c.l.b16 %v213
      %v251 = vunpack.c.l.b16 %v214
      %v252 = vunpack.c.l.b16 %v215
      %v253 = vunpack.c.l.b16 %v216
      %v254 = vpack.c.b16 %v240, %v239
      %v255 = vpack.c.b16 %v242, %v241
      %v256 = vpack.c.b16 %v244, %v243
      %v257 = vpack.c.b16 %v246, %v245
      %v258 = vpack.c.b16 %v248, %v247
      %v259 = vpack.c.b16 %v250, %v249
      %v260 = vpack.c.b16 %v252, %v251
      %v261 = vpack.c.b16 %v253, %v253
      %v264 = vunpack.c.l.b16 %v222
      %v265 = vunpack.c.l.b16 %v223
      %v266 = vpack.c.b16 %v265, %v264
      %vm268 = vcmask 130048
      %v270 = vsel %vm268, %v254, 0
      %v273 = vsel %vm268, %v255, 0
      %v276 = vsel %vm268, %v256, 0
      %v279 = vsel %vm268, %v257, 0
      %v282 = vsel %vm268, %v258, 0
      %v285 = vsel %vm268, %v259, 0
      %v288 = vsel %vm268, %v260, 0
      %v291 = vsel %vm268, %v261, 0
      %293 = vmatprep.subr.bf16.mxu0 0
      %294 = vmatpush1.bf16.msra.mxu0 %v266
      %295 = vmatprep.subr.bf16.mxu0 0
      %296 = vmatpush1.bf16.msra.mxu0 0
      %297 = vmatprep.subr.bf16.mxu0 0
      %298 = vmatpush1.bf16.msra.mxu0 0
      %299 = vmatprep.subr.bf16.mxu0 0
      %300 = vmatpush1.bf16.msra.mxu0 0
      %301 = vmatprep.subr.bf16.mxu0 0
      %302 = vmatpush1.bf16.msra.mxu0 0
      %303 = vmatprep.subr.bf16.mxu0 0
      %304 = vmatpush1.bf16.msra.mxu0 0
      %305 = vmatprep.subr.bf16.mxu0 0
      %306 = vmatpush1.bf16.msra.mxu0 0
      %307 = vmatprep.subr.bf16.mxu0 0
      %308 = vmatpush1.bf16.msra.mxu0 0
      %309 = vmatprep.subr.bf16.mxu0 0
      %310 = vmatpush1.bf16.msra.mxu0 0
      %311 = vmatprep.subr.bf16.mxu0 0
      %312 = vmatpush1.bf16.msra.mxu0 0
      %313 = vmatprep.subr.bf16.mxu0 0
      %314 = vmatpush1.bf16.msra.mxu0 0
      %315 = vmatprep.subr.bf16.mxu0 0
      %316 = vmatpush1.bf16.msra.mxu0 0
      %317 = vmatprep.subr.bf16.mxu0 0
      %318 = vmatpush1.bf16.msra.mxu0 0
      %319 = vmatprep.subr.bf16.mxu0 0
      %320 = vmatpush1.bf16.msra.mxu0 0
      %321 = vmatprep.subr.bf16.mxu0 0
      %322 = vmatpush1.bf16.msra.mxu0 0
      %323 = vmatprep.subr.bf16.mxu0 0
      %324 = vmatpush1.bf16.msra.mxu0 0
      %325 = vmatprep.mubr.bf16.mxu0 0
      %326 = vmatmul.mubr.bf16.gmra.mrb[0].mxu0 %v270
      %v327 = vpop.f32.mrb[0].mxu0
      %v328 = vadd.f32 0.0, %v327
      %v329 = vpop.f32.mrb[0].mxu0
      %v330 = vpop.f32.mrb[0].mxu0
      %v331 = vadd.f32 0.0, %v330
      %v332 = vpop.f32.mrb[0].mxu0
      %333 = vmatprep.mubr.bf16.mxu0 0
      %334 = vmatmul.mubr.bf16.gmra.mrb[0].mxu0 %v273
      %v335 = vpop.f32.mrb[0].mxu0
      %v336 = vadd.f32 0.0, %v335
      %v337 = vpop.f32.mrb[0].mxu0
      %v338 = vpop.f32.mrb[0].mxu0
      %v339 = vadd.f32 0.0, %v338
      %v340 = vpop.f32.mrb[0].mxu0
      %341 = vmatprep.mubr.bf16.mxu0 0
      %342 = vmatmul.mubr.bf16.gmra.mrb[0].mxu0 %v276
      %v343 = vpop.f32.mrb[0].mxu0
      %v344 = vadd.f32 0.0, %v343
      %v345 = vpop.f32.mrb[0].mxu0
      %v346 = vpop.f32.mrb[0].mxu0
      %v347 = vadd.f32 0.0, %v346
      %v348 = vpop.f32.mrb[0].mxu0
      %349 = vmatprep.mubr.bf16.mxu0 0
      %350 = vmatmul.mubr.bf16.gmra.mrb[0].mxu0 %v279
      %v351 = vpop.f32.mrb[0].mxu0
      %v352 = vadd.f32 0.0, %v351
      %v353 = vpop.f32.mrb[0].mxu0
      %v354 = vpop.f32.mrb[0].mxu0
      %v355 = vadd.f32 0.0, %v354
      %v356 = vpop.f32.mrb[0].mxu0
      %357 = vmatprep.mubr.bf16.mxu0 0
      %358 = vmatmul.mubr.bf16.gmra.mrb[0].mxu0 %v282
      %v359 = vpop.f32.mrb[0].mxu0
      %v360 = vadd.f32 0.0, %v359
      %v361 = vpop.f32.mrb[0].mxu0
      %v362 = vpop.f32.mrb[0].mxu0
      %v363 = vadd.f32 0.0, %v362
      %v364 = vpop.f32.mrb[0].mxu0
      %365 = vmatprep.mubr.bf16.mxu0 0
      %366 = vmatmul.mubr.bf16.gmra.mrb[0].mxu0 %v285
      %v367 = vpop.f32.mrb[0].mxu0
      %v368 = vadd.f32 0.0, %v367
      %v369 = vpop.f32.mrb[0].mxu0
      %v370 = vpop.f32.mrb[0].mxu0
      %v371 = vadd.f32 0.0, %v370
      %v372 = vpop.f32.mrb[0].mxu0
      %373 = vmatprep.mubr.bf16.mxu0 0
      %374 = vmatmul.mubr.bf16.gmra.mrb[0].mxu0 %v288
      %v375 = vpop.f32.mrb[0].mxu0
      %v376 = vadd.f32 0.0, %v375
      %v377 = vpop.f32.mrb[0].mxu0
      %v378 = vpop.f32.mrb[0].mxu0
      %v379 = vadd.f32 0.0, %v378
      %v380 = vpop.f32.mrb[0].mxu0
      %381 = vmatprep.mubr.bf16.mxu0 0
      %382 = vmatmul.mubr.bf16.gmra.mrb[0].mxu0 %v291
      %v383 = vpop.f32.mrb[0].mxu0
      %v384 = vadd.f32 0.0, %v383
      %v385 = vpop.f32.mrb[0].mxu0
      %v386 = vpop.f32.mrb[0].mxu0
      %v387 = vpop.f32.mrb[0].mxu0
      %388 = vdwg.mxu0
      %v389 = vadd.f32 %v221, %v328
      %v390 = vadd.f32 %v221, %v331
      %v391 = vadd.f32 %v221, %v336
      %v392 = vadd.f32 %v221, %v339
      %v393 = vadd.f32 %v221, %v344
      %v394 = vadd.f32 %v221, %v347
      %v395 = vadd.f32 %v221, %v352
      %v396 = vadd.f32 %v221, %v355
      %v397 = vadd.f32 %v221, %v360
      %v398 = vadd.f32 %v221, %v363
      %v399 = vadd.f32 %v221, %v368
      %v400 = vadd.f32 %v221, %v371
      %v401 = vadd.f32 %v221, %v376
      %v402 = vadd.f32 %v221, %v379
      %v403 = vadd.f32 %v221, %v384
      %s404 = scalar_lea.vmem %s1, 8
      %v405 = vld [vmem:[%s404] sm:$0xf]
      %v406 = vld [vmem:[%s404 + $0x4] sm:$0xf]
      %vm407 = vsmask.f32 7424
      %v408 = vshrl.u32 %v254, 16
      %v410 = vshll.u32 %v254, 16
      %v412 = vrot.slane %v410, 1
      %v413 = vor.u32 %v408, %v412
      %v414 = vshll.u32 %v255, 16
      %v416 = vrot.slane %v414, 1
      %v417 = vsel %vm407, %v413, %v416
      %v418 = vshrl.u32 %v255, 16
      %v420 = vor.u32 %v418, %v416
      %v421 = vshll.u32 %v256, 16
      %v423 = vrot.slane %v421, 1
      %v424 = vsel %vm407, %v420, %v423
      %v425 = vshrl.u32 %v256, 16
      %v427 = vor.u32 %v425, %v423
      %v428 = vshll.u32 %v257, 16
      %v430 = vrot.slane %v428, 1
      %v431 = vsel %vm407, %v427, %v430
      %v432 = vshrl.u32 %v257, 16
      %v434 = vor.u32 %v432, %v430
      %v435 = vshll.u32 %v258, 16
      %v437 = vrot.slane %v435, 1
      %v438 = vsel %vm407, %v434, %v437
      %v439 = vshrl.u32 %v258, 16
      %v441 = vor.u32 %v439, %v437
      %v442 = vshll.u32 %v259, 16
      %v444 = vrot.slane %v442, 1
      %v445 = vsel %vm407, %v441, %v444
      %v446 = vshrl.u32 %v259, 16
      %v448 = vor.u32 %v446, %v444
      %v449 = vshll.u32 %v260, 16
      %v451 = vrot.slane %v449, 1
      %v452 = vsel %vm407, %v448, %v451
      %v453 = vshrl.u32 %v260, 16
      %v455 = vor.u32 %v453, %v451
      %v456 = vshll.u32 %v261, 16
      %v458 = vrot.slane %v456, 1
      %v459 = vsel %vm407, %v455, %v458
      %v460 = vshrl.u32 %v261, 16
      %v462 = vor.u32 %v460, %v458
      %v465 = vunpack.c.l.b16 %v405
      %v466 = vunpack.c.l.b16 %v406
      %v467 = vpack.c.b16 %v466, %v465
      %v470 = vsel %vm268, %v417, 0
      %v473 = vsel %vm268, %v424, 0
      %v476 = vsel %vm268, %v431, 0
      %v479 = vsel %vm268, %v438, 0
      %v482 = vsel %vm268, %v445, 0
      %v485 = vsel %vm268, %v452, 0
      %v488 = vsel %vm268, %v459, 0
      %v491 = vsel %vm268, %v462, 0
      %493 = vmatprep.subr.bf16.mxu0 0
      %494 = vmatpush1.bf16.msra.mxu0 %v467
      %495 = vmatprep.subr.bf16.mxu0 0
      %496 = vmatpush1.bf16.msra.mxu0 0
      %497 = vmatprep.subr.bf16.mxu0 0
      %498 = vmatpush1.bf16.msra.mxu0 0
      %499 = vmatprep.subr.bf16.mxu0 0
      %500 = vmatpush1.bf16.msra.mxu0 0
      %501 = vmatprep.subr.bf16.mxu0 0
      %502 = vmatpush1.bf16.msra.mxu0 0
      %503 = vmatprep.subr.bf16.mxu0 0
      %504 = vmatpush1.bf16.msra.mxu0 0
      %505 = vmatprep.subr.bf16.mxu0 0
      %506 = vmatpush1.bf16.msra.mxu0 0
      %507 = vmatprep.subr.bf16.mxu0 0
      %508 = vmatpush1.bf16.msra.mxu0 0
      %509 = vmatprep.subr.bf16.mxu0 0
      %510 = vmatpush1.bf16.msra.mxu0 0
      %511 = vmatprep.subr.bf16.mxu0 0
      %512 = vmatpush1.bf16.msra.mxu0 0
      %513 = vmatprep.subr.bf16.mxu0 0
      %514 = vmatpush1.bf16.msra.mxu0 0
      %515 = vmatprep.subr.bf16.mxu0 0
      %516 = vmatpush1.bf16.msra.mxu0 0
      %517 = vmatprep.subr.bf16.mxu0 0
      %518 = vmatpush1.bf16.msra.mxu0 0
      %519 = vmatprep.subr.bf16.mxu0 0
      %520 = vmatpush1.bf16.msra.mxu0 0
      %521 = vmatprep.subr.bf16.mxu0 0
      %522 = vmatpush1.bf16.msra.mxu0 0
      %523 = vmatprep.subr.bf16.mxu0 0
      %524 = vmatpush1.bf16.msra.mxu0 0
      %525 = vmatprep.mubr.bf16.mxu0 0
      %526 = vmatmul.mubr.bf16.gmra.mrb[0].mxu0 %v470
      %v527 = vpop.f32.mrb[0].mxu0
      %v528 = vadd.f32 0.0, %v527
      %v529 = vpop.f32.mrb[0].mxu0
      %v530 = vpop.f32.mrb[0].mxu0
      %v531 = vadd.f32 0.0, %v530
      %v532 = vpop.f32.mrb[0].mxu0
      %533 = vmatprep.mubr.bf16.mxu0 0
      %534 = vmatmul.mubr.bf16.gmra.mrb[0].mxu0 %v473
      %v535 = vpop.f32.mrb[0].mxu0
      %v536 = vadd.f32 0.0, %v535
      %v537 = vpop.f32.mrb[0].mxu0
      %v538 = vpop.f32.mrb[0].mxu0
      %v539 = vadd.f32 0.0, %v538
      %v540 = vpop.f32.mrb[0].mxu0
      %541 = vmatprep.mubr.bf16.mxu0 0
      %542 = vmatmul.mubr.bf16.gmra.mrb[0].mxu0 %v476
      %v543 = vpop.f32.mrb[0].mxu0
      %v544 = vadd.f32 0.0, %v543
      %v545 = vpop.f32.mrb[0].mxu0
      %v546 = vpop.f32.mrb[0].mxu0
      %v547 = vadd.f32 0.0, %v546
      %v548 = vpop.f32.mrb[0].mxu0
      %549 = vmatprep.mubr.bf16.mxu0 0
      %550 = vmatmul.mubr.bf16.gmra.mrb[0].mxu0 %v479
      %v551 = vpop.f32.mrb[0].mxu0
      %v552 = vadd.f32 0.0, %v551
      %v553 = vpop.f32.mrb[0].mxu0
      %v554 = vpop.f32.mrb[0].mxu0
      %v555 = vadd.f32 0.0, %v554
      %v556 = vpop.f32.mrb[0].mxu0
      %557 = vmatprep.mubr.bf16.mxu0 0
      %558 = vmatmul.mubr.bf16.gmra.mrb[0].mxu0 %v482
      %v559 = vpop.f32.mrb[0].mxu0
      %v560 = vadd.f32 0.0, %v559
      %v561 = vpop.f32.mrb[0].mxu0
      %v562 = vpop.f32.mrb[0].mxu0
      %v563 = vadd.f32 0.0, %v562
      %v564 = vpop.f32.mrb[0].mxu0
      %565 = vmatprep.mubr.bf16.mxu0 0
      %566 = vmatmul.mubr.bf16.gmra.mrb[0].mxu0 %v485
      %v567 = vpop.f32.mrb[0].mxu0
      %v568 = vadd.f32 0.0, %v567
      %v569 = vpop.f32.mrb[0].mxu0
      %v570 = vpop.f32.mrb[0].mxu0
      %v571 = vadd.f32 0.0, %v570
      %v572 = vpop.f32.mrb[0].mxu0
      %573 = vmatprep.mubr.bf16.mxu0 0
      %574 = vmatmul.mubr.bf16.gmra.mrb[0].mxu0 %v488
      %v575 = vpop.f32.mrb[0].mxu0
      %v576 = vadd.f32 0.0, %v575
      %v577 = vpop.f32.mrb[0].mxu0
      %v578 = vpop.f32.mrb[0].mxu0
      %v579 = vadd.f32 0.0, %v578
      %v580 = vpop.f32.mrb[0].mxu0
      %581 = vmatprep.mubr.bf16.mxu0 0
      %582 = vmatmul.mubr.bf16.gmra.mrb[0].mxu0 %v491
      %v583 = vpop.f32.mrb[0].mxu0
      %v584 = vadd.f32 0.0, %v583
      %v585 = vpop.f32.mrb[0].mxu0
      %v586 = vpop.f32.mrb[0].mxu0
      %v587 = vpop.f32.mrb[0].mxu0
      %588 = vdwg.mxu0
      %v589 = vadd.f32 %v389, %v528
      %v590 = vadd.f32 %v390, %v531
      %v591 = vadd.f32 %v391, %v536
      %v592 = vadd.f32 %v392, %v539
      %v593 = vadd.f32 %v393, %v544
      %v594 = vadd.f32 %v394, %v547
      %v595 = vadd.f32 %v395, %v552
      %v596 = vadd.f32 %v396, %v555
      %v597 = vadd.f32 %v397, %v560
      %v598 = vadd.f32 %v398, %v563
      %v599 = vadd.f32 %v399, %v568
      %v600 = vadd.f32 %v400, %v571
      %v601 = vadd.f32 %v401, %v576
      %v602 = vadd.f32 %v402, %v579
      %v603 = vadd.f32 %v403, %v584
      %s604 = scalar_lea.vmem %s1, 16
      %v605 = vld [vmem:[%s604] sm:$0xf]
      %v606 = vld [vmem:[%s604 + $0x4] sm:$0xf]
      %v608 = vunpack.c.l.b16 %v217
      %v609 = vpack.c.b16 %v241, %v240
      %v610 = vpack.c.b16 %v243, %v242
      %v611 = vpack.c.b16 %v245, %v244
      %v612 = vpack.c.b16 %v247, %v246
      %v613 = vpack.c.b16 %v249, %v248
      %v614 = vpack.c.b16 %v251, %v250
      %v615 = vpack.c.b16 %v253, %v252
      %v616 = vpack.c.b16 %v608, %v608
      %v619 = vunpack.c.l.b16 %v605
      %v620 = vunpack.c.l.b16 %v606
      %v621 = vpack.c.b16 %v620, %v619
      %v624 = vsel %vm268, %v609, 0
      %v627 = vsel %vm268, %v610, 0
      %v630 = vsel %vm268, %v611, 0
      %v633 = vsel %vm268, %v612, 0
      %v636 = vsel %vm268, %v613, 0
      %v639 = vsel %vm268, %v614, 0
      %v642 = vsel %vm268, %v615, 0
      %v645 = vsel %vm268, %v616, 0
      %647 = vmatprep.subr.bf16.mxu0 0
      %648 = vmatpush1.bf16.msra.mxu0 %v621
      %649 = vmatprep.subr.bf16.mxu0 0
      %650 = vmatpush1.bf16.msra.mxu0 0
      %651 = vmatprep.subr.bf16.mxu0 0
      %652 = vmatpush1.bf16.msra.mxu0 0
      %653 = vmatprep.subr.bf16.mxu0 0
      %654 = vmatpush1.bf16.msra.mxu0 0
      %655 = vmatprep.subr.bf16.mxu0 0
      %656 = vmatpush1.bf16.msra.mxu0 0
      %657 = vmatprep.subr.bf16.mxu0 0
      %658 = vmatpush1.bf16.msra.mxu0 0
      %659 = vmatprep.subr.bf16.mxu0 0
      %660 = vmatpush1.bf16.msra.mxu0 0
      %661 = vmatprep.subr.bf16.mxu0 0
      %662 = vmatpush1.bf16.msra.mxu0 0
      %663 = vmatprep.subr.bf16.mxu0 0
      %664 = vmatpush1.bf16.msra.mxu0 0
      %665 = vmatprep.subr.bf16.mxu0 0
      %666 = vmatpush1.bf16.msra.mxu0 0
      %667 = vmatprep.subr.bf16.mxu0 0
      %668 = vmatpush1.bf16.msra.mxu0 0
      %669 = vmatprep.subr.bf16.mxu0 0
      %670 = vmatpush1.bf16.msra.mxu0 0
      %671 = vmatprep.subr.bf16.mxu0 0
      %672 = vmatpush1.bf16.msra.mxu0 0
      %673 = vmatprep.subr.bf16.mxu0 0
      %674 = vmatpush1.bf16.msra.mxu0 0
      %675 = vmatprep.subr.bf16.mxu0 0
      %676 = vmatpush1.bf16.msra.mxu0 0
      %677 = vmatprep.subr.bf16.mxu0 0
      %678 = vmatpush1.bf16.msra.mxu0 0
      %679 = vmatprep.mubr.bf16.mxu0 0
      %680 = vmatmul.mubr.bf16.gmra.mrb[0].mxu0 %v624
      %v681 = vpop.f32.mrb[0].mxu0
      %v682 = vadd.f32 0.0, %v681
      %v683 = vpop.f32.mrb[0].mxu0
      %v684 = vpop.f32.mrb[0].mxu0
      %v685 = vadd.f32 0.0, %v684
      %v686 = vpop.f32.mrb[0].mxu0
      %687 = vmatprep.mubr.bf16.mxu0 0
      %688 = vmatmul.mubr.bf16.gmra.mrb[0].mxu0 %v627
      %v689 = vpop.f32.mrb[0].mxu0
      %v690 = vadd.f32 0.0, %v689
      %v691 = vpop.f32.mrb[0].mxu0
      %v692 = vpop.f32.mrb[0].mxu0
      %v693 = vadd.f32 0.0, %v692
      %v694 = vpop.f32.mrb[0].mxu0
      %695 = vmatprep.mubr.bf16.mxu0 0
      %696 = vmatmul.mubr.bf16.gmra.mrb[0].mxu0 %v630
      %v697 = vpop.f32.mrb[0].mxu0
      %v698 = vadd.f32 0.0, %v697
      %v699 = vpop.f32.mrb[0].mxu0
      %v700 = vpop.f32.mrb[0].mxu0
      %v701 = vadd.f32 0.0, %v700
      %v702 = vpop.f32.mrb[0].mxu0
      %703 = vmatprep.mubr.bf16.mxu0 0
      %704 = vmatmul.mubr.bf16.gmra.mrb[0].mxu0 %v633
      %v705 = vpop.f32.mrb[0].mxu0
      %v706 = vadd.f32 0.0, %v705
      %v707 = vpop.f32.mrb[0].mxu0
      %v708 = vpop.f32.mrb[0].mxu0
      %v709 = vadd.f32 0.0, %v708
      %v710 = vpop.f32.mrb[0].mxu0
      %711 = vmatprep.mubr.bf16.mxu0 0
      %712 = vmatmul.mubr.bf16.gmra.mrb[0].mxu0 %v636
      %v713 = vpop.f32.mrb[0].mxu0
      %v714 = vadd.f32 0.0, %v713
      %v715 = vpop.f32.mrb[0].mxu0
      %v716 = vpop.f32.mrb[0].mxu0
      %v717 = vadd.f32 0.0, %v716
      %v718 = vpop.f32.mrb[0].mxu0
      %719 = vmatprep.mubr.bf16.mxu0 0
      %720 = vmatmul.mubr.bf16.gmra.mrb[0].mxu0 %v639
      %v721 = vpop.f32.mrb[0].mxu0
      %v722 = vadd.f32 0.0, %v721
      %v723 = vpop.f32.mrb[0].mxu0
      %v724 = vpop.f32.mrb[0].mxu0
      %v725 = vadd.f32 0.0, %v724
      %v726 = vpop.f32.mrb[0].mxu0
      %727 = vmatprep.mubr.bf16.mxu0 0
      %728 = vmatmul.mubr.bf16.gmra.mrb[0].mxu0 %v642
      %v729 = vpop.f32.mrb[0].mxu0
      %v730 = vadd.f32 0.0, %v729
      %v731 = vpop.f32.mrb[0].mxu0
      %v732 = vpop.f32.mrb[0].mxu0
      %v733 = vadd.f32 0.0, %v732
      %v734 = vpop.f32.mrb[0].mxu0
      %735 = vmatprep.mubr.bf16.mxu0 0
      %736 = vmatmul.mubr.bf16.gmra.mrb[0].mxu0 %v645
      %v737 = vpop.f32.mrb[0].mxu0
      %v738 = vadd.f32 0.0, %v737
      %v739 = vpop.f32.mrb[0].mxu0
      %v740 = vpop.f32.mrb[0].mxu0
      %v741 = vpop.f32.mrb[0].mxu0
      %742 = vdwg.mxu0
      %v743 = vadd.f32 %v589, %v682
      %v744 = vadd.f32 %v590, %v685
      %v745 = vadd.f32 %v591, %v690
      %v746 = vadd.f32 %v592, %v693
      %v747 = vadd.f32 %v593, %v698
      %v748 = vadd.f32 %v594, %v701
      %v749 = vadd.f32 %v595, %v706
      %v750 = vadd.f32 %v596, %v709
      %v751 = vadd.f32 %v597, %v714
      %v752 = vadd.f32 %v598, %v717
      %v753 = vadd.f32 %v599, %v722
      %v754 = vadd.f32 %v600, %v725
      %v755 = vadd.f32 %v601, %v730
      %v756 = vadd.f32 %v602, %v733
      %v757 = vadd.f32 %v603, %v738
      %s758 = scalar_lea.vmem %s1, 24
      %v759 = vld [vmem:[%s758] sm:$0xf]
      %v760 = vld [vmem:[%s758 + $0x4] sm:$0xf]
      %v761 = vshrl.u32 %v609, 16
      %v763 = vshll.u32 %v609, 16
      %v765 = vrot.slane %v763, 1
      %v766 = vor.u32 %v761, %v765
      %v767 = vshll.u32 %v610, 16
      %v769 = vrot.slane %v767, 1
      %v770 = vsel %vm407, %v766, %v769
      %v771 = vshrl.u32 %v610, 16
      %v773 = vor.u32 %v771, %v769
      %v774 = vshll.u32 %v611, 16
      %v776 = vrot.slane %v774, 1
      %v777 = vsel %vm407, %v773, %v776
      %v778 = vshrl.u32 %v611, 16
      %v780 = vor.u32 %v778, %v776
      %v781 = vshll.u32 %v612, 16
      %v783 = vrot.slane %v781, 1
      %v784 = vsel %vm407, %v780, %v783
      %v785 = vshrl.u32 %v612, 16
      %v787 = vor.u32 %v785, %v783
      %v788 = vshll.u32 %v613, 16
      %v790 = vrot.slane %v788, 1
      %v791 = vsel %vm407, %v787, %v790
      %v792 = vshrl.u32 %v613, 16
      %v794 = vor.u32 %v792, %v790
      %v795 = vshll.u32 %v614, 16
      %v797 = vrot.slane %v795, 1
      %v798 = vsel %vm407, %v794, %v797
      %v799 = vshrl.u32 %v614, 16
      %v801 = vor.u32 %v799, %v797
      %v802 = vshll.u32 %v615, 16
      %v804 = vrot.slane %v802, 1
      %v805 = vsel %vm407, %v801, %v804
      %v806 = vshrl.u32 %v615, 16
      %v808 = vor.u32 %v806, %v804
      %v809 = vshll.u32 %v616, 16
      %v811 = vrot.slane %v809, 1
      %v812 = vsel %vm407, %v808, %v811
      %v813 = vshrl.u32 %v616, 16
      %v815 = vor.u32 %v813, %v811
      %v818 = vunpack.c.l.b16 %v759
      %v819 = vunpack.c.l.b16 %v760
      %v820 = vpack.c.b16 %v819, %v818
      %v823 = vsel %vm268, %v770, 0
      %v826 = vsel %vm268, %v777, 0
      %v829 = vsel %vm268, %v784, 0
      %v832 = vsel %vm268, %v791, 0
      %v835 = vsel %vm268, %v798, 0
      %v838 = vsel %vm268, %v805, 0
      %v841 = vsel %vm268, %v812, 0
      %v844 = vsel %vm268, %v815, 0
      %846 = vmatprep.subr.bf16.mxu0 0
      %847 = vmatpush1.bf16.msra.mxu0 %v820
      %848 = vmatprep.subr.bf16.mxu0 0
      %849 = vmatpush1.bf16.msra.mxu0 0
      %850 = vmatprep.subr.bf16.mxu0 0
      %851 = vmatpush1.bf16.msra.mxu0 0
      %852 = vmatprep.subr.bf16.mxu0 0
      %853 = vmatpush1.bf16.msra.mxu0 0
      %854 = vmatprep.subr.bf16.mxu0 0
      %855 = vmatpush1.bf16.msra.mxu0 0
      %856 = vmatprep.subr.bf16.mxu0 0
      %857 = vmatpush1.bf16.msra.mxu0 0
      %858 = vmatprep.subr.bf16.mxu0 0
      %859 = vmatpush1.bf16.msra.mxu0 0
      %860 = vmatprep.subr.bf16.mxu0 0
      %861 = vmatpush1.bf16.msra.mxu0 0
      %862 = vmatprep.subr.bf16.mxu0 0
      %863 = vmatpush1.bf16.msra.mxu0 0
      %864 = vmatprep.subr.bf16.mxu0 0
      %865 = vmatpush1.bf16.msra.mxu0 0
      %866 = vmatprep.subr.bf16.mxu0 0
      %867 = vmatpush1.bf16.msra.mxu0 0
      %868 = vmatprep.subr.bf16.mxu0 0
      %869 = vmatpush1.bf16.msra.mxu0 0
      %870 = vmatprep.subr.bf16.mxu0 0
      %871 = vmatpush1.bf16.msra.mxu0 0
      %872 = vmatprep.subr.bf16.mxu0 0
      %873 = vmatpush1.bf16.msra.mxu0 0
      %874 = vmatprep.subr.bf16.mxu0 0
      %875 = vmatpush1.bf16.msra.mxu0 0
      %876 = vmatprep.subr.bf16.mxu0 0
      %877 = vmatpush1.bf16.msra.mxu0 0
      %878 = vmatprep.mubr.bf16.mxu0 0
      %879 = vmatmul.mubr.bf16.gmra.mrb[0].mxu0 %v823
      %v880 = vpop.f32.mrb[0].mxu0
      %v881 = vadd.f32 0.0, %v880
      %v882 = vpop.f32.mrb[0].mxu0
      %v883 = vpop.f32.mrb[0].mxu0
      %v884 = vadd.f32 0.0, %v883
      %v885 = vpop.f32.mrb[0].mxu0
      %886 = vmatprep.mubr.bf16.mxu0 0
      %887 = vmatmul.mubr.bf16.gmra.mrb[0].mxu0 %v826
      %v888 = vpop.f32.mrb[0].mxu0
      %v889 = vadd.f32 0.0, %v888
      %v890 = vpop.f32.mrb[0].mxu0
      %v891 = vpop.f32.mrb[0].mxu0
      %v892 = vadd.f32 0.0, %v891
      %v893 = vpop.f32.mrb[0].mxu0
      %894 = vmatprep.mubr.bf16.mxu0 0
      %895 = vmatmul.mubr.bf16.gmra.mrb[0].mxu0 %v829
      %v896 = vpop.f32.mrb[0].mxu0
      %v897 = vadd.f32 0.0, %v896
      %v898 = vpop.f32.mrb[0].mxu0
      %v899 = vpop.f32.mrb[0].mxu0
      %v900 = vadd.f32 0.0, %v899
      %v901 = vpop.f32.mrb[0].mxu0
      %902 = vmatprep.mubr.bf16.mxu0 0
      %903 = vmatmul.mubr.bf16.gmra.mrb[0].mxu0 %v832
      %v904 = vpop.f32.mrb[0].mxu0
      %v905 = vadd.f32 0.0, %v904
      %v906 = vpop.f32.mrb[0].mxu0
      %v907 = vpop.f32.mrb[0].mxu0
      %v908 = vadd.f32 0.0, %v907
      %v909 = vpop.f32.mrb[0].mxu0
      %910 = vmatprep.mubr.bf16.mxu0 0
      %911 = vmatmul.mubr.bf16.gmra.mrb[0].mxu0 %v835
      %v912 = vpop.f32.mrb[0].mxu0
      %v913 = vadd.f32 0.0, %v912
      %v914 = vpop.f32.mrb[0].mxu0
      %v915 = vpop.f32.mrb[0].mxu0
      %v916 = vadd.f32 0.0, %v915
      %v917 = vpop.f32.mrb[0].mxu0
      %918 = vmatprep.mubr.bf16.mxu0 0
      %919 = vmatmul.mubr.bf16.gmra.mrb[0].mxu0 %v838
      %v920 = vpop.f32.mrb[0].mxu0
      %v921 = vadd.f32 0.0, %v920
      %v922 = vpop.f32.mrb[0].mxu0
      %v923 = vpop.f32.mrb[0].mxu0
      %v924 = vadd.f32 0.0, %v923
      %v925 = vpop.f32.mrb[0].mxu0
      %926 = vmatprep.mubr.bf16.mxu0 0
      %927 = vmatmul.mubr.bf16.gmra.mrb[0].mxu0 %v841
      %v928 = vpop.f32.mrb[0].mxu0
      %v929 = vadd.f32 0.0, %v928
      %v930 = vpop.f32.mrb[0].mxu0
      %v931 = vpop.f32.mrb[0].mxu0
      %v932 = vadd.f32 0.0, %v931
      %v933 = vpop.f32.mrb[0].mxu0
      %934 = vmatprep.mubr.bf16.mxu0 0
      %935 = vmatmul.mubr.bf16.gmra.mrb[0].mxu0 %v844
      %v936 = vpop.f32.mrb[0].mxu0
      %v937 = vadd.f32 0.0, %v936
      %v938 = vpop.f32.mrb[0].mxu0
      %v939 = vpop.f32.mrb[0].mxu0
      %v940 = vpop.f32.mrb[0].mxu0
      %941 = vdwg.mxu0
      %v942 = vadd.f32 %v743, %v881
      %v943 = vadd.f32 %v744, %v884
      %v944 = vadd.f32 %v745, %v889
      %v945 = vadd.f32 %v746, %v892
      %v946 = vadd.f32 %v747, %v897
      %v947 = vadd.f32 %v748, %v900
      %v948 = vadd.f32 %v749, %v905
      %v949 = vadd.f32 %v750, %v908
      %v950 = vadd.f32 %v751, %v913
      %v951 = vadd.f32 %v752, %v916
      %v952 = vadd.f32 %v753, %v921
      %v953 = vadd.f32 %v754, %v924
      %v954 = vadd.f32 %v755, %v929
      %v955 = vadd.f32 %v756, %v932
      %v956 = vadd.f32 %v757, %v937
      %v957 = vmax.f32 %v942, 0.0
      %v958 = vmax.f32 %v943, 0.0
      %v959 = vmax.f32 %v944, 0.0
      %v960 = vmax.f32 %v945, 0.0
      %v961 = vmax.f32 %v946, 0.0
      %v962 = vmax.f32 %v947, 0.0
      %v963 = vmax.f32 %v948, 0.0
      %v964 = vmax.f32 %v949, 0.0
      %v965 = vmax.f32 %v950, 0.0
      %v966 = vmax.f32 %v951, 0.0
      %v967 = vmax.f32 %v952, 0.0
      %v968 = vmax.f32 %v953, 0.0
      %v969 = vmax.f32 %v954, 0.0
      %v970 = vmax.f32 %v955, 0.0
      %v971 = vmax.f32 %v956, 0.0
      %v972 = vpack.c.bf16 %v958, %v957
      %v973 = vpack.c.bf16 %v960, %v959
      %v974 = vpack.c.bf16 %v962, %v961
      %v975 = vpack.c.bf16 %v964, %v963
      %v976 = vpack.c.bf16 %v966, %v965
      %v977 = vpack.c.bf16 %v968, %v967
      %v978 = vpack.c.bf16 %v970, %v969
      %v979 = vpack.c.bf16 %v971, %v971
      %v980 = vlaneseq
      %v981 = vshrl.u32 %v980, 7
      %v982 = vsub.s32 1, %v981
      %v983 = vrot.slane %v201, %v982
      %v984 = vld [vmem:[%s2] sm:$0xf]
      %v985 = vld [vmem:[%s2 + $0x4] sm:$0xf]
      %v986 = vld [vmem:[%s2 + $0x8] sm:$0xf]
      %v987 = vld [vmem:[%s2 + $0xc] sm:$0xf]
      %v992 = vunpack.c.l.b16 %v984
      %v993 = vunpack.c.l.b16 %v985
      %v994 = vunpack.c.l.b16 %v986
      %v995 = vunpack.c.l.b16 %v987
      %v996 = vpack.c.b16 %v993, %v992
      %v997 = vpack.c.b16 %v995, %v994
      %vm1000 = vcmask 261120
      %v1002 = vsel %vm1000, %v972, 0
      %v1005 = vsel %vm1000, %v973, 0
      %v1008 = vsel %vm1000, %v974, 0
      %v1011 = vsel %vm1000, %v975, 0
      %v1014 = vsel %vm1000, %v976, 0
      %v1017 = vsel %vm1000, %v977, 0
      %v1020 = vsel %vm1000, %v978, 0
      %1022 = vmatprep.subr.bf16.mxu0 0
      %1023 = vmatpush1.bf16.msra.mxu0 %v996
      %1024 = vmatprep.subr.bf16.mxu0 0
      %1025 = vmatpush1.bf16.msra.mxu0 %v997
      %1026 = vmatprep.subr.bf16.mxu0 0
      %1027 = vmatpush1.bf16.msra.mxu0 0
      %1028 = vmatprep.subr.bf16.mxu0 0
      %1029 = vmatpush1.bf16.msra.mxu0 0
      %1030 = vmatprep.subr.bf16.mxu0 0
      %1031 = vmatpush1.bf16.msra.mxu0 0
      %1032 = vmatprep.subr.bf16.mxu0 0
      %1033 = vmatpush1.bf16.msra.mxu0 0
      %1034 = vmatprep.subr.bf16.mxu0 0
      %1035 = vmatpush1.bf16.msra.mxu0 0
      %1036 = vmatprep.subr.bf16.mxu0 0
      %1037 = vmatpush1.bf16.msra.mxu0 0
      %1038 = vmatprep.subr.bf16.mxu0 0
      %1039 = vmatpush1.bf16.msra.mxu0 0
      %1040 = vmatprep.subr.bf16.mxu0 0
      %1041 = vmatpush1.bf16.msra.mxu0 0
      %1042 = vmatprep.subr.bf16.mxu0 0
      %1043 = vmatpush1.bf16.msra.mxu0 0
      %1044 = vmatprep.subr.bf16.mxu0 0
      %1045 = vmatpush1.bf16.msra.mxu0 0
      %1046 = vmatprep.subr.bf16.mxu0 0
      %1047 = vmatpush1.bf16.msra.mxu0 0
      %1048 = vmatprep.subr.bf16.mxu0 0
      %1049 = vmatpush1.bf16.msra.mxu0 0
      %1050 = vmatprep.subr.bf16.mxu0 0
      %1051 = vmatpush1.bf16.msra.mxu0 0
      %1052 = vmatprep.subr.bf16.mxu0 0
      %1053 = vmatpush1.bf16.msra.mxu0 0
      %1054 = vmatprep.mubr.bf16.mxu0 0
      %1055 = vmatmul.mubr.bf16.gmra.mrb[0].mxu0 %v1002
      %v1056 = vpop.f32.mrb[0].mxu0
      %v1057 = vadd.f32 0.0, %v1056
      %v1058 = vpop.f32.mrb[0].mxu0
      %v1059 = vpop.f32.mrb[0].mxu0
      %v1060 = vadd.f32 0.0, %v1059
      %v1061 = vpop.f32.mrb[0].mxu0
      %1062 = vmatprep.mubr.bf16.mxu0 0
      %1063 = vmatmul.mubr.bf16.gmra.mrb[0].mxu0 %v1005
      %v1064 = vpop.f32.mrb[0].mxu0
      %v1065 = vadd.f32 0.0, %v1064
      %v1066 = vpop.f32.mrb[0].mxu0
      %v1067 = vpop.f32.mrb[0].mxu0
      %v1068 = vadd.f32 0.0, %v1067
      %v1069 = vpop.f32.mrb[0].mxu0
      %1070 = vmatprep.mubr.bf16.mxu0 0
      %1071 = vmatmul.mubr.bf16.gmra.mrb[0].mxu0 %v1008
      %v1072 = vpop.f32.mrb[0].mxu0
      %v1073 = vadd.f32 0.0, %v1072
      %v1074 = vpop.f32.mrb[0].mxu0
      %v1075 = vpop.f32.mrb[0].mxu0
      %v1076 = vadd.f32 0.0, %v1075
      %v1077 = vpop.f32.mrb[0].mxu0
      %1078 = vmatprep.mubr.bf16.mxu0 0
      %1079 = vmatmul.mubr.bf16.gmra.mrb[0].mxu0 %v1011
      %v1080 = vpop.f32.mrb[0].mxu0
      %v1081 = vadd.f32 0.0, %v1080
      %v1082 = vpop.f32.mrb[0].mxu0
      %v1083 = vpop.f32.mrb[0].mxu0
      %v1084 = vadd.f32 0.0, %v1083
      %v1085 = vpop.f32.mrb[0].mxu0
      %1086 = vmatprep.mubr.bf16.mxu0 0
      %1087 = vmatmul.mubr.bf16.gmra.mrb[0].mxu0 %v1014
      %v1088 = vpop.f32.mrb[0].mxu0
      %v1089 = vadd.f32 0.0, %v1088
      %v1090 = vpop.f32.mrb[0].mxu0
      %v1091 = vpop.f32.mrb[0].mxu0
      %v1092 = vadd.f32 0.0, %v1091
      %v1093 = vpop.f32.mrb[0].mxu0
      %1094 = vmatprep.mubr.bf16.mxu0 0
      %1095 = vmatmul.mubr.bf16.gmra.mrb[0].mxu0 %v1017
      %v1096 = vpop.f32.mrb[0].mxu0
      %v1097 = vadd.f32 0.0, %v1096
      %v1098 = vpop.f32.mrb[0].mxu0
      %v1099 = vpop.f32.mrb[0].mxu0
      %v1100 = vadd.f32 0.0, %v1099
      %v1101 = vpop.f32.mrb[0].mxu0
      %1102 = vmatprep.mubr.bf16.mxu0 0
      %1103 = vmatmul.mubr.bf16.gmra.mrb[0].mxu0 %v1020
      %v1104 = vpop.f32.mrb[0].mxu0
      %v1105 = vadd.f32 0.0, %v1104
      %v1106 = vpop.f32.mrb[0].mxu0
      %v1107 = vpop.f32.mrb[0].mxu0
      %v1108 = vpop.f32.mrb[0].mxu0
      %1109 = vdwg.mxu0
      %v1110 = vadd.f32 %v983, %v1057
      %v1111 = vadd.f32 %v983, %v1060
      %v1112 = vadd.f32 %v983, %v1065
      %v1113 = vadd.f32 %v983, %v1068
      %v1114 = vadd.f32 %v983, %v1073
      %v1115 = vadd.f32 %v983, %v1076
      %v1116 = vadd.f32 %v983, %v1081
      %v1117 = vadd.f32 %v983, %v1084
      %v1118 = vadd.f32 %v983, %v1089
      %v1119 = vadd.f32 %v983, %v1092
      %v1120 = vadd.f32 %v983, %v1097
      %v1121 = vadd.f32 %v983, %v1100
      %v1122 = vadd.f32 %v983, %v1105
      %s1123 = scalar_lea.vmem %s2, 16
      %v1124 = vld [vmem:[%s1123] sm:$0xf]
      %v1125 = vld [vmem:[%s1123 + $0x4] sm:$0xf]
      %v1126 = vld [vmem:[%s1123 + $0x8] sm:$0xf]
      %v1127 = vld [vmem:[%s1123 + $0xc] sm:$0xf]
      %v1128 = vshrl.u32 %v972, 16
      %v1130 = vshll.u32 %v972, 16
      %v1132 = vrot.slane %v1130, 1
      %v1133 = vor.u32 %v1128, %v1132
      %v1134 = vshll.u32 %v973, 16
      %v1136 = vrot.slane %v1134, 1
      %v1137 = vsel %vm407, %v1133, %v1136
      %v1138 = vshrl.u32 %v973, 16
      %v1140 = vor.u32 %v1138, %v1136
      %v1141 = vshll.u32 %v974, 16
      %v1143 = vrot.slane %v1141, 1
      %v1144 = vsel %vm407, %v1140, %v1143
      %v1145 = vshrl.u32 %v974, 16
      %v1147 = vor.u32 %v1145, %v1143
      %v1148 = vshll.u32 %v975, 16
      %v1150 = vrot.slane %v1148, 1
      %v1151 = vsel %vm407, %v1147, %v1150
      %v1152 = vshrl.u32 %v975, 16
      %v1154 = vor.u32 %v1152, %v1150
      %v1155 = vshll.u32 %v976, 16
      %v1157 = vrot.slane %v1155, 1
      %v1158 = vsel %vm407, %v1154, %v1157
      %v1159 = vshrl.u32 %v976, 16
      %v1161 = vor.u32 %v1159, %v1157
      %v1162 = vshll.u32 %v977, 16
      %v1164 = vrot.slane %v1162, 1
      %v1165 = vsel %vm407, %v1161, %v1164
      %v1166 = vshrl.u32 %v977, 16
      %v1168 = vor.u32 %v1166, %v1164
      %v1169 = vshll.u32 %v978, 16
      %v1171 = vrot.slane %v1169, 1
      %v1172 = vsel %vm407, %v1168, %v1171
      %v1173 = vshrl.u32 %v978, 16
      %v1175 = vor.u32 %v1173, %v1171
      %v1180 = vunpack.c.l.b16 %v1124
      %v1181 = vunpack.c.l.b16 %v1125
      %v1182 = vunpack.c.l.b16 %v1126
      %v1183 = vunpack.c.l.b16 %v1127
      %v1184 = vpack.c.b16 %v1181, %v1180
      %v1185 = vpack.c.b16 %v1183, %v1182
      %v1189 = vsel %vm1000, %v1137, 0
      %v1192 = vsel %vm1000, %v1144, 0
      %v1195 = vsel %vm1000, %v1151, 0
      %v1198 = vsel %vm1000, %v1158, 0
      %v1201 = vsel %vm1000, %v1165, 0
      %v1204 = vsel %vm1000, %v1172, 0
      %v1207 = vsel %vm1000, %v1175, 0
      %1209 = vmatprep.subr.bf16.mxu0 0
      %1210 = vmatpush1.bf16.msra.mxu0 %v1184
      %1211 = vmatprep.subr.bf16.mxu0 0
      %1212 = vmatpush1.bf16.msra.mxu0 %v1185
      %1213 = vmatprep.subr.bf16.mxu0 0
      %1214 = vmatpush1.bf16.msra.mxu0 0
      %1215 = vmatprep.subr.bf16.mxu0 0
      %1216 = vmatpush1.bf16.msra.mxu0 0
      %1217 = vmatprep.subr.bf16.mxu0 0
      %1218 = vmatpush1.bf16.msra.mxu0 0
      %1219 = vmatprep.subr.bf16.mxu0 0
      %1220 = vmatpush1.bf16.msra.mxu0 0
      %1221 = vmatprep.subr.bf16.mxu0 0
      %1222 = vmatpush1.bf16.msra.mxu0 0
      %1223 = vmatprep.subr.bf16.mxu0 0
      %1224 = vmatpush1.bf16.msra.mxu0 0
      %1225 = vmatprep.subr.bf16.mxu0 0
      %1226 = vmatpush1.bf16.msra.mxu0 0
      %1227 = vmatprep.subr.bf16.mxu0 0
      %1228 = vmatpush1.bf16.msra.mxu0 0
      %1229 = vmatprep.subr.bf16.mxu0 0
      %1230 = vmatpush1.bf16.msra.mxu0 0
      %1231 = vmatprep.subr.bf16.mxu0 0
      %1232 = vmatpush1.bf16.msra.mxu0 0
      %1233 = vmatprep.subr.bf16.mxu0 0
      %1234 = vmatpush1.bf16.msra.mxu0 0
      %1235 = vmatprep.subr.bf16.mxu0 0
      %1236 = vmatpush1.bf16.msra.mxu0 0
      %1237 = vmatprep.subr.bf16.mxu0 0
      %1238 = vmatpush1.bf16.msra.mxu0 0
      %1239 = vmatprep.subr.bf16.mxu0 0
      %1240 = vmatpush1.bf16.msra.mxu0 0
      %1241 = vmatprep.mubr.bf16.mxu0 0
      %1242 = vmatmul.mubr.bf16.gmra.mrb[0].mxu0 %v1189
      %v1243 = vpop.f32.mrb[0].mxu0
      %v1244 = vadd.f32 0.0, %v1243
      %v1245 = vpop.f32.mrb[0].mxu0
      %v1246 = vpop.f32.mrb[0].mxu0
      %v1247 = vadd.f32 0.0, %v1246
      %v1248 = vpop.f32.mrb[0].mxu0
      %1249 = vmatprep.mubr.bf16.mxu0 0
      %1250 = vmatmul.mubr.bf16.gmra.mrb[0].mxu0 %v1192
      %v1251 = vpop.f32.mrb[0].mxu0
      %v1252 = vadd.f32 0.0, %v1251
      %v1253 = vpop.f32.mrb[0].mxu0
      %v1254 = vpop.f32.mrb[0].mxu0
      %v1255 = vadd.f32 0.0, %v1254
      %v1256 = vpop.f32.mrb[0].mxu0
      %1257 = vmatprep.mubr.bf16.mxu0 0
      %1258 = vmatmul.mubr.bf16.gmra.mrb[0].mxu0 %v1195
      %v1259 = vpop.f32.mrb[0].mxu0
      %v1260 = vadd.f32 0.0, %v1259
      %v1261 = vpop.f32.mrb[0].mxu0
      %v1262 = vpop.f32.mrb[0].mxu0
      %v1263 = vadd.f32 0.0, %v1262
      %v1264 = vpop.f32.mrb[0].mxu0
      %1265 = vmatprep.mubr.bf16.mxu0 0
      %1266 = vmatmul.mubr.bf16.gmra.mrb[0].mxu0 %v1198
      %v1267 = vpop.f32.mrb[0].mxu0
      %v1268 = vadd.f32 0.0, %v1267
      %v1269 = vpop.f32.mrb[0].mxu0
      %v1270 = vpop.f32.mrb[0].mxu0
      %v1271 = vadd.f32 0.0, %v1270
      %v1272 = vpop.f32.mrb[0].mxu0
      %1273 = vmatprep.mubr.bf16.mxu0 0
      %1274 = vmatmul.mubr.bf16.gmra.mrb[0].mxu0 %v1201
      %v1275 = vpop.f32.mrb[0].mxu0
      %v1276 = vadd.f32 0.0, %v1275
      %v1277 = vpop.f32.mrb[0].mxu0
      %v1278 = vpop.f32.mrb[0].mxu0
      %v1279 = vadd.f32 0.0, %v1278
      %v1280 = vpop.f32.mrb[0].mxu0
      %1281 = vmatprep.mubr.bf16.mxu0 0
      %1282 = vmatmul.mubr.bf16.gmra.mrb[0].mxu0 %v1204
      %v1283 = vpop.f32.mrb[0].mxu0
      %v1284 = vadd.f32 0.0, %v1283
      %v1285 = vpop.f32.mrb[0].mxu0
      %v1286 = vpop.f32.mrb[0].mxu0
      %v1287 = vadd.f32 0.0, %v1286
      %v1288 = vpop.f32.mrb[0].mxu0
      %1289 = vmatprep.mubr.bf16.mxu0 0
      %1290 = vmatmul.mubr.bf16.gmra.mrb[0].mxu0 %v1207
      %v1291 = vpop.f32.mrb[0].mxu0
      %v1292 = vadd.f32 0.0, %v1291
      %v1293 = vpop.f32.mrb[0].mxu0
      %v1294 = vpop.f32.mrb[0].mxu0
      %v1295 = vpop.f32.mrb[0].mxu0
      %1296 = vdwg.mxu0
      %v1297 = vadd.f32 %v1110, %v1244
      %v1298 = vadd.f32 %v1111, %v1247
      %v1299 = vadd.f32 %v1112, %v1252
      %v1300 = vadd.f32 %v1113, %v1255
      %v1301 = vadd.f32 %v1114, %v1260
      %v1302 = vadd.f32 %v1115, %v1263
      %v1303 = vadd.f32 %v1116, %v1268
      %v1304 = vadd.f32 %v1117, %v1271
      %v1305 = vadd.f32 %v1118, %v1276
      %v1306 = vadd.f32 %v1119, %v1279
      %v1307 = vadd.f32 %v1120, %v1284
      %v1308 = vadd.f32 %v1121, %v1287
      %v1309 = vadd.f32 %v1122, %v1292
      %s1310 = scalar_lea.vmem %s2, 32
      %v1311 = vld [vmem:[%s1310] sm:$0xf]
      %v1312 = vld [vmem:[%s1310 + $0x4] sm:$0xf]
      %v1313 = vld [vmem:[%s1310 + $0x8] sm:$0xf]
      %v1314 = vld [vmem:[%s1310 + $0xc] sm:$0xf]
      %vm1322 = vcmask 1046528
      %v1323 = vrot.slane %v972, 1
      %v1324 = vrot.slane %v973, 1
      %v1325 = vsel %vm1322, %v1323, %v1324
      %v1326 = vrot.slane %v974, 1
      %v1327 = vsel %vm1322, %v1324, %v1326
      %v1328 = vrot.slane %v975, 1
      %v1329 = vsel %vm1322, %v1326, %v1328
      %v1330 = vrot.slane %v976, 1
      %v1331 = vsel %vm1322, %v1328, %v1330
      %v1332 = vrot.slane %v977, 1
      %v1333 = vsel %vm1322, %v1330, %v1332
      %v1334 = vrot.slane %v978, 1
      %v1335 = vsel %vm1322, %v1332, %v1334
      %v1340 = vunpack.c.l.b16 %v1311
      %v1341 = vunpack.c.l.b16 %v1312
      %v1342 = vunpack.c.l.b16 %v1313
      %v1343 = vunpack.c.l.b16 %v1314
      %v1344 = vpack.c.b16 %v1341, %v1340
      %v1345 = vpack.c.b16 %v1343, %v1342
      %v1349 = vsel %vm1000, %v1325, 0
      %v1352 = vsel %vm1000, %v1327, 0
      %v1355 = vsel %vm1000, %v1329, 0
      %v1358 = vsel %vm1000, %v1331, 0
      %v1361 = vsel %vm1000, %v1333, 0
      %v1364 = vsel %vm1000, %v1335, 0
      %v1367 = vsel %vm1000, %v1334, 0
      %1369 = vmatprep.subr.bf16.mxu0 0
      %1370 = vmatpush1.bf16.msra.mxu0 %v1344
      %1371 = vmatprep.subr.bf16.mxu0 0
      %1372 = vmatpush1.bf16.msra.mxu0 %v1345
      %1373 = vmatprep.subr.bf16.mxu0 0
      %1374 = vmatpush1.bf16.msra.mxu0 0
      %1375 = vmatprep.subr.bf16.mxu0 0
      %1376 = vmatpush1.bf16.msra.mxu0 0
      %1377 = vmatprep.subr.bf16.mxu0 0
      %1378 = vmatpush1.bf16.msra.mxu0 0
      %1379 = vmatprep.subr.bf16.mxu0 0
      %1380 = vmatpush1.bf16.msra.mxu0 0
      %1381 = vmatprep.subr.bf16.mxu0 0
      %1382 = vmatpush1.bf16.msra.mxu0 0
      %1383 = vmatprep.subr.bf16.mxu0 0
      %1384 = vmatpush1.bf16.msra.mxu0 0
      %1385 = vmatprep.subr.bf16.mxu0 0
      %1386 = vmatpush1.bf16.msra.mxu0 0
      %1387 = vmatprep.subr.bf16.mxu0 0
      %1388 = vmatpush1.bf16.msra.mxu0 0
      %1389 = vmatprep.subr.bf16.mxu0 0
      %1390 = vmatpush1.bf16.msra.mxu0 0
      %1391 = vmatprep.subr.bf16.mxu0 0
      %1392 = vmatpush1.bf16.msra.mxu0 0
      %1393 = vmatprep.subr.bf16.mxu0 0
      %1394 = vmatpush1.bf16.msra.mxu0 0
      %1395 = vmatprep.subr.bf16.mxu0 0
      %1396 = vmatpush1.bf16.msra.mxu0 0
      %1397 = vmatprep.subr.bf16.mxu0 0
      %1398 = vmatpush1.bf16.msra.mxu0 0
      %1399 = vmatprep.subr.bf16.mxu0 0
      %1400 = vmatpush1.bf16.msra.mxu0 0
      %1401 = vmatprep.mubr.bf16.mxu0 0
      %1402 = vmatmul.mubr.bf16.gmra.mrb[0].mxu0 %v1349
      %v1403 = vpop.f32.mrb[0].mxu0
      %v1404 = vadd.f32 0.0, %v1403
      %v1405 = vpop.f32.mrb[0].mxu0
      %v1406 = vpop.f32.mrb[0].mxu0
      %v1407 = vadd.f32 0.0, %v1406
      %v1408 = vpop.f32.mrb[0].mxu0
      %1409 = vmatprep.mubr.bf16.mxu0 0
      %1410 = vmatmul.mubr.bf16.gmra.mrb[0].mxu0 %v1352
      %v1411 = vpop.f32.mrb[0].mxu0
      %v1412 = vadd.f32 0.0, %v1411
      %v1413 = vpop.f32.mrb[0].mxu0
      %v1414 = vpop.f32.mrb[0].mxu0
      %v1415 = vadd.f32 0.0, %v1414
      %v1416 = vpop.f32.mrb[0].mxu0
      %1417 = vmatprep.mubr.bf16.mxu0 0
      %1418 = vmatmul.mubr.bf16.gmra.mrb[0].mxu0 %v1355
      %v1419 = vpop.f32.mrb[0].mxu0
      %v1420 = vadd.f32 0.0, %v1419
      %v1421 = vpop.f32.mrb[0].mxu0
      %v1422 = vpop.f32.mrb[0].mxu0
      %v1423 = vadd.f32 0.0, %v1422
      %v1424 = vpop.f32.mrb[0].mxu0
      %1425 = vmatprep.mubr.bf16.mxu0 0
      %1426 = vmatmul.mubr.bf16.gmra.mrb[0].mxu0 %v1358
      %v1427 = vpop.f32.mrb[0].mxu0
      %v1428 = vadd.f32 0.0, %v1427
      %v1429 = vpop.f32.mrb[0].mxu0
      %v1430 = vpop.f32.mrb[0].mxu0
      %v1431 = vadd.f32 0.0, %v1430
      %v1432 = vpop.f32.mrb[0].mxu0
      %1433 = vmatprep.mubr.bf16.mxu0 0
      %1434 = vmatmul.mubr.bf16.gmra.mrb[0].mxu0 %v1361
      %v1435 = vpop.f32.mrb[0].mxu0
      %v1436 = vadd.f32 0.0, %v1435
      %v1437 = vpop.f32.mrb[0].mxu0
      %v1438 = vpop.f32.mrb[0].mxu0
      %v1439 = vadd.f32 0.0, %v1438
      %v1440 = vpop.f32.mrb[0].mxu0
      %1441 = vmatprep.mubr.bf16.mxu0 0
      %1442 = vmatmul.mubr.bf16.gmra.mrb[0].mxu0 %v1364
      %v1443 = vpop.f32.mrb[0].mxu0
      %v1444 = vadd.f32 0.0, %v1443
      %v1445 = vpop.f32.mrb[0].mxu0
      %v1446 = vpop.f32.mrb[0].mxu0
      %v1447 = vadd.f32 0.0, %v1446
      %v1448 = vpop.f32.mrb[0].mxu0
      %1449 = vmatprep.mubr.bf16.mxu0 0
      %1450 = vmatmul.mubr.bf16.gmra.mrb[0].mxu0 %v1367
      %v1451 = vpop.f32.mrb[0].mxu0
      %v1452 = vadd.f32 0.0, %v1451
      %v1453 = vpop.f32.mrb[0].mxu0
      %v1454 = vpop.f32.mrb[0].mxu0
      %v1455 = vpop.f32.mrb[0].mxu0
      %1456 = vdwg.mxu0
      %v1457 = vadd.f32 %v1297, %v1404
      %v1458 = vadd.f32 %v1298, %v1407
      %v1459 = vadd.f32 %v1299, %v1412
      %v1460 = vadd.f32 %v1300, %v1415
      %v1461 = vadd.f32 %v1301, %v1420
      %v1462 = vadd.f32 %v1302, %v1423
      %v1463 = vadd.f32 %v1303, %v1428
      %v1464 = vadd.f32 %v1304, %v1431
      %v1465 = vadd.f32 %v1305, %v1436
      %v1466 = vadd.f32 %v1306, %v1439
      %v1467 = vadd.f32 %v1307, %v1444
      %v1468 = vadd.f32 %v1308, %v1447
      %v1469 = vadd.f32 %v1309, %v1452
      %s1470 = scalar_lea.vmem %s2, 48
      %v1471 = vld [vmem:[%s1470] sm:$0xf]
      %v1472 = vld [vmem:[%s1470 + $0x4] sm:$0xf]
      %v1473 = vld [vmem:[%s1470 + $0x8] sm:$0xf]
      %v1474 = vld [vmem:[%s1470 + $0xc] sm:$0xf]
      %vm1475 = vcmask 1043456
      %v1476 = vrot.slane %v972, 4
      %v1477 = vrot.slane %v973, 4
      %v1478 = vsel %vm1475, %v1476, %v1477
      %v1479 = vrot.slane %v974, 4
      %v1480 = vsel %vm1475, %v1477, %v1479
      %v1481 = vrot.slane %v975, 4
      %v1482 = vsel %vm1475, %v1479, %v1481
      %v1483 = vrot.slane %v976, 4
      %v1484 = vsel %vm1475, %v1481, %v1483
      %v1485 = vrot.slane %v977, 4
      %v1486 = vsel %vm1475, %v1483, %v1485
      %v1487 = vrot.slane %v978, 4
      %v1488 = vsel %vm1475, %v1485, %v1487
      %v1493 = vunpack.c.l.b16 %v1471
      %v1494 = vunpack.c.l.b16 %v1472
      %v1495 = vunpack.c.l.b16 %v1473
      %v1496 = vunpack.c.l.b16 %v1474
      %v1497 = vpack.c.b16 %v1494, %v1493
      %v1498 = vpack.c.b16 %v1496, %v1495
      %v1502 = vsel %vm1000, %v1478, 0
      %v1505 = vsel %vm1000, %v1480, 0
      %v1508 = vsel %vm1000, %v1482, 0
      %v1511 = vsel %vm1000, %v1484, 0
      %v1514 = vsel %vm1000, %v1486, 0
      %v1517 = vsel %vm1000, %v1488, 0
      %v1520 = vsel %vm1000, %v1487, 0
      %1522 = vmatprep.subr.bf16.mxu0 0
      %1523 = vmatpush1.bf16.msra.mxu0 %v1497
      %1524 = vmatprep.subr.bf16.mxu0 0
      %1525 = vmatpush1.bf16.msra.mxu0 %v1498
      %1526 = vmatprep.subr.bf16.mxu0 0
      %1527 = vmatpush1.bf16.msra.mxu0 0
      %1528 = vmatprep.subr.bf16.mxu0 0
      %1529 = vmatpush1.bf16.msra.mxu0 0
      %1530 = vmatprep.subr.bf16.mxu0 0
      %1531 = vmatpush1.bf16.msra.mxu0 0
      %1532 = vmatprep.subr.bf16.mxu0 0
      %1533 = vmatpush1.bf16.msra.mxu0 0
      %1534 = vmatprep.subr.bf16.mxu0 0
      %1535 = vmatpush1.bf16.msra.mxu0 0
      %1536 = vmatprep.subr.bf16.mxu0 0
      %1537 = vmatpush1.bf16.msra.mxu0 0
      %1538 = vmatprep.subr.bf16.mxu0 0
      %1539 = vmatpush1.bf16.msra.mxu0 0
      %1540 = vmatprep.subr.bf16.mxu0 0
      %1541 = vmatpush1.bf16.msra.mxu0 0
      %1542 = vmatprep.subr.bf16.mxu0 0
      %1543 = vmatpush1.bf16.msra.mxu0 0
      %1544 = vmatprep.subr.bf16.mxu0 0
      %1545 = vmatpush1.bf16.msra.mxu0 0
      %1546 = vmatprep.subr.bf16.mxu0 0
      %1547 = vmatpush1.bf16.msra.mxu0 0
      %1548 = vmatprep.subr.bf16.mxu0 0
      %1549 = vmatpush1.bf16.msra.mxu0 0
      %1550 = vmatprep.subr.bf16.mxu0 0
      %1551 = vmatpush1.bf16.msra.mxu0 0
      %1552 = vmatprep.subr.bf16.mxu0 0
      %1553 = vmatpush1.bf16.msra.mxu0 0
      %1554 = vmatprep.mubr.bf16.mxu0 0
      %1555 = vmatmul.mubr.bf16.gmra.mrb[0].mxu0 %v1502
      %v1556 = vpop.f32.mrb[0].mxu0
      %v1557 = vadd.f32 0.0, %v1556
      %v1558 = vpop.f32.mrb[0].mxu0
      %v1559 = vpop.f32.mrb[0].mxu0
      %v1560 = vadd.f32 0.0, %v1559
      %v1561 = vpop.f32.mrb[0].mxu0
      %1562 = vmatprep.mubr.bf16.mxu0 0
      %1563 = vmatmul.mubr.bf16.gmra.mrb[0].mxu0 %v1505
      %v1564 = vpop.f32.mrb[0].mxu0
      %v1565 = vadd.f32 0.0, %v1564
      %v1566 = vpop.f32.mrb[0].mxu0
      %v1567 = vpop.f32.mrb[0].mxu0
      %v1568 = vadd.f32 0.0, %v1567
      %v1569 = vpop.f32.mrb[0].mxu0
      %1570 = vmatprep.mubr.bf16.mxu0 0
      %1571 = vmatmul.mubr.bf16.gmra.mrb[0].mxu0 %v1508
      %v1572 = vpop.f32.mrb[0].mxu0
      %v1573 = vadd.f32 0.0, %v1572
      %v1574 = vpop.f32.mrb[0].mxu0
      %v1575 = vpop.f32.mrb[0].mxu0
      %v1576 = vadd.f32 0.0, %v1575
      %v1577 = vpop.f32.mrb[0].mxu0
      %1578 = vmatprep.mubr.bf16.mxu0 0
      %1579 = vmatmul.mubr.bf16.gmra.mrb[0].mxu0 %v1511
      %v1580 = vpop.f32.mrb[0].mxu0
      %v1581 = vadd.f32 0.0, %v1580
      %v1582 = vpop.f32.mrb[0].mxu0
      %v1583 = vpop.f32.mrb[0].mxu0
      %v1584 = vadd.f32 0.0, %v1583
      %v1585 = vpop.f32.mrb[0].mxu0
      %1586 = vmatprep.mubr.bf16.mxu0 0
      %1587 = vmatmul.mubr.bf16.gmra.mrb[0].mxu0 %v1514
      %v1588 = vpop.f32.mrb[0].mxu0
      %v1589 = vadd.f32 0.0, %v1588
      %v1590 = vpop.f32.mrb[0].mxu0
      %v1591 = vpop.f32.mrb[0].mxu0
      %v1592 = vadd.f32 0.0, %v1591
      %v1593 = vpop.f32.mrb[0].mxu0
      %1594 = vmatprep.mubr.bf16.mxu0 0
      %1595 = vmatmul.mubr.bf16.gmra.mrb[0].mxu0 %v1517
      %v1596 = vpop.f32.mrb[0].mxu0
      %v1597 = vadd.f32 0.0, %v1596
      %v1598 = vpop.f32.mrb[0].mxu0
      %v1599 = vpop.f32.mrb[0].mxu0
      %v1600 = vadd.f32 0.0, %v1599
      %v1601 = vpop.f32.mrb[0].mxu0
      %1602 = vmatprep.mubr.bf16.mxu0 0
      %1603 = vmatmul.mubr.bf16.gmra.mrb[0].mxu0 %v1520
      %v1604 = vpop.f32.mrb[0].mxu0
      %v1605 = vadd.f32 0.0, %v1604
      %v1606 = vpop.f32.mrb[0].mxu0
      %v1607 = vpop.f32.mrb[0].mxu0
      %v1608 = vpop.f32.mrb[0].mxu0
      %1609 = vdwg.mxu0
      %v1610 = vadd.f32 %v1457, %v1557
      %v1611 = vadd.f32 %v1458, %v1560
      %v1612 = vadd.f32 %v1459, %v1565
      %v1613 = vadd.f32 %v1460, %v1568
      %v1614 = vadd.f32 %v1461, %v1573
      %v1615 = vadd.f32 %v1462, %v1576
      %v1616 = vadd.f32 %v1463, %v1581
      %v1617 = vadd.f32 %v1464, %v1584
      %v1618 = vadd.f32 %v1465, %v1589
      %v1619 = vadd.f32 %v1466, %v1592
      %v1620 = vadd.f32 %v1467, %v1597
      %v1621 = vadd.f32 %v1468, %v1600
      %v1622 = vadd.f32 %v1469, %v1605
      %s1623 = scalar_lea.vmem %s2, 64
      %v1624 = vld [vmem:[%s1623] sm:$0xf]
      %v1625 = vld [vmem:[%s1623 + $0x4] sm:$0xf]
      %v1626 = vld [vmem:[%s1623 + $0x8] sm:$0xf]
      %v1627 = vld [vmem:[%s1623 + $0xc] sm:$0xf]
      %vm1628 = vsmask.f32 3328
      %v1629 = vrot.slane %v1128, 4
      %v1630 = vrot.slane %v1130, 5
      %v1631 = vor.u32 %v1629, %v1630
      %v1632 = vrot.slane %v1138, 4
      %v1633 = vrot.slane %v1134, 5
      %v1634 = vor.u32 %v1632, %v1633
      %v1635 = vsel %vm1628, %v1631, %v1634
      %v1636 = vrot.slane %v1145, 4
      %v1637 = vrot.slane %v1141, 5
      %v1638 = vor.u32 %v1636, %v1637
      %v1639 = vsel %vm1628, %v1634, %v1638
      %v1640 = vrot.slane %v1152, 4
      %v1641 = vrot.slane %v1148, 5
      %v1642 = vor.u32 %v1640, %v1641
      %v1643 = vsel %vm1628, %v1638, %v1642
      %v1644 = vrot.slane %v1159, 4
      %v1645 = vrot.slane %v1155, 5
      %v1646 = vor.u32 %v1644, %v1645
      %v1647 = vsel %vm1628, %v1642, %v1646
      %v1648 = vrot.slane %v1166, 4
      %v1649 = vrot.slane %v1162, 5
      %v1650 = vor.u32 %v1648, %v1649
      %v1651 = vsel %vm1628, %v1646, %v1650
      %v1652 = vrot.slane %v1173, 4
      %v1653 = vrot.slane %v1169, 5
      %v1654 = vor.u32 %v1652, %v1653
      %v1655 = vsel %vm1628, %v1650, %v1654
      %v1660 = vunpack.c.l.b16 %v1624
      %v1661 = vunpack.c.l.b16 %v1625
      %v1662 = vunpack.c.l.b16 %v1626
      %v1663 = vunpack.c.l.b16 %v1627
      %v1664 = vpack.c.b16 %v1661, %v1660
      %v1665 = vpack.c.b16 %v1663, %v1662
      %v1669 = vsel %vm1000, %v1635, 0
      %v1672 = vsel %vm1000, %v1639, 0
      %v1675 = vsel %vm1000, %v1643, 0
      %v1678 = vsel %vm1000, %v1647, 0
      %v1681 = vsel %vm1000, %v1651, 0
      %v1684 = vsel %vm1000, %v1655, 0
      %v1687 = vsel %vm1000, %v1654, 0
      %1689 = vmatprep.subr.bf16.mxu0 0
      %1690 = vmatpush1.bf16.msra.mxu0 %v1664
      %1691 = vmatprep.subr.bf16.mxu0 0
      %1692 = vmatpush1.bf16.msra.mxu0 %v1665
      %1693 = vmatprep.subr.bf16.mxu0 0
      %1694 = vmatpush1.bf16.msra.mxu0 0
      %1695 = vmatprep.subr.bf16.mxu0 0
      %1696 = vmatpush1.bf16.msra.mxu0 0
      %1697 = vmatprep.subr.bf16.mxu0 0
      %1698 = vmatpush1.bf16.msra.mxu0 0
      %1699 = vmatprep.subr.bf16.mxu0 0
      %1700 = vmatpush1.bf16.msra.mxu0 0
      %1701 = vmatprep.subr.bf16.mxu0 0
      %1702 = vmatpush1.bf16.msra.mxu0 0
      %1703 = vmatprep.subr.bf16.mxu0 0
      %1704 = vmatpush1.bf16.msra.mxu0 0
      %1705 = vmatprep.subr.bf16.mxu0 0
      %1706 = vmatpush1.bf16.msra.mxu0 0
      %1707 = vmatprep.subr.bf16.mxu0 0
      %1708 = vmatpush1.bf16.msra.mxu0 0
      %1709 = vmatprep.subr.bf16.mxu0 0
      %1710 = vmatpush1.bf16.msra.mxu0 0
      %1711 = vmatprep.subr.bf16.mxu0 0
      %1712 = vmatpush1.bf16.msra.mxu0 0
      %1713 = vmatprep.subr.bf16.mxu0 0
      %1714 = vmatpush1.bf16.msra.mxu0 0
      %1715 = vmatprep.subr.bf16.mxu0 0
      %1716 = vmatpush1.bf16.msra.mxu0 0
      %1717 = vmatprep.subr.bf16.mxu0 0
      %1718 = vmatpush1.bf16.msra.mxu0 0
      %1719 = vmatprep.subr.bf16.mxu0 0
      %1720 = vmatpush1.bf16.msra.mxu0 0
      %1721 = vmatprep.mubr.bf16.mxu0 0
      %1722 = vmatmul.mubr.bf16.gmra.mrb[0].mxu0 %v1669
      %v1723 = vpop.f32.mrb[0].mxu0
      %v1724 = vadd.f32 0.0, %v1723
      %v1725 = vpop.f32.mrb[0].mxu0
      %v1726 = vpop.f32.mrb[0].mxu0
      %v1727 = vadd.f32 0.0, %v1726
      %v1728 = vpop.f32.mrb[0].mxu0
      %1729 = vmatprep.mubr.bf16.mxu0 0
      %1730 = vmatmul.mubr.bf16.gmra.mrb[0].mxu0 %v1672
      %v1731 = vpop.f32.mrb[0].mxu0
      %v1732 = vadd.f32 0.0, %v1731
      %v1733 = vpop.f32.mrb[0].mxu0
      %v1734 = vpop.f32.mrb[0].mxu0
      %v1735 = vadd.f32 0.0, %v1734
      %v1736 = vpop.f32.mrb[0].mxu0
      %1737 = vmatprep.mubr.bf16.mxu0 0
      %1738 = vmatmul.mubr.bf16.gmra.mrb[0].mxu0 %v1675
      %v1739 = vpop.f32.mrb[0].mxu0
      %v1740 = vadd.f32 0.0, %v1739
      %v1741 = vpop.f32.mrb[0].mxu0
      %v1742 = vpop.f32.mrb[0].mxu0
      %v1743 = vadd.f32 0.0, %v1742
      %v1744 = vpop.f32.mrb[0].mxu0
      %1745 = vmatprep.mubr.bf16.mxu0 0
      %1746 = vmatmul.mubr.bf16.gmra.mrb[0].mxu0 %v1678
      %v1747 = vpop.f32.mrb[0].mxu0
      %v1748 = vadd.f32 0.0, %v1747
      %v1749 = vpop.f32.mrb[0].mxu0
      %v1750 = vpop.f32.mrb[0].mxu0
      %v1751 = vadd.f32 0.0, %v1750
      %v1752 = vpop.f32.mrb[0].mxu0
      %1753 = vmatprep.mubr.bf16.mxu0 0
      %1754 = vmatmul.mubr.bf16.gmra.mrb[0].mxu0 %v1681
      %v1755 = vpop.f32.mrb[0].mxu0
      %v1756 = vadd.f32 0.0, %v1755
      %v1757 = vpop.f32.mrb[0].mxu0
      %v1758 = vpop.f32.mrb[0].mxu0
      %v1759 = vadd.f32 0.0, %v1758
      %v1760 = vpop.f32.mrb[0].mxu0
      %1761 = vmatprep.mubr.bf16.mxu0 0
      %1762 = vmatmul.mubr.bf16.gmra.mrb[0].mxu0 %v1684
      %v1763 = vpop.f32.mrb[0].mxu0
      %v1764 = vadd.f32 0.0, %v1763
      %v1765 = vpop.f32.mrb[0].mxu0
      %v1766 = vpop.f32.mrb[0].mxu0
      %v1767 = vadd.f32 0.0, %v1766
      %v1768 = vpop.f32.mrb[0].mxu0
      %1769 = vmatprep.mubr.bf16.mxu0 0
      %1770 = vmatmul.mubr.bf16.gmra.mrb[0].mxu0 %v1687
      %v1771 = vpop.f32.mrb[0].mxu0
      %v1772 = vadd.f32 0.0, %v1771
      %v1773 = vpop.f32.mrb[0].mxu0
      %v1774 = vpop.f32.mrb[0].mxu0
      %v1775 = vpop.f32.mrb[0].mxu0
      %1776 = vdwg.mxu0
      %v1777 = vadd.f32 %v1610, %v1724
      %v1778 = vadd.f32 %v1611, %v1727
      %v1779 = vadd.f32 %v1612, %v1732
      %v1780 = vadd.f32 %v1613, %v1735
      %v1781 = vadd.f32 %v1614, %v1740
      %v1782 = vadd.f32 %v1615, %v1743
      %v1783 = vadd.f32 %v1616, %v1748
      %v1784 = vadd.f32 %v1617, %v1751
      %v1785 = vadd.f32 %v1618, %v1756
      %v1786 = vadd.f32 %v1619, %v1759
      %v1787 = vadd.f32 %v1620, %v1764
      %v1788 = vadd.f32 %v1621, %v1767
      %v1789 = vadd.f32 %v1622, %v1772
      %s1790 = scalar_lea.vmem %s2, 80
      %v1791 = vld [vmem:[%s1790] sm:$0xf]
      %v1792 = vld [vmem:[%s1790 + $0x4] sm:$0xf]
      %v1793 = vld [vmem:[%s1790 + $0x8] sm:$0xf]
      %v1794 = vld [vmem:[%s1790 + $0xc] sm:$0xf]
      %vm1795 = vcmask 1042432
      %v1796 = vrot.slane %v972, 5
      %v1797 = vrot.slane %v973, 5
      %v1798 = vsel %vm1795, %v1796, %v1797
      %v1799 = vrot.slane %v974, 5
      %v1800 = vsel %vm1795, %v1797, %v1799
      %v1801 = vrot.slane %v975, 5
      %v1802 = vsel %vm1795, %v1799, %v1801
      %v1803 = vrot.slane %v976, 5
      %v1804 = vsel %vm1795, %v1801, %v1803
      %v1805 = vrot.slane %v977, 5
      %v1806 = vsel %vm1795, %v1803, %v1805
      %v1807 = vrot.slane %v978, 5
      %v1808 = vsel %vm1795, %v1805, %v1807
      %v1813 = vunpack.c.l.b16 %v1791
      %v1814 = vunpack.c.l.b16 %v1792
      %v1815 = vunpack.c.l.b16 %v1793
      %v1816 = vunpack.c.l.b16 %v1794
      %v1817 = vpack.c.b16 %v1814, %v1813
      %v1818 = vpack.c.b16 %v1816, %v1815
      %v1822 = vsel %vm1000, %v1798, 0
      %v1825 = vsel %vm1000, %v1800, 0
      %v1828 = vsel %vm1000, %v1802, 0
      %v1831 = vsel %vm1000, %v1804, 0
      %v1834 = vsel %vm1000, %v1806, 0
      %v1837 = vsel %vm1000, %v1808, 0
      %v1840 = vsel %vm1000, %v1807, 0
      %1842 = vmatprep.subr.bf16.mxu0 0
      %1843 = vmatpush1.bf16.msra.mxu0 %v1817
      %1844 = vmatprep.subr.bf16.mxu0 0
      %1845 = vmatpush1.bf16.msra.mxu0 %v1818
      %1846 = vmatprep.subr.bf16.mxu0 0
      %1847 = vmatpush1.bf16.msra.mxu0 0
      %1848 = vmatprep.subr.bf16.mxu0 0
      %1849 = vmatpush1.bf16.msra.mxu0 0
      %1850 = vmatprep.subr.bf16.mxu0 0
      %1851 = vmatpush1.bf16.msra.mxu0 0
      %1852 = vmatprep.subr.bf16.mxu0 0
      %1853 = vmatpush1.bf16.msra.mxu0 0
      %1854 = vmatprep.subr.bf16.mxu0 0
      %1855 = vmatpush1.bf16.msra.mxu0 0
      %1856 = vmatprep.subr.bf16.mxu0 0
      %1857 = vmatpush1.bf16.msra.mxu0 0
      %1858 = vmatprep.subr.bf16.mxu0 0
      %1859 = vmatpush1.bf16.msra.mxu0 0
      %1860 = vmatprep.subr.bf16.mxu0 0
      %1861 = vmatpush1.bf16.msra.mxu0 0
      %1862 = vmatprep.subr.bf16.mxu0 0
      %1863 = vmatpush1.bf16.msra.mxu0 0
      %1864 = vmatprep.subr.bf16.mxu0 0
      %1865 = vmatpush1.bf16.msra.mxu0 0
      %1866 = vmatprep.subr.bf16.mxu0 0
      %1867 = vmatpush1.bf16.msra.mxu0 0
      %1868 = vmatprep.subr.bf16.mxu0 0
      %1869 = vmatpush1.bf16.msra.mxu0 0
      %1870 = vmatprep.subr.bf16.mxu0 0
      %1871 = vmatpush1.bf16.msra.mxu0 0
      %1872 = vmatprep.subr.bf16.mxu0 0
      %1873 = vmatpush1.bf16.msra.mxu0 0
      %1874 = vmatprep.mubr.bf16.mxu0 0
      %1875 = vmatmul.mubr.bf16.gmra.mrb[0].mxu0 %v1822
      %v1876 = vpop.f32.mrb[0].mxu0
      %v1877 = vadd.f32 0.0, %v1876
      %v1878 = vpop.f32.mrb[0].mxu0
      %v1879 = vpop.f32.mrb[0].mxu0
      %v1880 = vadd.f32 0.0, %v1879
      %v1881 = vpop.f32.mrb[0].mxu0
      %1882 = vmatprep.mubr.bf16.mxu0 0
      %1883 = vmatmul.mubr.bf16.gmra.mrb[0].mxu0 %v1825
      %v1884 = vpop.f32.mrb[0].mxu0
      %v1885 = vadd.f32 0.0, %v1884
      %v1886 = vpop.f32.mrb[0].mxu0
      %v1887 = vpop.f32.mrb[0].mxu0
      %v1888 = vadd.f32 0.0, %v1887
      %v1889 = vpop.f32.mrb[0].mxu0
      %1890 = vmatprep.mubr.bf16.mxu0 0
      %1891 = vmatmul.mubr.bf16.gmra.mrb[0].mxu0 %v1828
      %v1892 = vpop.f32.mrb[0].mxu0
      %v1893 = vadd.f32 0.0, %v1892
      %v1894 = vpop.f32.mrb[0].mxu0
      %v1895 = vpop.f32.mrb[0].mxu0
      %v1896 = vadd.f32 0.0, %v1895
      %v1897 = vpop.f32.mrb[0].mxu0
      %1898 = vmatprep.mubr.bf16.mxu0 0
      %1899 = vmatmul.mubr.bf16.gmra.mrb[0].mxu0 %v1831
      %v1900 = vpop.f32.mrb[0].mxu0
      %v1901 = vadd.f32 0.0, %v1900
      %v1902 = vpop.f32.mrb[0].mxu0
      %v1903 = vpop.f32.mrb[0].mxu0
      %v1904 = vadd.f32 0.0, %v1903
      %v1905 = vpop.f32.mrb[0].mxu0
      %1906 = vmatprep.mubr.bf16.mxu0 0
      %1907 = vmatmul.mubr.bf16.gmra.mrb[0].mxu0 %v1834
      %v1908 = vpop.f32.mrb[0].mxu0
      %v1909 = vadd.f32 0.0, %v1908
      %v1910 = vpop.f32.mrb[0].mxu0
      %v1911 = vpop.f32.mrb[0].mxu0
      %v1912 = vadd.f32 0.0, %v1911
      %v1913 = vpop.f32.mrb[0].mxu0
      %1914 = vmatprep.mubr.bf16.mxu0 0
      %1915 = vmatmul.mubr.bf16.gmra.mrb[0].mxu0 %v1837
      %v1916 = vpop.f32.mrb[0].mxu0
      %v1917 = vadd.f32 0.0, %v1916
      %v1918 = vpop.f32.mrb[0].mxu0
      %v1919 = vpop.f32.mrb[0].mxu0
      %v1920 = vadd.f32 0.0, %v1919
      %v1921 = vpop.f32.mrb[0].mxu0
      %1922 = vmatprep.mubr.bf16.mxu0 0
      %1923 = vmatmul.mubr.bf16.gmra.mrb[0].mxu0 %v1840
      %v1924 = vpop.f32.mrb[0].mxu0
      %v1925 = vadd.f32 0.0, %v1924
      %v1926 = vpop.f32.mrb[0].mxu0
      %v1927 = vpop.f32.mrb[0].mxu0
      %v1928 = vpop.f32.mrb[0].mxu0
      %1929 = vdwg.mxu0
      %v1930 = vadd.f32 %v1777, %v1877
      %v1931 = vadd.f32 %v1778, %v1880
      %v1932 = vadd.f32 %v1779, %v1885
      %v1933 = vadd.f32 %v1780, %v1888
      %v1934 = vadd.f32 %v1781, %v1893
      %v1935 = vadd.f32 %v1782, %v1896
      %v1936 = vadd.f32 %v1783, %v1901
      %v1937 = vadd.f32 %v1784, %v1904
      %v1938 = vadd.f32 %v1785, %v1909
      %v1939 = vadd.f32 %v1786, %v1912
      %v1940 = vadd.f32 %v1787, %v1917
      %v1941 = vadd.f32 %v1788, %v1920
      %v1942 = vadd.f32 %v1789, %v1925
      %s1943 = scalar_lea.vmem %s2, 96
      %v1944 = vld [vmem:[%s1943] sm:$0xf]
      %v1945 = vld [vmem:[%s1943 + $0x4] sm:$0xf]
      %v1946 = vld [vmem:[%s1943 + $0x8] sm:$0xf]
      %v1947 = vld [vmem:[%s1943 + $0xc] sm:$0xf]
      %v1952 = vunpack.c.l.b16 %v1944
      %v1953 = vunpack.c.l.b16 %v1945
      %v1954 = vunpack.c.l.b16 %v1946
      %v1955 = vunpack.c.l.b16 %v1947
      %v1956 = vpack.c.b16 %v1953, %v1952
      %v1957 = vpack.c.b16 %v1955, %v1954
      %v1961 = vsel %vm1000, %v979, 0
      %1963 = vmatprep.subr.bf16.mxu0 0
      %1964 = vmatpush1.bf16.msra.mxu0 %v1956
      %1965 = vmatprep.subr.bf16.mxu0 0
      %1966 = vmatpush1.bf16.msra.mxu0 %v1957
      %1967 = vmatprep.subr.bf16.mxu0 0
      %1968 = vmatpush1.bf16.msra.mxu0 0
      %1969 = vmatprep.subr.bf16.mxu0 0
      %1970 = vmatpush1.bf16.msra.mxu0 0
      %1971 = vmatprep.subr.bf16.mxu0 0
      %1972 = vmatpush1.bf16.msra.mxu0 0
      %1973 = vmatprep.subr.bf16.mxu0 0
      %1974 = vmatpush1.bf16.msra.mxu0 0
      %1975 = vmatprep.subr.bf16.mxu0 0
      %1976 = vmatpush1.bf16.msra.mxu0 0
      %1977 = vmatprep.subr.bf16.mxu0 0
      %1978 = vmatpush1.bf16.msra.mxu0 0
      %1979 = vmatprep.subr.bf16.mxu0 0
      %1980 = vmatpush1.bf16.msra.mxu0 0
      %1981 = vmatprep.subr.bf16.mxu0 0
      %1982 = vmatpush1.bf16.msra.mxu0 0
      %1983 = vmatprep.subr.bf16.mxu0 0
      %1984 = vmatpush1.bf16.msra.mxu0 0
      %1985 = vmatprep.subr.bf16.mxu0 0
      %1986 = vmatpush1.bf16.msra.mxu0 0
      %1987 = vmatprep.subr.bf16.mxu0 0
      %1988 = vmatpush1.bf16.msra.mxu0 0
      %1989 = vmatprep.subr.bf16.mxu0 0
      %1990 = vmatpush1.bf16.msra.mxu0 0
      %1991 = vmatprep.subr.bf16.mxu0 0
      %1992 = vmatpush1.bf16.msra.mxu0 0
      %1993 = vmatprep.subr.bf16.mxu0 0
      %1994 = vmatpush1.bf16.msra.mxu0 0
      %1995 = vmatprep.mubr.bf16.mxu0 0
      %1996 = vmatmul.mubr.bf16.gmra.mrb[0].mxu0 %v1005
      %v1997 = vpop.f32.mrb[0].mxu0
      %v1998 = vadd.f32 0.0, %v1997
      %v1999 = vpop.f32.mrb[0].mxu0
      %v2000 = vpop.f32.mrb[0].mxu0
      %v2001 = vadd.f32 0.0, %v2000
      %v2002 = vpop.f32.mrb[0].mxu0
      %2003 = vmatprep.mubr.bf16.mxu0 0
      %2004 = vmatmul.mubr.bf16.gmra.mrb[0].mxu0 %v1008
      %v2005 = vpop.f32.mrb[0].mxu0
      %v2006 = vadd.f32 0.0, %v2005
      %v2007 = vpop.f32.mrb[0].mxu0
      %v2008 = vpop.f32.mrb[0].mxu0
      %v2009 = vadd.f32 0.0, %v2008
      %v2010 = vpop.f32.mrb[0].mxu0
      %2011 = vmatprep.mubr.bf16.mxu0 0
      %2012 = vmatmul.mubr.bf16.gmra.mrb[0].mxu0 %v1011
      %v2013 = vpop.f32.mrb[0].mxu0
      %v2014 = vadd.f32 0.0, %v2013
      %v2015 = vpop.f32.mrb[0].mxu0
      %v2016 = vpop.f32.mrb[0].mxu0
      %v2017 = vadd.f32 0.0, %v2016
      %v2018 = vpop.f32.mrb[0].mxu0
      %2019 = vmatprep.mubr.bf16.mxu0 0
      %2020 = vmatmul.mubr.bf16.gmra.mrb[0].mxu0 %v1014
      %v2021 = vpop.f32.mrb[0].mxu0
      %v2022 = vadd.f32 0.0, %v2021
      %v2023 = vpop.f32.mrb[0].mxu0
      %v2024 = vpop.f32.mrb[0].mxu0
      %v2025 = vadd.f32 0.0, %v2024
      %v2026 = vpop.f32.mrb[0].mxu0
      %2027 = vmatprep.mubr.bf16.mxu0 0
      %2028 = vmatmul.mubr.bf16.gmra.mrb[0].mxu0 %v1017
      %v2029 = vpop.f32.mrb[0].mxu0
      %v2030 = vadd.f32 0.0, %v2029
      %v2031 = vpop.f32.mrb[0].mxu0
      %v2032 = vpop.f32.mrb[0].mxu0
      %v2033 = vadd.f32 0.0, %v2032
      %v2034 = vpop.f32.mrb[0].mxu0
      %2035 = vmatprep.mubr.bf16.mxu0 0
      %2036 = vmatmul.mubr.bf16.gmra.mrb[0].mxu0 %v1020
      %v2037 = vpop.f32.mrb[0].mxu0
      %v2038 = vadd.f32 0.0, %v2037
      %v2039 = vpop.f32.mrb[0].mxu0
      %v2040 = vpop.f32.mrb[0].mxu0
      %v2041 = vadd.f32 0.0, %v2040
      %v2042 = vpop.f32.mrb[0].mxu0
      %2043 = vmatprep.mubr.bf16.mxu0 0
      %2044 = vmatmul.mubr.bf16.gmra.mrb[0].mxu0 %v1961
      %v2045 = vpop.f32.mrb[0].mxu0
      %v2046 = vadd.f32 0.0, %v2045
      %v2047 = vpop.f32.mrb[0].mxu0
      %v2048 = vpop.f32.mrb[0].mxu0
      %v2049 = vpop.f32.mrb[0].mxu0
      %2050 = vdwg.mxu0
      %v2051 = vadd.f32 %v1930, %v1998
      %v2052 = vadd.f32 %v1931, %v2001
      %v2053 = vadd.f32 %v1932, %v2006
      %v2054 = vadd.f32 %v1933, %v2009
      %v2055 = vadd.f32 %v1934, %v2014
      %v2056 = vadd.f32 %v1935, %v2017
      %v2057 = vadd.f32 %v1936, %v2022
      %v2058 = vadd.f32 %v1937, %v2025
      %v2059 = vadd.f32 %v1938, %v2030
      %v2060 = vadd.f32 %v1939, %v2033
      %v2061 = vadd.f32 %v1940, %v2038
      %v2062 = vadd.f32 %v1941, %v2041
      %v2063 = vadd.f32 %v1942, %v2046
      %s2064 = scalar_lea.vmem %s2, 112
      %v2065 = vld [vmem:[%s2064] sm:$0xf]
      %v2066 = vld [vmem:[%s2064 + $0x4] sm:$0xf]
      %v2067 = vld [vmem:[%s2064 + $0x8] sm:$0xf]
      %v2068 = vld [vmem:[%s2064 + $0xc] sm:$0xf]
      %v2069 = vshll.u32 %v979, 16
      %v2071 = vrot.slane %v2069, 1
      %v2072 = vsel %vm407, %v1175, %v2071
      %v2073 = vshrl.u32 %v979, 16
      %v2075 = vor.u32 %v2073, %v2071
      %v2080 = vunpack.c.l.b16 %v2065
      %v2081 = vunpack.c.l.b16 %v2066
      %v2082 = vunpack.c.l.b16 %v2067
      %v2083 = vunpack.c.l.b16 %v2068
      %v2084 = vpack.c.b16 %v2081, %v2080
      %v2085 = vpack.c.b16 %v2083, %v2082
      %v2089 = vsel %vm1000, %v2072, 0
      %v2092 = vsel %vm1000, %v2075, 0
      %2094 = vmatprep.subr.bf16.mxu0 0
      %2095 = vmatpush1.bf16.msra.mxu0 %v2084
      %2096 = vmatprep.subr.bf16.mxu0 0
      %2097 = vmatpush1.bf16.msra.mxu0 %v2085
      %2098 = vmatprep.subr.bf16.mxu0 0
      %2099 = vmatpush1.bf16.msra.mxu0 0
      %2100 = vmatprep.subr.bf16.mxu0 0
      %2101 = vmatpush1.bf16.msra.mxu0 0
      %2102 = vmatprep.subr.bf16.mxu0 0
      %2103 = vmatpush1.bf16.msra.mxu0 0
      %2104 = vmatprep.subr.bf16.mxu0 0
      %2105 = vmatpush1.bf16.msra.mxu0 0
      %2106 = vmatprep.subr.bf16.mxu0 0
      %2107 = vmatpush1.bf16.msra.mxu0 0
      %2108 = vmatprep.subr.bf16.mxu0 0
      %2109 = vmatpush1.bf16.msra.mxu0 0
      %2110 = vmatprep.subr.bf16.mxu0 0
      %2111 = vmatpush1.bf16.msra.mxu0 0
      %2112 = vmatprep.subr.bf16.mxu0 0
      %2113 = vmatpush1.bf16.msra.mxu0 0
      %2114 = vmatprep.subr.bf16.mxu0 0
      %2115 = vmatpush1.bf16.msra.mxu0 0
      %2116 = vmatprep.subr.bf16.mxu0 0
      %2117 = vmatpush1.bf16.msra.mxu0 0
      %2118 = vmatprep.subr.bf16.mxu0 0
      %2119 = vmatpush1.bf16.msra.mxu0 0
      %2120 = vmatprep.subr.bf16.mxu0 0
      %2121 = vmatpush1.bf16.msra.mxu0 0
      %2122 = vmatprep.subr.bf16.mxu0 0
      %2123 = vmatpush1.bf16.msra.mxu0 0
      %2124 = vmatprep.subr.bf16.mxu0 0
      %2125 = vmatpush1.bf16.msra.mxu0 0
      %2126 = vmatprep.mubr.bf16.mxu0 0
      %2127 = vmatmul.mubr.bf16.gmra.mrb[0].mxu0 %v1192
      %v2128 = vpop.f32.mrb[0].mxu0
      %v2129 = vadd.f32 0.0, %v2128
      %v2130 = vpop.f32.mrb[0].mxu0
      %v2131 = vpop.f32.mrb[0].mxu0
      %v2132 = vadd.f32 0.0, %v2131
      %v2133 = vpop.f32.mrb[0].mxu0
      %2134 = vmatprep.mubr.bf16.mxu0 0
      %2135 = vmatmul.mubr.bf16.gmra.mrb[0].mxu0 %v1195
      %v2136 = vpop.f32.mrb[0].mxu0
      %v2137 = vadd.f32 0.0, %v2136
      %v2138 = vpop.f32.mrb[0].mxu0
      %v2139 = vpop.f32.mrb[0].mxu0
      %v2140 = vadd.f32 0.0, %v2139
      %v2141 = vpop.f32.mrb[0].mxu0
      %2142 = vmatprep.mubr.bf16.mxu0 0
      %2143 = vmatmul.mubr.bf16.gmra.mrb[0].mxu0 %v1198
      %v2144 = vpop.f32.mrb[0].mxu0
      %v2145 = vadd.f32 0.0, %v2144
      %v2146 = vpop.f32.mrb[0].mxu0
      %v2147 = vpop.f32.mrb[0].mxu0
      %v2148 = vadd.f32 0.0, %v2147
      %v2149 = vpop.f32.mrb[0].mxu0
      %2150 = vmatprep.mubr.bf16.mxu0 0
      %2151 = vmatmul.mubr.bf16.gmra.mrb[0].mxu0 %v1201
      %v2152 = vpop.f32.mrb[0].mxu0
      %v2153 = vadd.f32 0.0, %v2152
      %v2154 = vpop.f32.mrb[0].mxu0
      %v2155 = vpop.f32.mrb[0].mxu0
      %v2156 = vadd.f32 0.0, %v2155
      %v2157 = vpop.f32.mrb[0].mxu0
      %2158 = vmatprep.mubr.bf16.mxu0 0
      %2159 = vmatmul.mubr.bf16.gmra.mrb[0].mxu0 %v1204
      %v2160 = vpop.f32.mrb[0].mxu0
      %v2161 = vadd.f32 0.0, %v2160
      %v2162 = vpop.f32.mrb[0].mxu0
      %v2163 = vpop.f32.mrb[0].mxu0
      %v2164 = vadd.f32 0.0, %v2163
      %v2165 = vpop.f32.mrb[0].mxu0
      %2166 = vmatprep.mubr.bf16.mxu0 0
      %2167 = vmatmul.mubr.bf16.gmra.mrb[0].mxu0 %v2089
      %v2168 = vpop.f32.mrb[0].mxu0
      %v2169 = vadd.f32 0.0, %v2168
      %v2170 = vpop.f32.mrb[0].mxu0
      %v2171 = vpop.f32.mrb[0].mxu0
      %v2172 = vadd.f32 0.0, %v2171
      %v2173 = vpop.f32.mrb[0].mxu0
      %2174 = vmatprep.mubr.bf16.mxu0 0
      %2175 = vmatmul.mubr.bf16.gmra.mrb[0].mxu0 %v2092
      %v2176 = vpop.f32.mrb[0].mxu0
      %v2177 = vadd.f32 0.0, %v2176
      %v2178 = vpop.f32.mrb[0].mxu0
      %v2179 = vpop.f32.mrb[0].mxu0
      %v2180 = vpop.f32.mrb[0].mxu0
      %2181 = vdwg.mxu0
      %v2182 = vadd.f32 %v2051, %v2129
      %v2183 = vadd.f32 %v2052, %v2132
      %v2184 = vadd.f32 %v2053, %v2137
      %v2185 = vadd.f32 %v2054, %v2140
      %v2186 = vadd.f32 %v2055, %v2145
      %v2187 = vadd.f32 %v2056, %v2148
      %v2188 = vadd.f32 %v2057, %v2153
      %v2189 = vadd.f32 %v2058, %v2156
      %v2190 = vadd.f32 %v2059, %v2161
      %v2191 = vadd.f32 %v2060, %v2164
      %v2192 = vadd.f32 %v2061, %v2169
      %v2193 = vadd.f32 %v2062, %v2172
      %v2194 = vadd.f32 %v2063, %v2177
      %s2195 = scalar_lea.vmem %s2, 128
      %v2196 = vld [vmem:[%s2195] sm:$0xf]
      %v2197 = vld [vmem:[%s2195 + $0x4] sm:$0xf]
      %v2198 = vld [vmem:[%s2195 + $0x8] sm:$0xf]
      %v2199 = vld [vmem:[%s2195 + $0xc] sm:$0xf]
      %v2201 = vrot.slane %v979, 1
      %v2202 = vsel %vm1322, %v1334, %v2201
      %v2207 = vunpack.c.l.b16 %v2196
      %v2208 = vunpack.c.l.b16 %v2197
      %v2209 = vunpack.c.l.b16 %v2198
      %v2210 = vunpack.c.l.b16 %v2199
      %v2211 = vpack.c.b16 %v2208, %v2207
      %v2212 = vpack.c.b16 %v2210, %v2209
      %v2216 = vsel %vm1000, %v2202, 0
      %v2219 = vsel %vm1000, %v2201, 0
      %2221 = vmatprep.subr.bf16.mxu0 0
      %2222 = vmatpush1.bf16.msra.mxu0 %v2211
      %2223 = vmatprep.subr.bf16.mxu0 0
      %2224 = vmatpush1.bf16.msra.mxu0 %v2212
      %2225 = vmatprep.subr.bf16.mxu0 0
      %2226 = vmatpush1.bf16.msra.mxu0 0
      %2227 = vmatprep.subr.bf16.mxu0 0
      %2228 = vmatpush1.bf16.msra.mxu0 0
      %2229 = vmatprep.subr.bf16.mxu0 0
      %2230 = vmatpush1.bf16.msra.mxu0 0
      %2231 = vmatprep.subr.bf16.mxu0 0
      %2232 = vmatpush1.bf16.msra.mxu0 0
      %2233 = vmatprep.subr.bf16.mxu0 0
      %2234 = vmatpush1.bf16.msra.mxu0 0
      %2235 = vmatprep.subr.bf16.mxu0 0
      %2236 = vmatpush1.bf16.msra.mxu0 0
      %2237 = vmatprep.subr.bf16.mxu0 0
      %2238 = vmatpush1.bf16.msra.mxu0 0
      %2239 = vmatprep.subr.bf16.mxu0 0
      %2240 = vmatpush1.bf16.msra.mxu0 0
      %2241 = vmatprep.subr.bf16.mxu0 0
      %2242 = vmatpush1.bf16.msra.mxu0 0
      %2243 = vmatprep.subr.bf16.mxu0 0
      %2244 = vmatpush1.bf16.msra.mxu0 0
      %2245 = vmatprep.subr.bf16.mxu0 0
      %2246 = vmatpush1.bf16.msra.mxu0 0
      %2247 = vmatprep.subr.bf16.mxu0 0
      %2248 = vmatpush1.bf16.msra.mxu0 0
      %2249 = vmatprep.subr.bf16.mxu0 0
      %2250 = vmatpush1.bf16.msra.mxu0 0
      %2251 = vmatprep.subr.bf16.mxu0 0
      %2252 = vmatpush1.bf16.msra.mxu0 0
      %2253 = vmatprep.mubr.bf16.mxu0 0
      %2254 = vmatmul.mubr.bf16.gmra.mrb[0].mxu0 %v1352
      %v2255 = vpop.f32.mrb[0].mxu0
      %v2256 = vadd.f32 0.0, %v2255
      %v2257 = vpop.f32.mrb[0].mxu0
      %v2258 = vpop.f32.mrb[0].mxu0
      %v2259 = vadd.f32 0.0, %v2258
      %v2260 = vpop.f32.mrb[0].mxu0
      %2261 = vmatprep.mubr.bf16.mxu0 0
      %2262 = vmatmul.mubr.bf16.gmra.mrb[0].mxu0 %v1355
      %v2263 = vpop.f32.mrb[0].mxu0
      %v2264 = vadd.f32 0.0, %v2263
      %v2265 = vpop.f32.mrb[0].mxu0
      %v2266 = vpop.f32.mrb[0].mxu0
      %v2267 = vadd.f32 0.0, %v2266
      %v2268 = vpop.f32.mrb[0].mxu0
      %2269 = vmatprep.mubr.bf16.mxu0 0
      %2270 = vmatmul.mubr.bf16.gmra.mrb[0].mxu0 %v1358
      %v2271 = vpop.f32.mrb[0].mxu0
      %v2272 = vadd.f32 0.0, %v2271
      %v2273 = vpop.f32.mrb[0].mxu0
      %v2274 = vpop.f32.mrb[0].mxu0
      %v2275 = vadd.f32 0.0, %v2274
      %v2276 = vpop.f32.mrb[0].mxu0
      %2277 = vmatprep.mubr.bf16.mxu0 0
      %2278 = vmatmul.mubr.bf16.gmra.mrb[0].mxu0 %v1361
      %v2279 = vpop.f32.mrb[0].mxu0
      %v2280 = vadd.f32 0.0, %v2279
      %v2281 = vpop.f32.mrb[0].mxu0
      %v2282 = vpop.f32.mrb[0].mxu0
      %v2283 = vadd.f32 0.0, %v2282
      %v2284 = vpop.f32.mrb[0].mxu0
      %2285 = vmatprep.mubr.bf16.mxu0 0
      %2286 = vmatmul.mubr.bf16.gmra.mrb[0].mxu0 %v1364
      %v2287 = vpop.f32.mrb[0].mxu0
      %v2288 = vadd.f32 0.0, %v2287
      %v2289 = vpop.f32.mrb[0].mxu0
      %v2290 = vpop.f32.mrb[0].mxu0
      %v2291 = vadd.f32 0.0, %v2290
      %v2292 = vpop.f32.mrb[0].mxu0
      %2293 = vmatprep.mubr.bf16.mxu0 0
      %2294 = vmatmul.mubr.bf16.gmra.mrb[0].mxu0 %v2216
      %v2295 = vpop.f32.mrb[0].mxu0
      %v2296 = vadd.f32 0.0, %v2295
      %v2297 = vpop.f32.mrb[0].mxu0
      %v2298 = vpop.f32.mrb[0].mxu0
      %v2299 = vadd.f32 0.0, %v2298
      %v2300 = vpop.f32.mrb[0].mxu0
      %2301 = vmatprep.mubr.bf16.mxu0 0
      %2302 = vmatmul.mubr.bf16.gmra.mrb[0].mxu0 %v2219
      %v2303 = vpop.f32.mrb[0].mxu0
      %v2304 = vadd.f32 0.0, %v2303
      %v2305 = vpop.f32.mrb[0].mxu0
      %v2306 = vpop.f32.mrb[0].mxu0
      %v2307 = vpop.f32.mrb[0].mxu0
      %2308 = vdwg.mxu0
      %v2309 = vadd.f32 %v2182, %v2256
      %v2310 = vadd.f32 %v2183, %v2259
      %v2311 = vadd.f32 %v2184, %v2264
      %v2312 = vadd.f32 %v2185, %v2267
      %v2313 = vadd.f32 %v2186, %v2272
      %v2314 = vadd.f32 %v2187, %v2275
      %v2315 = vadd.f32 %v2188, %v2280
      %v2316 = vadd.f32 %v2189, %v2283
      %v2317 = vadd.f32 %v2190, %v2288
      %v2318 = vadd.f32 %v2191, %v2291
      %v2319 = vadd.f32 %v2192, %v2296
      %v2320 = vadd.f32 %v2193, %v2299
      %v2321 = vadd.f32 %v2194, %v2304
      %v2322 = vmax.f32 %v2309, 0.0
      %v2323 = vmax.f32 %v2310, 0.0
      %v2324 = vmax.f32 %v2311, 0.0
      %v2325 = vmax.f32 %v2312, 0.0
      %v2326 = vmax.f32 %v2313, 0.0
      %v2327 = vmax.f32 %v2314, 0.0
      %v2328 = vmax.f32 %v2315, 0.0
      %v2329 = vmax.f32 %v2316, 0.0
      %v2330 = vmax.f32 %v2317, 0.0
      %v2331 = vmax.f32 %v2318, 0.0
      %v2332 = vmax.f32 %v2319, 0.0
      %v2333 = vmax.f32 %v2320, 0.0
      %v2334 = vmax.f32 %v2321, 0.0
      %v2335 = vpack.c.bf16 %v2323, %v2322
      %v2336 = vpack.c.bf16 %v2325, %v2324
      %v2337 = vpack.c.bf16 %v2327, %v2326
      %v2338 = vpack.c.bf16 %v2329, %v2328
      %v2339 = vpack.c.bf16 %v2331, %v2330
      %v2340 = vpack.c.bf16 %v2333, %v2332
      %v2341 = vpack.c.bf16 %v2334, %v2334
      %v2342 = vlaneseq
      %v2343 = vshrl.u32 %v2342, 7
      %v2344 = vsub.s32 2, %v2343
      %v2345 = vrot.slane %v201, %v2344
      %s2346 = scalar_lea.vmem %s2, 144
      %v2347 = vld [vmem:[%s2346] sm:$0xf]
      %v2348 = vld [vmem:[%s2346 + $0x4] sm:$0xf]
      %v2349 = vld [vmem:[%s2346 + $0x8] sm:$0xf]
      %v2350 = vld [vmem:[%s2346 + $0xc] sm:$0xf]
      %v2355 = vunpack.c.l.b16 %v2347
      %v2356 = vunpack.c.l.b16 %v2348
      %v2357 = vunpack.c.l.b16 %v2349
      %v2358 = vunpack.c.l.b16 %v2350
      %v2359 = vpack.c.b16 %v2356, %v2355
      %v2360 = vpack.c.b16 %v2358, %v2357
      %v2364 = vsel %vm1000, %v2335, 0
      %v2367 = vsel %vm1000, %v2336, 0
      %v2370 = vsel %vm1000, %v2337, 0
      %v2373 = vsel %vm1000, %v2338, 0
      %v2376 = vsel %vm1000, %v2339, 0
      %v2379 = vsel %vm1000, %v2340, 0
      %2381 = vmatprep.subr.bf16.mxu0 0
      %2382 = vmatpush1.bf16.msra.mxu0 %v2359
      %2383 = vmatprep.subr.bf16.mxu0 0
      %2384 = vmatpush1.bf16.msra.mxu0 %v2360
      %2385 = vmatprep.subr.bf16.mxu0 0
      %2386 = vmatpush1.bf16.msra.mxu0 0
      %2387 = vmatprep.subr.bf16.mxu0 0
      %2388 = vmatpush1.bf16.msra.mxu0 0
      %2389 = vmatprep.subr.bf16.mxu0 0
      %2390 = vmatpush1.bf16.msra.mxu0 0
      %2391 = vmatprep.subr.bf16.mxu0 0
      %2392 = vmatpush1.bf16.msra.mxu0 0
      %2393 = vmatprep.subr.bf16.mxu0 0
      %2394 = vmatpush1.bf16.msra.mxu0 0
      %2395 = vmatprep.subr.bf16.mxu0 0
      %2396 = vmatpush1.bf16.msra.mxu0 0
      %2397 = vmatprep.subr.bf16.mxu0 0
      %2398 = vmatpush1.bf16.msra.mxu0 0
      %2399 = vmatprep.subr.bf16.mxu0 0
      %2400 = vmatpush1.bf16.msra.mxu0 0
      %2401 = vmatprep.subr.bf16.mxu0 0
      %2402 = vmatpush1.bf16.msra.mxu0 0
      %2403 = vmatprep.subr.bf16.mxu0 0
      %2404 = vmatpush1.bf16.msra.mxu0 0
      %2405 = vmatprep.subr.bf16.mxu0 0
      %2406 = vmatpush1.bf16.msra.mxu0 0
      %2407 = vmatprep.subr.bf16.mxu0 0
      %2408 = vmatpush1.bf16.msra.mxu0 0
      %2409 = vmatprep.subr.bf16.mxu0 0
      %2410 = vmatpush1.bf16.msra.mxu0 0
      %2411 = vmatprep.subr.bf16.mxu0 0
      %2412 = vmatpush1.bf16.msra.mxu0 0
      %2413 = vmatprep.mubr.bf16.mxu0 0
      %2414 = vmatmul.mubr.bf16.gmra.mrb[0].mxu0 %v2364
      %v2415 = vpop.f32.mrb[0].mxu0
      %v2416 = vadd.f32 0.0, %v2415
      %v2417 = vpop.f32.mrb[0].mxu0
      %v2418 = vpop.f32.mrb[0].mxu0
      %v2419 = vadd.f32 0.0, %v2418
      %v2420 = vpop.f32.mrb[0].mxu0
      %2421 = vmatprep.mubr.bf16.mxu0 0
      %2422 = vmatmul.mubr.bf16.gmra.mrb[0].mxu0 %v2367
      %v2423 = vpop.f32.mrb[0].mxu0
      %v2424 = vadd.f32 0.0, %v2423
      %v2425 = vpop.f32.mrb[0].mxu0
      %v2426 = vpop.f32.mrb[0].mxu0
      %v2427 = vadd.f32 0.0, %v2426
      %v2428 = vpop.f32.mrb[0].mxu0
      %2429 = vmatprep.mubr.bf16.mxu0 0
      %2430 = vmatmul.mubr.bf16.gmra.mrb[0].mxu0 %v2370
      %v2431 = vpop.f32.mrb[0].mxu0
      %v2432 = vadd.f32 0.0, %v2431
      %v2433 = vpop.f32.mrb[0].mxu0
      %v2434 = vpop.f32.mrb[0].mxu0
      %v2435 = vadd.f32 0.0, %v2434
      %v2436 = vpop.f32.mrb[0].mxu0
      %2437 = vmatprep.mubr.bf16.mxu0 0
      %2438 = vmatmul.mubr.bf16.gmra.mrb[0].mxu0 %v2373
      %v2439 = vpop.f32.mrb[0].mxu0
      %v2440 = vadd.f32 0.0, %v2439
      %v2441 = vpop.f32.mrb[0].mxu0
      %v2442 = vpop.f32.mrb[0].mxu0
      %v2443 = vadd.f32 0.0, %v2442
      %v2444 = vpop.f32.mrb[0].mxu0
      %2445 = vmatprep.mubr.bf16.mxu0 0
      %2446 = vmatmul.mubr.bf16.gmra.mrb[0].mxu0 %v2376
      %v2447 = vpop.f32.mrb[0].mxu0
      %v2448 = vadd.f32 0.0, %v2447
      %v2449 = vpop.f32.mrb[0].mxu0
      %v2450 = vpop.f32.mrb[0].mxu0
      %v2451 = vadd.f32 0.0, %v2450
      %v2452 = vpop.f32.mrb[0].mxu0
      %2453 = vmatprep.mubr.bf16.mxu0 0
      %2454 = vmatmul.mubr.bf16.gmra.mrb[0].mxu0 %v2379
      %v2455 = vpop.f32.mrb[0].mxu0
      %v2456 = vadd.f32 0.0, %v2455
      %v2457 = vpop.f32.mrb[0].mxu0
      %v2458 = vpop.f32.mrb[0].mxu0
      %v2459 = vpop.f32.mrb[0].mxu0
      %2460 = vdwg.mxu0
      %v2461 = vadd.f32 %v2345, %v2416
      %v2462 = vadd.f32 %v2345, %v2419
      %v2463 = vadd.f32 %v2345, %v2424
      %v2464 = vadd.f32 %v2345, %v2427
      %v2465 = vadd.f32 %v2345, %v2432
      %v2466 = vadd.f32 %v2345, %v2435
      %v2467 = vadd.f32 %v2345, %v2440
      %v2468 = vadd.f32 %v2345, %v2443
      %v2469 = vadd.f32 %v2345, %v2448
      %v2470 = vadd.f32 %v2345, %v2451
      %v2471 = vadd.f32 %v2345, %v2456
      %s2472 = scalar_lea.vmem %s2, 160
      %v2473 = vld [vmem:[%s2472] sm:$0xf]
      %v2474 = vld [vmem:[%s2472 + $0x4] sm:$0xf]
      %v2475 = vld [vmem:[%s2472 + $0x8] sm:$0xf]
      %v2476 = vld [vmem:[%s2472 + $0xc] sm:$0xf]
      %v2477 = vshrl.u32 %v2335, 16
      %v2479 = vshll.u32 %v2335, 16
      %v2481 = vrot.slane %v2479, 1
      %v2482 = vor.u32 %v2477, %v2481
      %v2483 = vshll.u32 %v2336, 16
      %v2485 = vrot.slane %v2483, 1
      %v2486 = vsel %vm407, %v2482, %v2485
      %v2487 = vshrl.u32 %v2336, 16
      %v2489 = vor.u32 %v2487, %v2485
      %v2490 = vshll.u32 %v2337, 16
      %v2492 = vrot.slane %v2490, 1
      %v2493 = vsel %vm407, %v2489, %v2492
      %v2494 = vshrl.u32 %v2337, 16
      %v2496 = vor.u32 %v2494, %v2492
      %v2497 = vshll.u32 %v2338, 16
      %v2499 = vrot.slane %v2497, 1
      %v2500 = vsel %vm407, %v2496, %v2499
      %v2501 = vshrl.u32 %v2338, 16
      %v2503 = vor.u32 %v2501, %v2499
      %v2504 = vshll.u32 %v2339, 16
      %v2506 = vrot.slane %v2504, 1
      %v2507 = vsel %vm407, %v2503, %v2506
      %v2508 = vshrl.u32 %v2339, 16
      %v2510 = vor.u32 %v2508, %v2506
      %v2511 = vshll.u32 %v2340, 16
      %v2513 = vrot.slane %v2511, 1
      %v2514 = vsel %vm407, %v2510, %v2513
      %v2515 = vshrl.u32 %v2340, 16
      %v2517 = vor.u32 %v2515, %v2513
      %v2522 = vunpack.c.l.b16 %v2473
      %v2523 = vunpack.c.l.b16 %v2474
      %v2524 = vunpack.c.l.b16 %v2475
      %v2525 = vunpack.c.l.b16 %v2476
      %v2526 = vpack.c.b16 %v2523, %v2522
      %v2527 = vpack.c.b16 %v2525, %v2524
      %v2531 = vsel %vm1000, %v2486, 0
      %v2534 = vsel %vm1000, %v2493, 0
      %v2537 = vsel %vm1000, %v2500, 0
      %v2540 = vsel %vm1000, %v2507, 0
      %v2543 = vsel %vm1000, %v2514, 0
      %v2546 = vsel %vm1000, %v2517, 0
      %2548 = vmatprep.subr.bf16.mxu0 0
      %2549 = vmatpush1.bf16.msra.mxu0 %v2526
      %2550 = vmatprep.subr.bf16.mxu0 0
      %2551 = vmatpush1.bf16.msra.mxu0 %v2527
      %2552 = vmatprep.subr.bf16.mxu0 0
      %2553 = vmatpush1.bf16.msra.mxu0 0
      %2554 = vmatprep.subr.bf16.mxu0 0
      %2555 = vmatpush1.bf16.msra.mxu0 0
      %2556 = vmatprep.subr.bf16.mxu0 0
      %2557 = vmatpush1.bf16.msra.mxu0 0
      %2558 = vmatprep.subr.bf16.mxu0 0
      %2559 = vmatpush1.bf16.msra.mxu0 0
      %2560 = vmatprep.subr.bf16.mxu0 0
      %2561 = vmatpush1.bf16.msra.mxu0 0
      %2562 = vmatprep.subr.bf16.mxu0 0
      %2563 = vmatpush1.bf16.msra.mxu0 0
      %2564 = vmatprep.subr.bf16.mxu0 0
      %2565 = vmatpush1.bf16.msra.mxu0 0
      %2566 = vmatprep.subr.bf16.mxu0 0
      %2567 = vmatpush1.bf16.msra.mxu0 0
      %2568 = vmatprep.subr.bf16.mxu0 0
      %2569 = vmatpush1.bf16.msra.mxu0 0
      %2570 = vmatprep.subr.bf16.mxu0 0
      %2571 = vmatpush1.bf16.msra.mxu0 0
      %2572 = vmatprep.subr.bf16.mxu0 0
      %2573 = vmatpush1.bf16.msra.mxu0 0
      %2574 = vmatprep.subr.bf16.mxu0 0
      %2575 = vmatpush1.bf16.msra.mxu0 0
      %2576 = vmatprep.subr.bf16.mxu0 0
      %2577 = vmatpush1.bf16.msra.mxu0 0
      %2578 = vmatprep.subr.bf16.mxu0 0
      %2579 = vmatpush1.bf16.msra.mxu0 0
      %2580 = vmatprep.mubr.bf16.mxu0 0
      %2581 = vmatmul.mubr.bf16.gmra.mrb[0].mxu0 %v2531
      %v2582 = vpop.f32.mrb[0].mxu0
      %v2583 = vadd.f32 0.0, %v2582
      %v2584 = vpop.f32.mrb[0].mxu0
      %v2585 = vpop.f32.mrb[0].mxu0
      %v2586 = vadd.f32 0.0, %v2585
      %v2587 = vpop.f32.mrb[0].mxu0
      %2588 = vmatprep.mubr.bf16.mxu0 0
      %2589 = vmatmul.mubr.bf16.gmra.mrb[0].mxu0 %v2534
      %v2590 = vpop.f32.mrb[0].mxu0
      %v2591 = vadd.f32 0.0, %v2590
      %v2592 = vpop.f32.mrb[0].mxu0
      %v2593 = vpop.f32.mrb[0].mxu0
      %v2594 = vadd.f32 0.0, %v2593
      %v2595 = vpop.f32.mrb[0].mxu0
      %2596 = vmatprep.mubr.bf16.mxu0 0
      %2597 = vmatmul.mubr.bf16.gmra.mrb[0].mxu0 %v2537
      %v2598 = vpop.f32.mrb[0].mxu0
      %v2599 = vadd.f32 0.0, %v2598
      %v2600 = vpop.f32.mrb[0].mxu0
      %v2601 = vpop.f32.mrb[0].mxu0
      %v2602 = vadd.f32 0.0, %v2601
      %v2603 = vpop.f32.mrb[0].mxu0
      %2604 = vmatprep.mubr.bf16.mxu0 0
      %2605 = vmatmul.mubr.bf16.gmra.mrb[0].mxu0 %v2540
      %v2606 = vpop.f32.mrb[0].mxu0
      %v2607 = vadd.f32 0.0, %v2606
      %v2608 = vpop.f32.mrb[0].mxu0
      %v2609 = vpop.f32.mrb[0].mxu0
      %v2610 = vadd.f32 0.0, %v2609
      %v2611 = vpop.f32.mrb[0].mxu0
      %2612 = vmatprep.mubr.bf16.mxu0 0
      %2613 = vmatmul.mubr.bf16.gmra.mrb[0].mxu0 %v2543
      %v2614 = vpop.f32.mrb[0].mxu0
      %v2615 = vadd.f32 0.0, %v2614
      %v2616 = vpop.f32.mrb[0].mxu0
      %v2617 = vpop.f32.mrb[0].mxu0
      %v2618 = vadd.f32 0.0, %v2617
      %v2619 = vpop.f32.mrb[0].mxu0
      %2620 = vmatprep.mubr.bf16.mxu0 0
      %2621 = vmatmul.mubr.bf16.gmra.mrb[0].mxu0 %v2546
      %v2622 = vpop.f32.mrb[0].mxu0
      %v2623 = vadd.f32 0.0, %v2622
      %v2624 = vpop.f32.mrb[0].mxu0
      %v2625 = vpop.f32.mrb[0].mxu0
      %v2626 = vpop.f32.mrb[0].mxu0
      %2627 = vdwg.mxu0
      %v2628 = vadd.f32 %v2461, %v2583
      %v2629 = vadd.f32 %v2462, %v2586
      %v2630 = vadd.f32 %v2463, %v2591
      %v2631 = vadd.f32 %v2464, %v2594
      %v2632 = vadd.f32 %v2465, %v2599
      %v2633 = vadd.f32 %v2466, %v2602
      %v2634 = vadd.f32 %v2467, %v2607
      %v2635 = vadd.f32 %v2468, %v2610
      %v2636 = vadd.f32 %v2469, %v2615
      %v2637 = vadd.f32 %v2470, %v2618
      %v2638 = vadd.f32 %v2471, %v2623
      %s2639 = scalar_lea.vmem %s2, 176
      %v2640 = vld [vmem:[%s2639] sm:$0xf]
      %v2641 = vld [vmem:[%s2639 + $0x4] sm:$0xf]
      %v2642 = vld [vmem:[%s2639 + $0x8] sm:$0xf]
      %v2643 = vld [vmem:[%s2639 + $0xc] sm:$0xf]
      %v2650 = vrot.slane %v2335, 1
      %v2651 = vrot.slane %v2336, 1
      %v2652 = vsel %vm1322, %v2650, %v2651
      %v2653 = vrot.slane %v2337, 1
      %v2654 = vsel %vm1322, %v2651, %v2653
      %v2655 = vrot.slane %v2338, 1
      %v2656 = vsel %vm1322, %v2653, %v2655
      %v2657 = vrot.slane %v2339, 1
      %v2658 = vsel %vm1322, %v2655, %v2657
      %v2659 = vrot.slane %v2340, 1
      %v2660 = vsel %vm1322, %v2657, %v2659
      %v2665 = vunpack.c.l.b16 %v2640
      %v2666 = vunpack.c.l.b16 %v2641
      %v2667 = vunpack.c.l.b16 %v2642
      %v2668 = vunpack.c.l.b16 %v2643
      %v2669 = vpack.c.b16 %v2666, %v2665
      %v2670 = vpack.c.b16 %v2668, %v2667
      %v2674 = vsel %vm1000, %v2652, 0
      %v2677 = vsel %vm1000, %v2654, 0
      %v2680 = vsel %vm1000, %v2656, 0
      %v2683 = vsel %vm1000, %v2658, 0
      %v2686 = vsel %vm1000, %v2660, 0
      %v2689 = vsel %vm1000, %v2659, 0
      %2691 = vmatprep.subr.bf16.mxu0 0
      %2692 = vmatpush1.bf16.msra.mxu0 %v2669
      %2693 = vmatprep.subr.bf16.mxu0 0
      %2694 = vmatpush1.bf16.msra.mxu0 %v2670
      %2695 = vmatprep.subr.bf16.mxu0 0
      %2696 = vmatpush1.bf16.msra.mxu0 0
      %2697 = vmatprep.subr.bf16.mxu0 0
      %2698 = vmatpush1.bf16.msra.mxu0 0
      %2699 = vmatprep.subr.bf16.mxu0 0
      %2700 = vmatpush1.bf16.msra.mxu0 0
      %2701 = vmatprep.subr.bf16.mxu0 0
      %2702 = vmatpush1.bf16.msra.mxu0 0
      %2703 = vmatprep.subr.bf16.mxu0 0
      %2704 = vmatpush1.bf16.msra.mxu0 0
      %2705 = vmatprep.subr.bf16.mxu0 0
      %2706 = vmatpush1.bf16.msra.mxu0 0
      %2707 = vmatprep.subr.bf16.mxu0 0
      %2708 = vmatpush1.bf16.msra.mxu0 0
      %2709 = vmatprep.subr.bf16.mxu0 0
      %2710 = vmatpush1.bf16.msra.mxu0 0
      %2711 = vmatprep.subr.bf16.mxu0 0
      %2712 = vmatpush1.bf16.msra.mxu0 0
      %2713 = vmatprep.subr.bf16.mxu0 0
      %2714 = vmatpush1.bf16.msra.mxu0 0
      %2715 = vmatprep.subr.bf16.mxu0 0
      %2716 = vmatpush1.bf16.msra.mxu0 0
      %2717 = vmatprep.subr.bf16.mxu0 0
      %2718 = vmatpush1.bf16.msra.mxu0 0
      %2719 = vmatprep.subr.bf16.mxu0 0
      %2720 = vmatpush1.bf16.msra.mxu0 0
      %2721 = vmatprep.subr.bf16.mxu0 0
      %2722 = vmatpush1.bf16.msra.mxu0 0
      %2723 = vmatprep.mubr.bf16.mxu0 0
      %2724 = vmatmul.mubr.bf16.gmra.mrb[0].mxu0 %v2674
      %v2725 = vpop.f32.mrb[0].mxu0
      %v2726 = vadd.f32 0.0, %v2725
      %v2727 = vpop.f32.mrb[0].mxu0
      %v2728 = vpop.f32.mrb[0].mxu0
      %v2729 = vadd.f32 0.0, %v2728
      %v2730 = vpop.f32.mrb[0].mxu0
      %2731 = vmatprep.mubr.bf16.mxu0 0
      %2732 = vmatmul.mubr.bf16.gmra.mrb[0].mxu0 %v2677
      %v2733 = vpop.f32.mrb[0].mxu0
      %v2734 = vadd.f32 0.0, %v2733
      %v2735 = vpop.f32.mrb[0].mxu0
      %v2736 = vpop.f32.mrb[0].mxu0
      %v2737 = vadd.f32 0.0, %v2736
      %v2738 = vpop.f32.mrb[0].mxu0
      %2739 = vmatprep.mubr.bf16.mxu0 0
      %2740 = vmatmul.mubr.bf16.gmra.mrb[0].mxu0 %v2680
      %v2741 = vpop.f32.mrb[0].mxu0
      %v2742 = vadd.f32 0.0, %v2741
      %v2743 = vpop.f32.mrb[0].mxu0
      %v2744 = vpop.f32.mrb[0].mxu0
      %v2745 = vadd.f32 0.0, %v2744
      %v2746 = vpop.f32.mrb[0].mxu0
      %2747 = vmatprep.mubr.bf16.mxu0 0
      %2748 = vmatmul.mubr.bf16.gmra.mrb[0].mxu0 %v2683
      %v2749 = vpop.f32.mrb[0].mxu0
      %v2750 = vadd.f32 0.0, %v2749
      %v2751 = vpop.f32.mrb[0].mxu0
      %v2752 = vpop.f32.mrb[0].mxu0
      %v2753 = vadd.f32 0.0, %v2752
      %v2754 = vpop.f32.mrb[0].mxu0
      %2755 = vmatprep.mubr.bf16.mxu0 0
      %2756 = vmatmul.mubr.bf16.gmra.mrb[0].mxu0 %v2686
      %v2757 = vpop.f32.mrb[0].mxu0
      %v2758 = vadd.f32 0.0, %v2757
      %v2759 = vpop.f32.mrb[0].mxu0
      %v2760 = vpop.f32.mrb[0].mxu0
      %v2761 = vadd.f32 0.0, %v2760
      %v2762 = vpop.f32.mrb[0].mxu0
      %2763 = vmatprep.mubr.bf16.mxu0 0
      %2764 = vmatmul.mubr.bf16.gmra.mrb[0].mxu0 %v2689
      %v2765 = vpop.f32.mrb[0].mxu0
      %v2766 = vadd.f32 0.0, %v2765
      %v2767 = vpop.f32.mrb[0].mxu0
      %v2768 = vpop.f32.mrb[0].mxu0
      %v2769 = vpop.f32.mrb[0].mxu0
      %2770 = vdwg.mxu0
      %v2771 = vadd.f32 %v2628, %v2726
      %v2772 = vadd.f32 %v2629, %v2729
      %v2773 = vadd.f32 %v2630, %v2734
      %v2774 = vadd.f32 %v2631, %v2737
      %v2775 = vadd.f32 %v2632, %v2742
      %v2776 = vadd.f32 %v2633, %v2745
      %v2777 = vadd.f32 %v2634, %v2750
      %v2778 = vadd.f32 %v2635, %v2753
      %v2779 = vadd.f32 %v2636, %v2758
      %v2780 = vadd.f32 %v2637, %v2761
      %v2781 = vadd.f32 %v2638, %v2766
      %s2782 = scalar_lea.vmem %s2, 192
      %v2783 = vld [vmem:[%s2782] sm:$0xf]
      %v2784 = vld [vmem:[%s2782 + $0x4] sm:$0xf]
      %v2785 = vld [vmem:[%s2782 + $0x8] sm:$0xf]
      %v2786 = vld [vmem:[%s2782 + $0xc] sm:$0xf]
      %v2787 = vrot.slane %v2335, 4
      %v2788 = vrot.slane %v2336, 4
      %v2789 = vsel %vm1475, %v2787, %v2788
      %v2790 = vrot.slane %v2337, 4
      %v2791 = vsel %vm1475, %v2788, %v2790
      %v2792 = vrot.slane %v2338, 4
      %v2793 = vsel %vm1475, %v2790, %v2792
      %v2794 = vrot.slane %v2339, 4
      %v2795 = vsel %vm1475, %v2792, %v2794
      %v2796 = vrot.slane %v2340, 4
      %v2797 = vsel %vm1475, %v2794, %v2796
      %v2802 = vunpack.c.l.b16 %v2783
      %v2803 = vunpack.c.l.b16 %v2784
      %v2804 = vunpack.c.l.b16 %v2785
      %v2805 = vunpack.c.l.b16 %v2786
      %v2806 = vpack.c.b16 %v2803, %v2802
      %v2807 = vpack.c.b16 %v2805, %v2804
      %v2811 = vsel %vm1000, %v2789, 0
      %v2814 = vsel %vm1000, %v2791, 0
      %v2817 = vsel %vm1000, %v2793, 0
      %v2820 = vsel %vm1000, %v2795, 0
      %v2823 = vsel %vm1000, %v2797, 0
      %v2826 = vsel %vm1000, %v2796, 0
      %2828 = vmatprep.subr.bf16.mxu0 0
      %2829 = vmatpush1.bf16.msra.mxu0 %v2806
      %2830 = vmatprep.subr.bf16.mxu0 0
      %2831 = vmatpush1.bf16.msra.mxu0 %v2807
      %2832 = vmatprep.subr.bf16.mxu0 0
      %2833 = vmatpush1.bf16.msra.mxu0 0
      %2834 = vmatprep.subr.bf16.mxu0 0
      %2835 = vmatpush1.bf16.msra.mxu0 0
      %2836 = vmatprep.subr.bf16.mxu0 0
      %2837 = vmatpush1.bf16.msra.mxu0 0
      %2838 = vmatprep.subr.bf16.mxu0 0
      %2839 = vmatpush1.bf16.msra.mxu0 0
      %2840 = vmatprep.subr.bf16.mxu0 0
      %2841 = vmatpush1.bf16.msra.mxu0 0
      %2842 = vmatprep.subr.bf16.mxu0 0
      %2843 = vmatpush1.bf16.msra.mxu0 0
      %2844 = vmatprep.subr.bf16.mxu0 0
      %2845 = vmatpush1.bf16.msra.mxu0 0
      %2846 = vmatprep.subr.bf16.mxu0 0
      %2847 = vmatpush1.bf16.msra.mxu0 0
      %2848 = vmatprep.subr.bf16.mxu0 0
      %2849 = vmatpush1.bf16.msra.mxu0 0
      %2850 = vmatprep.subr.bf16.mxu0 0
      %2851 = vmatpush1.bf16.msra.mxu0 0
      %2852 = vmatprep.subr.bf16.mxu0 0
      %2853 = vmatpush1.bf16.msra.mxu0 0
      %2854 = vmatprep.subr.bf16.mxu0 0
      %2855 = vmatpush1.bf16.msra.mxu0 0
      %2856 = vmatprep.subr.bf16.mxu0 0
      %2857 = vmatpush1.bf16.msra.mxu0 0
      %2858 = vmatprep.subr.bf16.mxu0 0
      %2859 = vmatpush1.bf16.msra.mxu0 0
      %2860 = vmatprep.mubr.bf16.mxu0 0
      %2861 = vmatmul.mubr.bf16.gmra.mrb[0].mxu0 %v2811
      %v2862 = vpop.f32.mrb[0].mxu0
      %v2863 = vadd.f32 0.0, %v2862
      %v2864 = vpop.f32.mrb[0].mxu0
      %v2865 = vpop.f32.mrb[0].mxu0
      %v2866 = vadd.f32 0.0, %v2865
      %v2867 = vpop.f32.mrb[0].mxu0
      %2868 = vmatprep.mubr.bf16.mxu0 0
      %2869 = vmatmul.mubr.bf16.gmra.mrb[0].mxu0 %v2814
      %v2870 = vpop.f32.mrb[0].mxu0
      %v2871 = vadd.f32 0.0, %v2870
      %v2872 = vpop.f32.mrb[0].mxu0
      %v2873 = vpop.f32.mrb[0].mxu0
      %v2874 = vadd.f32 0.0, %v2873
      %v2875 = vpop.f32.mrb[0].mxu0
      %2876 = vmatprep.mubr.bf16.mxu0 0
      %2877 = vmatmul.mubr.bf16.gmra.mrb[0].mxu0 %v2817
      %v2878 = vpop.f32.mrb[0].mxu0
      %v2879 = vadd.f32 0.0, %v2878
      %v2880 = vpop.f32.mrb[0].mxu0
      %v2881 = vpop.f32.mrb[0].mxu0
      %v2882 = vadd.f32 0.0, %v2881
      %v2883 = vpop.f32.mrb[0].mxu0
      %2884 = vmatprep.mubr.bf16.mxu0 0
      %2885 = vmatmul.mubr.bf16.gmra.mrb[0].mxu0 %v2820
      %v2886 = vpop.f32.mrb[0].mxu0
      %v2887 = vadd.f32 0.0, %v2886
      %v2888 = vpop.f32.mrb[0].mxu0
      %v2889 = vpop.f32.mrb[0].mxu0
      %v2890 = vadd.f32 0.0, %v2889
      %v2891 = vpop.f32.mrb[0].mxu0
      %2892 = vmatprep.mubr.bf16.mxu0 0
      %2893 = vmatmul.mubr.bf16.gmra.mrb[0].mxu0 %v2823
      %v2894 = vpop.f32.mrb[0].mxu0
      %v2895 = vadd.f32 0.0, %v2894
      %v2896 = vpop.f32.mrb[0].mxu0
      %v2897 = vpop.f32.mrb[0].mxu0
      %v2898 = vadd.f32 0.0, %v2897
      %v2899 = vpop.f32.mrb[0].mxu0
      %2900 = vmatprep.mubr.bf16.mxu0 0
      %2901 = vmatmul.mubr.bf16.gmra.mrb[0].mxu0 %v2826
      %v2902 = vpop.f32.mrb[0].mxu0
      %v2903 = vadd.f32 0.0, %v2902
      %v2904 = vpop.f32.mrb[0].mxu0
      %v2905 = vpop.f32.mrb[0].mxu0
      %v2906 = vpop.f32.mrb[0].mxu0
      %2907 = vdwg.mxu0
      %v2908 = vadd.f32 %v2771, %v2863
      %v2909 = vadd.f32 %v2772, %v2866
      %v2910 = vadd.f32 %v2773, %v2871
      %v2911 = vadd.f32 %v2774, %v2874
      %v2912 = vadd.f32 %v2775, %v2879
      %v2913 = vadd.f32 %v2776, %v2882
      %v2914 = vadd.f32 %v2777, %v2887
      %v2915 = vadd.f32 %v2778, %v2890
      %v2916 = vadd.f32 %v2779, %v2895
      %v2917 = vadd.f32 %v2780, %v2898
      %v2918 = vadd.f32 %v2781, %v2903
      %s2919 = scalar_lea.vmem %s2, 208
      %v2920 = vld [vmem:[%s2919] sm:$0xf]
      %v2921 = vld [vmem:[%s2919 + $0x4] sm:$0xf]
      %v2922 = vld [vmem:[%s2919 + $0x8] sm:$0xf]
      %v2923 = vld [vmem:[%s2919 + $0xc] sm:$0xf]
      %v2924 = vrot.slane %v2477, 4
      %v2925 = vrot.slane %v2479, 5
      %v2926 = vor.u32 %v2924, %v2925
      %v2927 = vrot.slane %v2487, 4
      %v2928 = vrot.slane %v2483, 5
      %v2929 = vor.u32 %v2927, %v2928
      %v2930 = vsel %vm1628, %v2926, %v2929
      %v2931 = vrot.slane %v2494, 4
      %v2932 = vrot.slane %v2490, 5
      %v2933 = vor.u32 %v2931, %v2932
      %v2934 = vsel %vm1628, %v2929, %v2933
      %v2935 = vrot.slane %v2501, 4
      %v2936 = vrot.slane %v2497, 5
      %v2937 = vor.u32 %v2935, %v2936
      %v2938 = vsel %vm1628, %v2933, %v2937
      %v2939 = vrot.slane %v2508, 4
      %v2940 = vrot.slane %v2504, 5
      %v2941 = vor.u32 %v2939, %v2940
      %v2942 = vsel %vm1628, %v2937, %v2941
      %v2943 = vrot.slane %v2515, 4
      %v2944 = vrot.slane %v2511, 5
      %v2945 = vor.u32 %v2943, %v2944
      %v2946 = vsel %vm1628, %v2941, %v2945
      %v2951 = vunpack.c.l.b16 %v2920
      %v2952 = vunpack.c.l.b16 %v2921
      %v2953 = vunpack.c.l.b16 %v2922
      %v2954 = vunpack.c.l.b16 %v2923
      %v2955 = vpack.c.b16 %v2952, %v2951
      %v2956 = vpack.c.b16 %v2954, %v2953
      %v2960 = vsel %vm1000, %v2930, 0
      %v2963 = vsel %vm1000, %v2934, 0
      %v2966 = vsel %vm1000, %v2938, 0
      %v2969 = vsel %vm1000, %v2942, 0
      %v2972 = vsel %vm1000, %v2946, 0
      %v2975 = vsel %vm1000, %v2945, 0
      %2977 = vmatprep.subr.bf16.mxu0 0
      %2978 = vmatpush1.bf16.msra.mxu0 %v2955
      %2979 = vmatprep.subr.bf16.mxu0 0
      %2980 = vmatpush1.bf16.msra.mxu0 %v2956
      %2981 = vmatprep.subr.bf16.mxu0 0
      %2982 = vmatpush1.bf16.msra.mxu0 0
      %2983 = vmatprep.subr.bf16.mxu0 0
      %2984 = vmatpush1.bf16.msra.mxu0 0
      %2985 = vmatprep.subr.bf16.mxu0 0
      %2986 = vmatpush1.bf16.msra.mxu0 0
      %2987 = vmatprep.subr.bf16.mxu0 0
      %2988 = vmatpush1.bf16.msra.mxu0 0
      %2989 = vmatprep.subr.bf16.mxu0 0
      %2990 = vmatpush1.bf16.msra.mxu0 0
      %2991 = vmatprep.subr.bf16.mxu0 0
      %2992 = vmatpush1.bf16.msra.mxu0 0
      %2993 = vmatprep.subr.bf16.mxu0 0
      %2994 = vmatpush1.bf16.msra.mxu0 0
      %2995 = vmatprep.subr.bf16.mxu0 0
      %2996 = vmatpush1.bf16.msra.mxu0 0
      %2997 = vmatprep.subr.bf16.mxu0 0
      %2998 = vmatpush1.bf16.msra.mxu0 0
      %2999 = vmatprep.subr.bf16.mxu0 0
      %3000 = vmatpush1.bf16.msra.mxu0 0
      %3001 = vmatprep.subr.bf16.mxu0 0
      %3002 = vmatpush1.bf16.msra.mxu0 0
      %3003 = vmatprep.subr.bf16.mxu0 0
      %3004 = vmatpush1.bf16.msra.mxu0 0
      %3005 = vmatprep.subr.bf16.mxu0 0
      %3006 = vmatpush1.bf16.msra.mxu0 0
      %3007 = vmatprep.subr.bf16.mxu0 0
      %3008 = vmatpush1.bf16.msra.mxu0 0
      %3009 = vmatprep.mubr.bf16.mxu0 0
      %3010 = vmatmul.mubr.bf16.gmra.mrb[0].mxu0 %v2960
      %v3011 = vpop.f32.mrb[0].mxu0
      %v3012 = vadd.f32 0.0, %v3011
      %v3013 = vpop.f32.mrb[0].mxu0
      %v3014 = vpop.f32.mrb[0].mxu0
      %v3015 = vadd.f32 0.0, %v3014
      %v3016 = vpop.f32.mrb[0].mxu0
      %3017 = vmatprep.mubr.bf16.mxu0 0
      %3018 = vmatmul.mubr.bf16.gmra.mrb[0].mxu0 %v2963
      %v3019 = vpop.f32.mrb[0].mxu0
      %v3020 = vadd.f32 0.0, %v3019
      %v3021 = vpop.f32.mrb[0].mxu0
      %v3022 = vpop.f32.mrb[0].mxu0
      %v3023 = vadd.f32 0.0, %v3022
      %v3024 = vpop.f32.mrb[0].mxu0
      %3025 = vmatprep.mubr.bf16.mxu0 0
      %3026 = vmatmul.mubr.bf16.gmra.mrb[0].mxu0 %v2966
      %v3027 = vpop.f32.mrb[0].mxu0
      %v3028 = vadd.f32 0.0, %v3027
      %v3029 = vpop.f32.mrb[0].mxu0
      %v3030 = vpop.f32.mrb[0].mxu0
      %v3031 = vadd.f32 0.0, %v3030
      %v3032 = vpop.f32.mrb[0].mxu0
      %3033 = vmatprep.mubr.bf16.mxu0 0
      %3034 = vmatmul.mubr.bf16.gmra.mrb[0].mxu0 %v2969
      %v3035 = vpop.f32.mrb[0].mxu0
      %v3036 = vadd.f32 0.0, %v3035
      %v3037 = vpop.f32.mrb[0].mxu0
      %v3038 = vpop.f32.mrb[0].mxu0
      %v3039 = vadd.f32 0.0, %v3038
      %v3040 = vpop.f32.mrb[0].mxu0
      %3041 = vmatprep.mubr.bf16.mxu0 0
      %3042 = vmatmul.mubr.bf16.gmra.mrb[0].mxu0 %v2972
      %v3043 = vpop.f32.mrb[0].mxu0
      %v3044 = vadd.f32 0.0, %v3043
      %v3045 = vpop.f32.mrb[0].mxu0
      %v3046 = vpop.f32.mrb[0].mxu0
      %v3047 = vadd.f32 0.0, %v3046
      %v3048 = vpop.f32.mrb[0].mxu0
      %3049 = vmatprep.mubr.bf16.mxu0 0
      %3050 = vmatmul.mubr.bf16.gmra.mrb[0].mxu0 %v2975
      %v3051 = vpop.f32.mrb[0].mxu0
      %v3052 = vadd.f32 0.0, %v3051
      %v3053 = vpop.f32.mrb[0].mxu0
      %v3054 = vpop.f32.mrb[0].mxu0
      %v3055 = vpop.f32.mrb[0].mxu0
      %3056 = vdwg.mxu0
      %v3057 = vadd.f32 %v2908, %v3012
      %v3058 = vadd.f32 %v2909, %v3015
      %v3059 = vadd.f32 %v2910, %v3020
      %v3060 = vadd.f32 %v2911, %v3023
      %v3061 = vadd.f32 %v2912, %v3028
      %v3062 = vadd.f32 %v2913, %v3031
      %v3063 = vadd.f32 %v2914, %v3036
      %v3064 = vadd.f32 %v2915, %v3039
      %v3065 = vadd.f32 %v2916, %v3044
      %v3066 = vadd.f32 %v2917, %v3047
      %v3067 = vadd.f32 %v2918, %v3052
      %s3068 = scalar_lea.vmem %s2, 224
      %v3069 = vld [vmem:[%s3068] sm:$0xf]
      %v3070 = vld [vmem:[%s3068 + $0x4] sm:$0xf]
      %v3071 = vld [vmem:[%s3068 + $0x8] sm:$0xf]
      %v3072 = vld [vmem:[%s3068 + $0xc] sm:$0xf]
      %v3073 = vrot.slane %v2335, 5
      %v3074 = vrot.slane %v2336, 5
      %v3075 = vsel %vm1795, %v3073, %v3074
      %v3076 = vrot.slane %v2337, 5
      %v3077 = vsel %vm1795, %v3074, %v3076
      %v3078 = vrot.slane %v2338, 5
      %v3079 = vsel %vm1795, %v3076, %v3078
      %v3080 = vrot.slane %v2339, 5
      %v3081 = vsel %vm1795, %v3078, %v3080
      %v3082 = vrot.slane %v2340, 5
      %v3083 = vsel %vm1795, %v3080, %v3082
      %v3088 = vunpack.c.l.b16 %v3069
      %v3089 = vunpack.c.l.b16 %v3070
      %v3090 = vunpack.c.l.b16 %v3071
      %v3091 = vunpack.c.l.b16 %v3072
      %v3092 = vpack.c.b16 %v3089, %v3088
      %v3093 = vpack.c.b16 %v3091, %v3090
      %v3097 = vsel %vm1000, %v3075, 0
      %v3100 = vsel %vm1000, %v3077, 0
      %v3103 = vsel %vm1000, %v3079, 0
      %v3106 = vsel %vm1000, %v3081, 0
      %v3109 = vsel %vm1000, %v3083, 0
      %v3112 = vsel %vm1000, %v3082, 0
      %3114 = vmatprep.subr.bf16.mxu0 0
      %3115 = vmatpush1.bf16.msra.mxu0 %v3092
      %3116 = vmatprep.subr.bf16.mxu0 0
      %3117 = vmatpush1.bf16.msra.mxu0 %v3093
      %3118 = vmatprep.subr.bf16.mxu0 0
      %3119 = vmatpush1.bf16.msra.mxu0 0
      %3120 = vmatprep.subr.bf16.mxu0 0
      %3121 = vmatpush1.bf16.msra.mxu0 0
      %3122 = vmatprep.subr.bf16.mxu0 0
      %3123 = vmatpush1.bf16.msra.mxu0 0
      %3124 = vmatprep.subr.bf16.mxu0 0
      %3125 = vmatpush1.bf16.msra.mxu0 0
      %3126 = vmatprep.subr.bf16.mxu0 0
      %3127 = vmatpush1.bf16.msra.mxu0 0
      %3128 = vmatprep.subr.bf16.mxu0 0
      %3129 = vmatpush1.bf16.msra.mxu0 0
      %3130 = vmatprep.subr.bf16.mxu0 0
      %3131 = vmatpush1.bf16.msra.mxu0 0
      %3132 = vmatprep.subr.bf16.mxu0 0
      %3133 = vmatpush1.bf16.msra.mxu0 0
      %3134 = vmatprep.subr.bf16.mxu0 0
      %3135 = vmatpush1.bf16.msra.mxu0 0
      %3136 = vmatprep.subr.bf16.mxu0 0
      %3137 = vmatpush1.bf16.msra.mxu0 0
      %3138 = vmatprep.subr.bf16.mxu0 0
      %3139 = vmatpush1.bf16.msra.mxu0 0
      %3140 = vmatprep.subr.bf16.mxu0 0
      %3141 = vmatpush1.bf16.msra.mxu0 0
      %3142 = vmatprep.subr.bf16.mxu0 0
      %3143 = vmatpush1.bf16.msra.mxu0 0
      %3144 = vmatprep.subr.bf16.mxu0 0
      %3145 = vmatpush1.bf16.msra.mxu0 0
      %3146 = vmatprep.mubr.bf16.mxu0 0
      %3147 = vmatmul.mubr.bf16.gmra.mrb[0].mxu0 %v3097
      %v3148 = vpop.f32.mrb[0].mxu0
      %v3149 = vadd.f32 0.0, %v3148
      %v3150 = vpop.f32.mrb[0].mxu0
      %v3151 = vpop.f32.mrb[0].mxu0
      %v3152 = vadd.f32 0.0, %v3151
      %v3153 = vpop.f32.mrb[0].mxu0
      %3154 = vmatprep.mubr.bf16.mxu0 0
      %3155 = vmatmul.mubr.bf16.gmra.mrb[0].mxu0 %v3100
      %v3156 = vpop.f32.mrb[0].mxu0
      %v3157 = vadd.f32 0.0, %v3156
      %v3158 = vpop.f32.mrb[0].mxu0
      %v3159 = vpop.f32.mrb[0].mxu0
      %v3160 = vadd.f32 0.0, %v3159
      %v3161 = vpop.f32.mrb[0].mxu0
      %3162 = vmatprep.mubr.bf16.mxu0 0
      %3163 = vmatmul.mubr.bf16.gmra.mrb[0].mxu0 %v3103
      %v3164 = vpop.f32.mrb[0].mxu0
      %v3165 = vadd.f32 0.0, %v3164
      %v3166 = vpop.f32.mrb[0].mxu0
      %v3167 = vpop.f32.mrb[0].mxu0
      %v3168 = vadd.f32 0.0, %v3167
      %v3169 = vpop.f32.mrb[0].mxu0
      %3170 = vmatprep.mubr.bf16.mxu0 0
      %3171 = vmatmul.mubr.bf16.gmra.mrb[0].mxu0 %v3106
      %v3172 = vpop.f32.mrb[0].mxu0
      %v3173 = vadd.f32 0.0, %v3172
      %v3174 = vpop.f32.mrb[0].mxu0
      %v3175 = vpop.f32.mrb[0].mxu0
      %v3176 = vadd.f32 0.0, %v3175
      %v3177 = vpop.f32.mrb[0].mxu0
      %3178 = vmatprep.mubr.bf16.mxu0 0
      %3179 = vmatmul.mubr.bf16.gmra.mrb[0].mxu0 %v3109
      %v3180 = vpop.f32.mrb[0].mxu0
      %v3181 = vadd.f32 0.0, %v3180
      %v3182 = vpop.f32.mrb[0].mxu0
      %v3183 = vpop.f32.mrb[0].mxu0
      %v3184 = vadd.f32 0.0, %v3183
      %v3185 = vpop.f32.mrb[0].mxu0
      %3186 = vmatprep.mubr.bf16.mxu0 0
      %3187 = vmatmul.mubr.bf16.gmra.mrb[0].mxu0 %v3112
      %v3188 = vpop.f32.mrb[0].mxu0
      %v3189 = vadd.f32 0.0, %v3188
      %v3190 = vpop.f32.mrb[0].mxu0
      %v3191 = vpop.f32.mrb[0].mxu0
      %v3192 = vpop.f32.mrb[0].mxu0
      %3193 = vdwg.mxu0
      %v3194 = vadd.f32 %v3057, %v3149
      %v3195 = vadd.f32 %v3058, %v3152
      %v3196 = vadd.f32 %v3059, %v3157
      %v3197 = vadd.f32 %v3060, %v3160
      %v3198 = vadd.f32 %v3061, %v3165
      %v3199 = vadd.f32 %v3062, %v3168
      %v3200 = vadd.f32 %v3063, %v3173
      %v3201 = vadd.f32 %v3064, %v3176
      %v3202 = vadd.f32 %v3065, %v3181
      %v3203 = vadd.f32 %v3066, %v3184
      %v3204 = vadd.f32 %v3067, %v3189
      %s3205 = scalar_lea.vmem %s2, 240
      %v3206 = vld [vmem:[%s3205] sm:$0xf]
      %v3207 = vld [vmem:[%s3205 + $0x4] sm:$0xf]
      %v3208 = vld [vmem:[%s3205 + $0x8] sm:$0xf]
      %v3209 = vld [vmem:[%s3205 + $0xc] sm:$0xf]
      %v3214 = vunpack.c.l.b16 %v3206
      %v3215 = vunpack.c.l.b16 %v3207
      %v3216 = vunpack.c.l.b16 %v3208
      %v3217 = vunpack.c.l.b16 %v3209
      %v3218 = vpack.c.b16 %v3215, %v3214
      %v3219 = vpack.c.b16 %v3217, %v3216
      %v3223 = vsel %vm1000, %v2341, 0
      %3225 = vmatprep.subr.bf16.mxu0 0
      %3226 = vmatpush1.bf16.msra.mxu0 %v3218
      %3227 = vmatprep.subr.bf16.mxu0 0
      %3228 = vmatpush1.bf16.msra.mxu0 %v3219
      %3229 = vmatprep.subr.bf16.mxu0 0
      %3230 = vmatpush1.bf16.msra.mxu0 0
      %3231 = vmatprep.subr.bf16.mxu0 0
      %3232 = vmatpush1.bf16.msra.mxu0 0
      %3233 = vmatprep.subr.bf16.mxu0 0
      %3234 = vmatpush1.bf16.msra.mxu0 0
      %3235 = vmatprep.subr.bf16.mxu0 0
      %3236 = vmatpush1.bf16.msra.mxu0 0
      %3237 = vmatprep.subr.bf16.mxu0 0
      %3238 = vmatpush1.bf16.msra.mxu0 0
      %3239 = vmatprep.subr.bf16.mxu0 0
      %3240 = vmatpush1.bf16.msra.mxu0 0
      %3241 = vmatprep.subr.bf16.mxu0 0
      %3242 = vmatpush1.bf16.msra.mxu0 0
      %3243 = vmatprep.subr.bf16.mxu0 0
      %3244 = vmatpush1.bf16.msra.mxu0 0
      %3245 = vmatprep.subr.bf16.mxu0 0
      %3246 = vmatpush1.bf16.msra.mxu0 0
      %3247 = vmatprep.subr.bf16.mxu0 0
      %3248 = vmatpush1.bf16.msra.mxu0 0
      %3249 = vmatprep.subr.bf16.mxu0 0
      %3250 = vmatpush1.bf16.msra.mxu0 0
      %3251 = vmatprep.subr.bf16.mxu0 0
      %3252 = vmatpush1.bf16.msra.mxu0 0
      %3253 = vmatprep.subr.bf16.mxu0 0
      %3254 = vmatpush1.bf16.msra.mxu0 0
      %3255 = vmatprep.subr.bf16.mxu0 0
      %3256 = vmatpush1.bf16.msra.mxu0 0
      %3257 = vmatprep.mubr.bf16.mxu0 0
      %3258 = vmatmul.mubr.bf16.gmra.mrb[0].mxu0 %v2367
      %v3259 = vpop.f32.mrb[0].mxu0
      %v3260 = vadd.f32 0.0, %v3259
      %v3261 = vpop.f32.mrb[0].mxu0
      %v3262 = vpop.f32.mrb[0].mxu0
      %v3263 = vadd.f32 0.0, %v3262
      %v3264 = vpop.f32.mrb[0].mxu0
      %3265 = vmatprep.mubr.bf16.mxu0 0
      %3266 = vmatmul.mubr.bf16.gmra.mrb[0].mxu0 %v2370
      %v3267 = vpop.f32.mrb[0].mxu0
      %v3268 = vadd.f32 0.0, %v3267
      %v3269 = vpop.f32.mrb[0].mxu0
      %v3270 = vpop.f32.mrb[0].mxu0
      %v3271 = vadd.f32 0.0, %v3270
      %v3272 = vpop.f32.mrb[0].mxu0
      %3273 = vmatprep.mubr.bf16.mxu0 0
      %3274 = vmatmul.mubr.bf16.gmra.mrb[0].mxu0 %v2373
      %v3275 = vpop.f32.mrb[0].mxu0
      %v3276 = vadd.f32 0.0, %v3275
      %v3277 = vpop.f32.mrb[0].mxu0
      %v3278 = vpop.f32.mrb[0].mxu0
      %v3279 = vadd.f32 0.0, %v3278
      %v3280 = vpop.f32.mrb[0].mxu0
      %3281 = vmatprep.mubr.bf16.mxu0 0
      %3282 = vmatmul.mubr.bf16.gmra.mrb[0].mxu0 %v2376
      %v3283 = vpop.f32.mrb[0].mxu0
      %v3284 = vadd.f32 0.0, %v3283
      %v3285 = vpop.f32.mrb[0].mxu0
      %v3286 = vpop.f32.mrb[0].mxu0
      %v3287 = vadd.f32 0.0, %v3286
      %v3288 = vpop.f32.mrb[0].mxu0
      %3289 = vmatprep.mubr.bf16.mxu0 0
      %3290 = vmatmul.mubr.bf16.gmra.mrb[0].mxu0 %v2379
      %v3291 = vpop.f32.mrb[0].mxu0
      %v3292 = vadd.f32 0.0, %v3291
      %v3293 = vpop.f32.mrb[0].mxu0
      %v3294 = vpop.f32.mrb[0].mxu0
      %v3295 = vadd.f32 0.0, %v3294
      %v3296 = vpop.f32.mrb[0].mxu0
      %3297 = vmatprep.mubr.bf16.mxu0 0
      %3298 = vmatmul.mubr.bf16.gmra.mrb[0].mxu0 %v3223
      %v3299 = vpop.f32.mrb[0].mxu0
      %v3300 = vadd.f32 0.0, %v3299
      %v3301 = vpop.f32.mrb[0].mxu0
      %v3302 = vpop.f32.mrb[0].mxu0
      %v3303 = vpop.f32.mrb[0].mxu0
      %3304 = vdwg.mxu0
      %v3305 = vadd.f32 %v3194, %v3260
      %v3306 = vadd.f32 %v3195, %v3263
      %v3307 = vadd.f32 %v3196, %v3268
      %v3308 = vadd.f32 %v3197, %v3271
      %v3309 = vadd.f32 %v3198, %v3276
      %v3310 = vadd.f32 %v3199, %v3279
      %v3311 = vadd.f32 %v3200, %v3284
      %v3312 = vadd.f32 %v3201, %v3287
      %v3313 = vadd.f32 %v3202, %v3292
      %v3314 = vadd.f32 %v3203, %v3295
      %v3315 = vadd.f32 %v3204, %v3300
      %s3316 = scalar_lea.vmem %s2, 256
      %v3317 = vld [vmem:[%s3316] sm:$0xf]
      %v3318 = vld [vmem:[%s3316 + $0x4] sm:$0xf]
      %v3319 = vld [vmem:[%s3316 + $0x8] sm:$0xf]
      %v3320 = vld [vmem:[%s3316 + $0xc] sm:$0xf]
      %v3321 = vshll.u32 %v2341, 16
      %v3323 = vrot.slane %v3321, 1
      %v3324 = vsel %vm407, %v2517, %v3323
      %v3325 = vshrl.u32 %v2341, 16
      %v3327 = vor.u32 %v3325, %v3323
      %v3332 = vunpack.c.l.b16 %v3317
      %v3333 = vunpack.c.l.b16 %v3318
      %v3334 = vunpack.c.l.b16 %v3319
      %v3335 = vunpack.c.l.b16 %v3320
      %v3336 = vpack.c.b16 %v3333, %v3332
      %v3337 = vpack.c.b16 %v3335, %v3334
      %v3341 = vsel %vm1000, %v3324, 0
      %v3344 = vsel %vm1000, %v3327, 0
      %3346 = vmatprep.subr.bf16.mxu0 0
      %3347 = vmatpush1.bf16.msra.mxu0 %v3336
      %3348 = vmatprep.subr.bf16.mxu0 0
      %3349 = vmatpush1.bf16.msra.mxu0 %v3337
      %3350 = vmatprep.subr.bf16.mxu0 0
      %3351 = vmatpush1.bf16.msra.mxu0 0
      %3352 = vmatprep.subr.bf16.mxu0 0
      %3353 = vmatpush1.bf16.msra.mxu0 0
      %3354 = vmatprep.subr.bf16.mxu0 0
      %3355 = vmatpush1.bf16.msra.mxu0 0
      %3356 = vmatprep.subr.bf16.mxu0 0
      %3357 = vmatpush1.bf16.msra.mxu0 0
      %3358 = vmatprep.subr.bf16.mxu0 0
      %3359 = vmatpush1.bf16.msra.mxu0 0
      %3360 = vmatprep.subr.bf16.mxu0 0
      %3361 = vmatpush1.bf16.msra.mxu0 0
      %3362 = vmatprep.subr.bf16.mxu0 0
      %3363 = vmatpush1.bf16.msra.mxu0 0
      %3364 = vmatprep.subr.bf16.mxu0 0
      %3365 = vmatpush1.bf16.msra.mxu0 0
      %3366 = vmatprep.subr.bf16.mxu0 0
      %3367 = vmatpush1.bf16.msra.mxu0 0
      %3368 = vmatprep.subr.bf16.mxu0 0
      %3369 = vmatpush1.bf16.msra.mxu0 0
      %3370 = vmatprep.subr.bf16.mxu0 0
      %3371 = vmatpush1.bf16.msra.mxu0 0
      %3372 = vmatprep.subr.bf16.mxu0 0
      %3373 = vmatpush1.bf16.msra.mxu0 0
      %3374 = vmatprep.subr.bf16.mxu0 0
      %3375 = vmatpush1.bf16.msra.mxu0 0
      %3376 = vmatprep.subr.bf16.mxu0 0
      %3377 = vmatpush1.bf16.msra.mxu0 0
      %3378 = vmatprep.mubr.bf16.mxu0 0
      %3379 = vmatmul.mubr.bf16.gmra.mrb[0].mxu0 %v2534
      %v3380 = vpop.f32.mrb[0].mxu0
      %v3381 = vadd.f32 0.0, %v3380
      %v3382 = vpop.f32.mrb[0].mxu0
      %v3383 = vpop.f32.mrb[0].mxu0
      %v3384 = vadd.f32 0.0, %v3383
      %v3385 = vpop.f32.mrb[0].mxu0
      %3386 = vmatprep.mubr.bf16.mxu0 0
      %3387 = vmatmul.mubr.bf16.gmra.mrb[0].mxu0 %v2537
      %v3388 = vpop.f32.mrb[0].mxu0
      %v3389 = vadd.f32 0.0, %v3388
      %v3390 = vpop.f32.mrb[0].mxu0
      %v3391 = vpop.f32.mrb[0].mxu0
      %v3392 = vadd.f32 0.0, %v3391
      %v3393 = vpop.f32.mrb[0].mxu0
      %3394 = vmatprep.mubr.bf16.mxu0 0
      %3395 = vmatmul.mubr.bf16.gmra.mrb[0].mxu0 %v2540
      %v3396 = vpop.f32.mrb[0].mxu0
      %v3397 = vadd.f32 0.0, %v3396
      %v3398 = vpop.f32.mrb[0].mxu0
      %v3399 = vpop.f32.mrb[0].mxu0
      %v3400 = vadd.f32 0.0, %v3399
      %v3401 = vpop.f32.mrb[0].mxu0
      %3402 = vmatprep.mubr.bf16.mxu0 0
      %3403 = vmatmul.mubr.bf16.gmra.mrb[0].mxu0 %v2543
      %v3404 = vpop.f32.mrb[0].mxu0
      %v3405 = vadd.f32 0.0, %v3404
      %v3406 = vpop.f32.mrb[0].mxu0
      %v3407 = vpop.f32.mrb[0].mxu0
      %v3408 = vadd.f32 0.0, %v3407
      %v3409 = vpop.f32.mrb[0].mxu0
      %3410 = vmatprep.mubr.bf16.mxu0 0
      %3411 = vmatmul.mubr.bf16.gmra.mrb[0].mxu0 %v3341
      %v3412 = vpop.f32.mrb[0].mxu0
      %v3413 = vadd.f32 0.0, %v3412
      %v3414 = vpop.f32.mrb[0].mxu0
      %v3415 = vpop.f32.mrb[0].mxu0
      %v3416 = vadd.f32 0.0, %v3415
      %v3417 = vpop.f32.mrb[0].mxu0
      %3418 = vmatprep.mubr.bf16.mxu0 0
      %3419 = vmatmul.mubr.bf16.gmra.mrb[0].mxu0 %v3344
      %v3420 = vpop.f32.mrb[0].mxu0
      %v3421 = vadd.f32 0.0, %v3420
      %v3422 = vpop.f32.mrb[0].mxu0
      %v3423 = vpop.f32.mrb[0].mxu0
      %v3424 = vpop.f32.mrb[0].mxu0
      %3425 = vdwg.mxu0
      %v3426 = vadd.f32 %v3305, %v3381
      %v3427 = vadd.f32 %v3306, %v3384
      %v3428 = vadd.f32 %v3307, %v3389
      %v3429 = vadd.f32 %v3308, %v3392
      %v3430 = vadd.f32 %v3309, %v3397
      %v3431 = vadd.f32 %v3310, %v3400
      %v3432 = vadd.f32 %v3311, %v3405
      %v3433 = vadd.f32 %v3312, %v3408
      %v3434 = vadd.f32 %v3313, %v3413
      %v3435 = vadd.f32 %v3314, %v3416
      %v3436 = vadd.f32 %v3315, %v3421
      %s3437 = scalar_lea.vmem %s2, 272
      %v3438 = vld [vmem:[%s3437] sm:$0xf]
      %v3439 = vld [vmem:[%s3437 + $0x4] sm:$0xf]
      %v3440 = vld [vmem:[%s3437 + $0x8] sm:$0xf]
      %v3441 = vld [vmem:[%s3437 + $0xc] sm:$0xf]
      %v3443 = vrot.slane %v2341, 1
      %v3444 = vsel %vm1322, %v2659, %v3443
      %v3449 = vunpack.c.l.b16 %v3438
      %v3450 = vunpack.c.l.b16 %v3439
      %v3451 = vunpack.c.l.b16 %v3440
      %v3452 = vunpack.c.l.b16 %v3441
      %v3453 = vpack.c.b16 %v3450, %v3449
      %v3454 = vpack.c.b16 %v3452, %v3451
      %v3458 = vsel %vm1000, %v3444, 0
      %v3461 = vsel %vm1000, %v3443, 0
      %3463 = vmatprep.subr.bf16.mxu0 0
      %3464 = vmatpush1.bf16.msra.mxu0 %v3453
      %3465 = vmatprep.subr.bf16.mxu0 0
      %3466 = vmatpush1.bf16.msra.mxu0 %v3454
      %3467 = vmatprep.subr.bf16.mxu0 0
      %3468 = vmatpush1.bf16.msra.mxu0 0
      %3469 = vmatprep.subr.bf16.mxu0 0
      %3470 = vmatpush1.bf16.msra.mxu0 0
      %3471 = vmatprep.subr.bf16.mxu0 0
      %3472 = vmatpush1.bf16.msra.mxu0 0
      %3473 = vmatprep.subr.bf16.mxu0 0
      %3474 = vmatpush1.bf16.msra.mxu0 0
      %3475 = vmatprep.subr.bf16.mxu0 0
      %3476 = vmatpush1.bf16.msra.mxu0 0
      %3477 = vmatprep.subr.bf16.mxu0 0
      %3478 = vmatpush1.bf16.msra.mxu0 0
      %3479 = vmatprep.subr.bf16.mxu0 0
      %3480 = vmatpush1.bf16.msra.mxu0 0
      %3481 = vmatprep.subr.bf16.mxu0 0
      %3482 = vmatpush1.bf16.msra.mxu0 0
      %3483 = vmatprep.subr.bf16.mxu0 0
      %3484 = vmatpush1.bf16.msra.mxu0 0
      %3485 = vmatprep.subr.bf16.mxu0 0
      %3486 = vmatpush1.bf16.msra.mxu0 0
      %3487 = vmatprep.subr.bf16.mxu0 0
      %3488 = vmatpush1.bf16.msra.mxu0 0
      %3489 = vmatprep.subr.bf16.mxu0 0
      %3490 = vmatpush1.bf16.msra.mxu0 0
      %3491 = vmatprep.subr.bf16.mxu0 0
      %3492 = vmatpush1.bf16.msra.mxu0 0
      %3493 = vmatprep.subr.bf16.mxu0 0
      %3494 = vmatpush1.bf16.msra.mxu0 0
      %3495 = vmatprep.mubr.bf16.mxu0 0
      %3496 = vmatmul.mubr.bf16.gmra.mrb[0].mxu0 %v2677
      %v3497 = vpop.f32.mrb[0].mxu0
      %v3498 = vadd.f32 0.0, %v3497
      %v3499 = vpop.f32.mrb[0].mxu0
      %v3500 = vpop.f32.mrb[0].mxu0
      %v3501 = vadd.f32 0.0, %v3500
      %v3502 = vpop.f32.mrb[0].mxu0
      %3503 = vmatprep.mubr.bf16.mxu0 0
      %3504 = vmatmul.mubr.bf16.gmra.mrb[0].mxu0 %v2680
      %v3505 = vpop.f32.mrb[0].mxu0
      %v3506 = vadd.f32 0.0, %v3505
      %v3507 = vpop.f32.mrb[0].mxu0
      %v3508 = vpop.f32.mrb[0].mxu0
      %v3509 = vadd.f32 0.0, %v3508
      %v3510 = vpop.f32.mrb[0].mxu0
      %3511 = vmatprep.mubr.bf16.mxu0 0
      %3512 = vmatmul.mubr.bf16.gmra.mrb[0].mxu0 %v2683
      %v3513 = vpop.f32.mrb[0].mxu0
      %v3514 = vadd.f32 0.0, %v3513
      %v3515 = vpop.f32.mrb[0].mxu0
      %v3516 = vpop.f32.mrb[0].mxu0
      %v3517 = vadd.f32 0.0, %v3516
      %v3518 = vpop.f32.mrb[0].mxu0
      %3519 = vmatprep.mubr.bf16.mxu0 0
      %3520 = vmatmul.mubr.bf16.gmra.mrb[0].mxu0 %v2686
      %v3521 = vpop.f32.mrb[0].mxu0
      %v3522 = vadd.f32 0.0, %v3521
      %v3523 = vpop.f32.mrb[0].mxu0
      %v3524 = vpop.f32.mrb[0].mxu0
      %v3525 = vadd.f32 0.0, %v3524
      %v3526 = vpop.f32.mrb[0].mxu0
      %3527 = vmatprep.mubr.bf16.mxu0 0
      %3528 = vmatmul.mubr.bf16.gmra.mrb[0].mxu0 %v3458
      %v3529 = vpop.f32.mrb[0].mxu0
      %v3530 = vadd.f32 0.0, %v3529
      %v3531 = vpop.f32.mrb[0].mxu0
      %v3532 = vpop.f32.mrb[0].mxu0
      %v3533 = vadd.f32 0.0, %v3532
      %v3534 = vpop.f32.mrb[0].mxu0
      %3535 = vmatprep.mubr.bf16.mxu0 0
      %3536 = vmatmul.mubr.bf16.gmra.mrb[0].mxu0 %v3461
      %v3537 = vpop.f32.mrb[0].mxu0
      %v3538 = vadd.f32 0.0, %v3537
      %v3539 = vpop.f32.mrb[0].mxu0
      %v3540 = vpop.f32.mrb[0].mxu0
      %v3541 = vpop.f32.mrb[0].mxu0
      %3542 = vdwg.mxu0
      %v3543 = vadd.f32 %v3426, %v3498
      %v3544 = vadd.f32 %v3427, %v3501
      %v3545 = vadd.f32 %v3428, %v3506
      %v3546 = vadd.f32 %v3429, %v3509
      %v3547 = vadd.f32 %v3430, %v3514
      %v3548 = vadd.f32 %v3431, %v3517
      %v3549 = vadd.f32 %v3432, %v3522
      %v3550 = vadd.f32 %v3433, %v3525
      %v3551 = vadd.f32 %v3434, %v3530
      %v3552 = vadd.f32 %v3435, %v3533
      %v3553 = vadd.f32 %v3436, %v3538
      %v3554 = vmax.f32 %v3543, 0.0
      %v3555 = vmax.f32 %v3544, 0.0
      %v3556 = vmax.f32 %v3545, 0.0
      %v3557 = vmax.f32 %v3546, 0.0
      %v3558 = vmax.f32 %v3547, 0.0
      %v3559 = vmax.f32 %v3548, 0.0
      %v3560 = vmax.f32 %v3549, 0.0
      %v3561 = vmax.f32 %v3550, 0.0
      %v3562 = vmax.f32 %v3551, 0.0
      %v3563 = vmax.f32 %v3552, 0.0
      %v3564 = vmax.f32 %v3553, 0.0
      %v3565 = vpack.c.bf16 %v3555, %v3554
      %v3566 = vpack.c.bf16 %v3557, %v3556
      %v3567 = vpack.c.bf16 %v3559, %v3558
      %v3568 = vpack.c.bf16 %v3561, %v3560
      %v3569 = vpack.c.bf16 %v3563, %v3562
      %v3570 = vpack.c.bf16 %v3564, %v3564
      %v3571 = vlaneseq
      %v3572 = vshrl.u32 %v3571, 7
      %v3573 = vsub.s32 3, %v3572
      %v3574 = vrot.slane %v201, %v3573
      %s3575 = scalar_lea.vmem %s2, 288
      %v3576 = vld [vmem:[%s3575] sm:$0xf]
      %v3577 = vld [vmem:[%s3575 + $0x4] sm:$0xf]
      %v3578 = vld [vmem:[%s3575 + $0x8] sm:$0xf]
      %v3579 = vld [vmem:[%s3575 + $0xc] sm:$0xf]
      %v3584 = vunpack.c.l.b16 %v3576
      %v3585 = vunpack.c.l.b16 %v3577
      %v3586 = vunpack.c.l.b16 %v3578
      %v3587 = vunpack.c.l.b16 %v3579
      %v3588 = vpack.c.b16 %v3585, %v3584
      %v3589 = vpack.c.b16 %v3587, %v3586
      %v3593 = vsel %vm1000, %v3565, 0
      %v3596 = vsel %vm1000, %v3566, 0
      %v3599 = vsel %vm1000, %v3567, 0
      %v3602 = vsel %vm1000, %v3568, 0
      %v3605 = vsel %vm1000, %v3569, 0
      %3607 = vmatprep.subr.bf16.mxu0 0
      %3608 = vmatpush1.bf16.msra.mxu0 %v3588
      %3609 = vmatprep.subr.bf16.mxu0 0
      %3610 = vmatpush1.bf16.msra.mxu0 %v3589
      %3611 = vmatprep.subr.bf16.mxu0 0
      %3612 = vmatpush1.bf16.msra.mxu0 0
      %3613 = vmatprep.subr.bf16.mxu0 0
      %3614 = vmatpush1.bf16.msra.mxu0 0
      %3615 = vmatprep.subr.bf16.mxu0 0
      %3616 = vmatpush1.bf16.msra.mxu0 0
      %3617 = vmatprep.subr.bf16.mxu0 0
      %3618 = vmatpush1.bf16.msra.mxu0 0
      %3619 = vmatprep.subr.bf16.mxu0 0
      %3620 = vmatpush1.bf16.msra.mxu0 0
      %3621 = vmatprep.subr.bf16.mxu0 0
      %3622 = vmatpush1.bf16.msra.mxu0 0
      %3623 = vmatprep.subr.bf16.mxu0 0
      %3624 = vmatpush1.bf16.msra.mxu0 0
      %3625 = vmatprep.subr.bf16.mxu0 0
      %3626 = vmatpush1.bf16.msra.mxu0 0
      %3627 = vmatprep.subr.bf16.mxu0 0
      %3628 = vmatpush1.bf16.msra.mxu0 0
      %3629 = vmatprep.subr.bf16.mxu0 0
      %3630 = vmatpush1.bf16.msra.mxu0 0
      %3631 = vmatprep.subr.bf16.mxu0 0
      %3632 = vmatpush1.bf16.msra.mxu0 0
      %3633 = vmatprep.subr.bf16.mxu0 0
      %3634 = vmatpush1.bf16.msra.mxu0 0
      %3635 = vmatprep.subr.bf16.mxu0 0
      %3636 = vmatpush1.bf16.msra.mxu0 0
      %3637 = vmatprep.subr.bf16.mxu0 0
      %3638 = vmatpush1.bf16.msra.mxu0 0
      %3639 = vmatprep.mubr.bf16.mxu0 0
      %3640 = vmatmul.mubr.bf16.gmra.mrb[0].mxu0 %v3593
      %v3641 = vpop.f32.mrb[0].mxu0
      %v3642 = vadd.f32 0.0, %v3641
      %v3643 = vpop.f32.mrb[0].mxu0
      %v3644 = vpop.f32.mrb[0].mxu0
      %v3645 = vadd.f32 0.0, %v3644
      %v3646 = vpop.f32.mrb[0].mxu0
      %3647 = vmatprep.mubr.bf16.mxu0 0
      %3648 = vmatmul.mubr.bf16.gmra.mrb[0].mxu0 %v3596
      %v3649 = vpop.f32.mrb[0].mxu0
      %v3650 = vadd.f32 0.0, %v3649
      %v3651 = vpop.f32.mrb[0].mxu0
      %v3652 = vpop.f32.mrb[0].mxu0
      %v3653 = vadd.f32 0.0, %v3652
      %v3654 = vpop.f32.mrb[0].mxu0
      %3655 = vmatprep.mubr.bf16.mxu0 0
      %3656 = vmatmul.mubr.bf16.gmra.mrb[0].mxu0 %v3599
      %v3657 = vpop.f32.mrb[0].mxu0
      %v3658 = vadd.f32 0.0, %v3657
      %v3659 = vpop.f32.mrb[0].mxu0
      %v3660 = vpop.f32.mrb[0].mxu0
      %v3661 = vadd.f32 0.0, %v3660
      %v3662 = vpop.f32.mrb[0].mxu0
      %3663 = vmatprep.mubr.bf16.mxu0 0
      %3664 = vmatmul.mubr.bf16.gmra.mrb[0].mxu0 %v3602
      %v3665 = vpop.f32.mrb[0].mxu0
      %v3666 = vadd.f32 0.0, %v3665
      %v3667 = vpop.f32.mrb[0].mxu0
      %v3668 = vpop.f32.mrb[0].mxu0
      %v3669 = vadd.f32 0.0, %v3668
      %v3670 = vpop.f32.mrb[0].mxu0
      %3671 = vmatprep.mubr.bf16.mxu0 0
      %3672 = vmatmul.mubr.bf16.gmra.mrb[0].mxu0 %v3605
      %v3673 = vpop.f32.mrb[0].mxu0
      %v3674 = vadd.f32 0.0, %v3673
      %v3675 = vpop.f32.mrb[0].mxu0
      %v3676 = vpop.f32.mrb[0].mxu0
      %v3677 = vpop.f32.mrb[0].mxu0
      %3678 = vdwg.mxu0
      %v3679 = vadd.f32 %v3574, %v3642
      %v3680 = vadd.f32 %v3574, %v3645
      %v3681 = vadd.f32 %v3574, %v3650
      %v3682 = vadd.f32 %v3574, %v3653
      %v3683 = vadd.f32 %v3574, %v3658
      %v3684 = vadd.f32 %v3574, %v3661
      %v3685 = vadd.f32 %v3574, %v3666
      %v3686 = vadd.f32 %v3574, %v3669
      %v3687 = vadd.f32 %v3574, %v3674
      %s3688 = scalar_lea.vmem %s2, 304
      %v3689 = vld [vmem:[%s3688] sm:$0xf]
      %v3690 = vld [vmem:[%s3688 + $0x4] sm:$0xf]
      %v3691 = vld [vmem:[%s3688 + $0x8] sm:$0xf]
      %v3692 = vld [vmem:[%s3688 + $0xc] sm:$0xf]
      %v3693 = vshrl.u32 %v3565, 16
      %v3695 = vshll.u32 %v3565, 16
      %v3697 = vrot.slane %v3695, 1
      %v3698 = vor.u32 %v3693, %v3697
      %v3699 = vshll.u32 %v3566, 16
      %v3701 = vrot.slane %v3699, 1
      %v3702 = vsel %vm407, %v3698, %v3701
      %v3703 = vshrl.u32 %v3566, 16
      %v3705 = vor.u32 %v3703, %v3701
      %v3706 = vshll.u32 %v3567, 16
      %v3708 = vrot.slane %v3706, 1
      %v3709 = vsel %vm407, %v3705, %v3708
      %v3710 = vshrl.u32 %v3567, 16
      %v3712 = vor.u32 %v3710, %v3708
      %v3713 = vshll.u32 %v3568, 16
      %v3715 = vrot.slane %v3713, 1
      %v3716 = vsel %vm407, %v3712, %v3715
      %v3717 = vshrl.u32 %v3568, 16
      %v3719 = vor.u32 %v3717, %v3715
      %v3720 = vshll.u32 %v3569, 16
      %v3722 = vrot.slane %v3720, 1
      %v3723 = vsel %vm407, %v3719, %v3722
      %v3724 = vshrl.u32 %v3569, 16
      %v3730 = vunpack.c.l.b16 %v3689
      %v3731 = vunpack.c.l.b16 %v3690
      %v3732 = vunpack.c.l.b16 %v3691
      %v3733 = vunpack.c.l.b16 %v3692
      %v3734 = vpack.c.b16 %v3731, %v3730
      %v3735 = vpack.c.b16 %v3733, %v3732
      %v3739 = vsel %vm1000, %v3702, 0
      %v3742 = vsel %vm1000, %v3709, 0
      %v3745 = vsel %vm1000, %v3716, 0
      %v3748 = vsel %vm1000, %v3723, 0
      %v3751 = vsel %vm1000, %v3724, 0
      %3753 = vmatprep.subr.bf16.mxu0 0
      %3754 = vmatpush1.bf16.msra.mxu0 %v3734
      %3755 = vmatprep.subr.bf16.mxu0 0
      %3756 = vmatpush1.bf16.msra.mxu0 %v3735
      %3757 = vmatprep.subr.bf16.mxu0 0
      %3758 = vmatpush1.bf16.msra.mxu0 0
      %3759 = vmatprep.subr.bf16.mxu0 0
      %3760 = vmatpush1.bf16.msra.mxu0 0
      %3761 = vmatprep.subr.bf16.mxu0 0
      %3762 = vmatpush1.bf16.msra.mxu0 0
      %3763 = vmatprep.subr.bf16.mxu0 0
      %3764 = vmatpush1.bf16.msra.mxu0 0
      %3765 = vmatprep.subr.bf16.mxu0 0
      %3766 = vmatpush1.bf16.msra.mxu0 0
      %3767 = vmatprep.subr.bf16.mxu0 0
      %3768 = vmatpush1.bf16.msra.mxu0 0
      %3769 = vmatprep.subr.bf16.mxu0 0
      %3770 = vmatpush1.bf16.msra.mxu0 0
      %3771 = vmatprep.subr.bf16.mxu0 0
      %3772 = vmatpush1.bf16.msra.mxu0 0
      %3773 = vmatprep.subr.bf16.mxu0 0
      %3774 = vmatpush1.bf16.msra.mxu0 0
      %3775 = vmatprep.subr.bf16.mxu0 0
      %3776 = vmatpush1.bf16.msra.mxu0 0
      %3777 = vmatprep.subr.bf16.mxu0 0
      %3778 = vmatpush1.bf16.msra.mxu0 0
      %3779 = vmatprep.subr.bf16.mxu0 0
      %3780 = vmatpush1.bf16.msra.mxu0 0
      %3781 = vmatprep.subr.bf16.mxu0 0
      %3782 = vmatpush1.bf16.msra.mxu0 0
      %3783 = vmatprep.subr.bf16.mxu0 0
      %3784 = vmatpush1.bf16.msra.mxu0 0
      %3785 = vmatprep.mubr.bf16.mxu0 0
      %3786 = vmatmul.mubr.bf16.gmra.mrb[0].mxu0 %v3739
      %v3787 = vpop.f32.mrb[0].mxu0
      %v3788 = vadd.f32 0.0, %v3787
      %v3789 = vpop.f32.mrb[0].mxu0
      %v3790 = vpop.f32.mrb[0].mxu0
      %v3791 = vadd.f32 0.0, %v3790
      %v3792 = vpop.f32.mrb[0].mxu0
      %3793 = vmatprep.mubr.bf16.mxu0 0
      %3794 = vmatmul.mubr.bf16.gmra.mrb[0].mxu0 %v3742
      %v3795 = vpop.f32.mrb[0].mxu0
      %v3796 = vadd.f32 0.0, %v3795
      %v3797 = vpop.f32.mrb[0].mxu0
      %v3798 = vpop.f32.mrb[0].mxu0
      %v3799 = vadd.f32 0.0, %v3798
      %v3800 = vpop.f32.mrb[0].mxu0
      %3801 = vmatprep.mubr.bf16.mxu0 0
      %3802 = vmatmul.mubr.bf16.gmra.mrb[0].mxu0 %v3745
      %v3803 = vpop.f32.mrb[0].mxu0
      %v3804 = vadd.f32 0.0, %v3803
      %v3805 = vpop.f32.mrb[0].mxu0
      %v3806 = vpop.f32.mrb[0].mxu0
      %v3807 = vadd.f32 0.0, %v3806
      %v3808 = vpop.f32.mrb[0].mxu0
      %3809 = vmatprep.mubr.bf16.mxu0 0
      %3810 = vmatmul.mubr.bf16.gmra.mrb[0].mxu0 %v3748
      %v3811 = vpop.f32.mrb[0].mxu0
      %v3812 = vadd.f32 0.0, %v3811
      %v3813 = vpop.f32.mrb[0].mxu0
      %v3814 = vpop.f32.mrb[0].mxu0
      %v3815 = vadd.f32 0.0, %v3814
      %v3816 = vpop.f32.mrb[0].mxu0
      %3817 = vmatprep.mubr.bf16.mxu0 0
      %3818 = vmatmul.mubr.bf16.gmra.mrb[0].mxu0 %v3751
      %v3819 = vpop.f32.mrb[0].mxu0
      %v3820 = vadd.f32 0.0, %v3819
      %v3821 = vpop.f32.mrb[0].mxu0
      %v3822 = vpop.f32.mrb[0].mxu0
      %v3823 = vpop.f32.mrb[0].mxu0
      %3824 = vdwg.mxu0
      %v3825 = vadd.f32 %v3679, %v3788
      %v3826 = vadd.f32 %v3680, %v3791
      %v3827 = vadd.f32 %v3681, %v3796
      %v3828 = vadd.f32 %v3682, %v3799
      %v3829 = vadd.f32 %v3683, %v3804
      %v3830 = vadd.f32 %v3684, %v3807
      %v3831 = vadd.f32 %v3685, %v3812
      %v3832 = vadd.f32 %v3686, %v3815
      %v3833 = vadd.f32 %v3687, %v3820
      %s3834 = scalar_lea.vmem %s2, 320
      %v3835 = vld [vmem:[%s3834] sm:$0xf]
      %v3836 = vld [vmem:[%s3834 + $0x4] sm:$0xf]
      %v3837 = vld [vmem:[%s3834 + $0x8] sm:$0xf]
      %v3838 = vld [vmem:[%s3834 + $0xc] sm:$0xf]
      %v3844 = vrot.slane %v3565, 1
      %v3845 = vrot.slane %v3566, 1
      %v3846 = vsel %vm1322, %v3844, %v3845
      %v3847 = vrot.slane %v3567, 1
      %v3848 = vsel %vm1322, %v3845, %v3847
      %v3849 = vrot.slane %v3568, 1
      %v3850 = vsel %vm1322, %v3847, %v3849
      %v3851 = vrot.slane %v3569, 1
      %v3852 = vsel %vm1322, %v3849, %v3851
      %v3857 = vunpack.c.l.b16 %v3835
      %v3858 = vunpack.c.l.b16 %v3836
      %v3859 = vunpack.c.l.b16 %v3837
      %v3860 = vunpack.c.l.b16 %v3838
      %v3861 = vpack.c.b16 %v3858, %v3857
      %v3862 = vpack.c.b16 %v3860, %v3859
      %v3866 = vsel %vm1000, %v3846, 0
      %v3869 = vsel %vm1000, %v3848, 0
      %v3872 = vsel %vm1000, %v3850, 0
      %v3875 = vsel %vm1000, %v3852, 0
      %v3878 = vsel %vm1000, %v3851, 0
      %3880 = vmatprep.subr.bf16.mxu0 0
      %3881 = vmatpush1.bf16.msra.mxu0 %v3861
      %3882 = vmatprep.subr.bf16.mxu0 0
      %3883 = vmatpush1.bf16.msra.mxu0 %v3862
      %3884 = vmatprep.subr.bf16.mxu0 0
      %3885 = vmatpush1.bf16.msra.mxu0 0
      %3886 = vmatprep.subr.bf16.mxu0 0
      %3887 = vmatpush1.bf16.msra.mxu0 0
      %3888 = vmatprep.subr.bf16.mxu0 0
      %3889 = vmatpush1.bf16.msra.mxu0 0
      %3890 = vmatprep.subr.bf16.mxu0 0
      %3891 = vmatpush1.bf16.msra.mxu0 0
      %3892 = vmatprep.subr.bf16.mxu0 0
      %3893 = vmatpush1.bf16.msra.mxu0 0
      %3894 = vmatprep.subr.bf16.mxu0 0
      %3895 = vmatpush1.bf16.msra.mxu0 0
      %3896 = vmatprep.subr.bf16.mxu0 0
      %3897 = vmatpush1.bf16.msra.mxu0 0
      %3898 = vmatprep.subr.bf16.mxu0 0
      %3899 = vmatpush1.bf16.msra.mxu0 0
      %3900 = vmatprep.subr.bf16.mxu0 0
      %3901 = vmatpush1.bf16.msra.mxu0 0
      %3902 = vmatprep.subr.bf16.mxu0 0
      %3903 = vmatpush1.bf16.msra.mxu0 0
      %3904 = vmatprep.subr.bf16.mxu0 0
      %3905 = vmatpush1.bf16.msra.mxu0 0
      %3906 = vmatprep.subr.bf16.mxu0 0
      %3907 = vmatpush1.bf16.msra.mxu0 0
      %3908 = vmatprep.subr.bf16.mxu0 0
      %3909 = vmatpush1.bf16.msra.mxu0 0
      %3910 = vmatprep.subr.bf16.mxu0 0
      %3911 = vmatpush1.bf16.msra.mxu0 0
      %3912 = vmatprep.mubr.bf16.mxu0 0
      %3913 = vmatmul.mubr.bf16.gmra.mrb[0].mxu0 %v3866
      %v3914 = vpop.f32.mrb[0].mxu0
      %v3915 = vadd.f32 0.0, %v3914
      %v3916 = vpop.f32.mrb[0].mxu0
      %v3917 = vpop.f32.mrb[0].mxu0
      %v3918 = vadd.f32 0.0, %v3917
      %v3919 = vpop.f32.mrb[0].mxu0
      %3920 = vmatprep.mubr.bf16.mxu0 0
      %3921 = vmatmul.mubr.bf16.gmra.mrb[0].mxu0 %v3869
      %v3922 = vpop.f32.mrb[0].mxu0
      %v3923 = vadd.f32 0.0, %v3922
      %v3924 = vpop.f32.mrb[0].mxu0
      %v3925 = vpop.f32.mrb[0].mxu0
      %v3926 = vadd.f32 0.0, %v3925
      %v3927 = vpop.f32.mrb[0].mxu0
      %3928 = vmatprep.mubr.bf16.mxu0 0
      %3929 = vmatmul.mubr.bf16.gmra.mrb[0].mxu0 %v3872
      %v3930 = vpop.f32.mrb[0].mxu0
      %v3931 = vadd.f32 0.0, %v3930
      %v3932 = vpop.f32.mrb[0].mxu0
      %v3933 = vpop.f32.mrb[0].mxu0
      %v3934 = vadd.f32 0.0, %v3933
      %v3935 = vpop.f32.mrb[0].mxu0
      %3936 = vmatprep.mubr.bf16.mxu0 0
      %3937 = vmatmul.mubr.bf16.gmra.mrb[0].mxu0 %v3875
      %v3938 = vpop.f32.mrb[0].mxu0
      %v3939 = vadd.f32 0.0, %v3938
      %v3940 = vpop.f32.mrb[0].mxu0
      %v3941 = vpop.f32.mrb[0].mxu0
      %v3942 = vadd.f32 0.0, %v3941
      %v3943 = vpop.f32.mrb[0].mxu0
      %3944 = vmatprep.mubr.bf16.mxu0 0
      %3945 = vmatmul.mubr.bf16.gmra.mrb[0].mxu0 %v3878
      %v3946 = vpop.f32.mrb[0].mxu0
      %v3947 = vadd.f32 0.0, %v3946
      %v3948 = vpop.f32.mrb[0].mxu0
      %v3949 = vpop.f32.mrb[0].mxu0
      %v3950 = vpop.f32.mrb[0].mxu0
      %3951 = vdwg.mxu0
      %v3952 = vadd.f32 %v3825, %v3915
      %v3953 = vadd.f32 %v3826, %v3918
      %v3954 = vadd.f32 %v3827, %v3923
      %v3955 = vadd.f32 %v3828, %v3926
      %v3956 = vadd.f32 %v3829, %v3931
      %v3957 = vadd.f32 %v3830, %v3934
      %v3958 = vadd.f32 %v3831, %v3939
      %v3959 = vadd.f32 %v3832, %v3942
      %v3960 = vadd.f32 %v3833, %v3947
      %s3961 = scalar_lea.vmem %s2, 336
      %v3962 = vld [vmem:[%s3961] sm:$0xf]
      %v3963 = vld [vmem:[%s3961 + $0x4] sm:$0xf]
      %v3964 = vld [vmem:[%s3961 + $0x8] sm:$0xf]
      %v3965 = vld [vmem:[%s3961 + $0xc] sm:$0xf]
      %v3966 = vrot.slane %v3565, 4
      %v3967 = vrot.slane %v3566, 4
      %v3968 = vsel %vm1475, %v3966, %v3967
      %v3969 = vrot.slane %v3567, 4
      %v3970 = vsel %vm1475, %v3967, %v3969
      %v3971 = vrot.slane %v3568, 4
      %v3972 = vsel %vm1475, %v3969, %v3971
      %v3973 = vrot.slane %v3569, 4
      %v3974 = vsel %vm1475, %v3971, %v3973
      %v3979 = vunpack.c.l.b16 %v3962
      %v3980 = vunpack.c.l.b16 %v3963
      %v3981 = vunpack.c.l.b16 %v3964
      %v3982 = vunpack.c.l.b16 %v3965
      %v3983 = vpack.c.b16 %v3980, %v3979
      %v3984 = vpack.c.b16 %v3982, %v3981
      %v3988 = vsel %vm1000, %v3968, 0
      %v3991 = vsel %vm1000, %v3970, 0
      %v3994 = vsel %vm1000, %v3972, 0
      %v3997 = vsel %vm1000, %v3974, 0
      %v4000 = vsel %vm1000, %v3973, 0
      %4002 = vmatprep.subr.bf16.mxu0 0
      %4003 = vmatpush1.bf16.msra.mxu0 %v3983
      %4004 = vmatprep.subr.bf16.mxu0 0
      %4005 = vmatpush1.bf16.msra.mxu0 %v3984
      %4006 = vmatprep.subr.bf16.mxu0 0
      %4007 = vmatpush1.bf16.msra.mxu0 0
      %4008 = vmatprep.subr.bf16.mxu0 0
      %4009 = vmatpush1.bf16.msra.mxu0 0
      %4010 = vmatprep.subr.bf16.mxu0 0
      %4011 = vmatpush1.bf16.msra.mxu0 0
      %4012 = vmatprep.subr.bf16.mxu0 0
      %4013 = vmatpush1.bf16.msra.mxu0 0
      %4014 = vmatprep.subr.bf16.mxu0 0
      %4015 = vmatpush1.bf16.msra.mxu0 0
      %4016 = vmatprep.subr.bf16.mxu0 0
      %4017 = vmatpush1.bf16.msra.mxu0 0
      %4018 = vmatprep.subr.bf16.mxu0 0
      %4019 = vmatpush1.bf16.msra.mxu0 0
      %4020 = vmatprep.subr.bf16.mxu0 0
      %4021 = vmatpush1.bf16.msra.mxu0 0
      %4022 = vmatprep.subr.bf16.mxu0 0
      %4023 = vmatpush1.bf16.msra.mxu0 0
      %4024 = vmatprep.subr.bf16.mxu0 0
      %4025 = vmatpush1.bf16.msra.mxu0 0
      %4026 = vmatprep.subr.bf16.mxu0 0
      %4027 = vmatpush1.bf16.msra.mxu0 0
      %4028 = vmatprep.subr.bf16.mxu0 0
      %4029 = vmatpush1.bf16.msra.mxu0 0
      %4030 = vmatprep.subr.bf16.mxu0 0
      %4031 = vmatpush1.bf16.msra.mxu0 0
      %4032 = vmatprep.subr.bf16.mxu0 0
      %4033 = vmatpush1.bf16.msra.mxu0 0
      %4034 = vmatprep.mubr.bf16.mxu0 0
      %4035 = vmatmul.mubr.bf16.gmra.mrb[0].mxu0 %v3988
      %v4036 = vpop.f32.mrb[0].mxu0
      %v4037 = vadd.f32 0.0, %v4036
      %v4038 = vpop.f32.mrb[0].mxu0
      %v4039 = vpop.f32.mrb[0].mxu0
      %v4040 = vadd.f32 0.0, %v4039
      %v4041 = vpop.f32.mrb[0].mxu0
      %4042 = vmatprep.mubr.bf16.mxu0 0
      %4043 = vmatmul.mubr.bf16.gmra.mrb[0].mxu0 %v3991
      %v4044 = vpop.f32.mrb[0].mxu0
      %v4045 = vadd.f32 0.0, %v4044
      %v4046 = vpop.f32.mrb[0].mxu0
      %v4047 = vpop.f32.mrb[0].mxu0
      %v4048 = vadd.f32 0.0, %v4047
      %v4049 = vpop.f32.mrb[0].mxu0
      %4050 = vmatprep.mubr.bf16.mxu0 0
      %4051 = vmatmul.mubr.bf16.gmra.mrb[0].mxu0 %v3994
      %v4052 = vpop.f32.mrb[0].mxu0
      %v4053 = vadd.f32 0.0, %v4052
      %v4054 = vpop.f32.mrb[0].mxu0
      %v4055 = vpop.f32.mrb[0].mxu0
      %v4056 = vadd.f32 0.0, %v4055
      %v4057 = vpop.f32.mrb[0].mxu0
      %4058 = vmatprep.mubr.bf16.mxu0 0
      %4059 = vmatmul.mubr.bf16.gmra.mrb[0].mxu0 %v3997
      %v4060 = vpop.f32.mrb[0].mxu0
      %v4061 = vadd.f32 0.0, %v4060
      %v4062 = vpop.f32.mrb[0].mxu0
      %v4063 = vpop.f32.mrb[0].mxu0
      %v4064 = vadd.f32 0.0, %v4063
      %v4065 = vpop.f32.mrb[0].mxu0
      %4066 = vmatprep.mubr.bf16.mxu0 0
      %4067 = vmatmul.mubr.bf16.gmra.mrb[0].mxu0 %v4000
      %v4068 = vpop.f32.mrb[0].mxu0
      %v4069 = vadd.f32 0.0, %v4068
      %v4070 = vpop.f32.mrb[0].mxu0
      %v4071 = vpop.f32.mrb[0].mxu0
      %v4072 = vpop.f32.mrb[0].mxu0
      %4073 = vdwg.mxu0
      %v4074 = vadd.f32 %v3952, %v4037
      %v4075 = vadd.f32 %v3953, %v4040
      %v4076 = vadd.f32 %v3954, %v4045
      %v4077 = vadd.f32 %v3955, %v4048
      %v4078 = vadd.f32 %v3956, %v4053
      %v4079 = vadd.f32 %v3957, %v4056
      %v4080 = vadd.f32 %v3958, %v4061
      %v4081 = vadd.f32 %v3959, %v4064
      %v4082 = vadd.f32 %v3960, %v4069
      %s4083 = scalar_lea.vmem %s2, 352
      %v4084 = vld [vmem:[%s4083] sm:$0xf]
      %v4085 = vld [vmem:[%s4083 + $0x4] sm:$0xf]
      %v4086 = vld [vmem:[%s4083 + $0x8] sm:$0xf]
      %v4087 = vld [vmem:[%s4083 + $0xc] sm:$0xf]
      %v4088 = vrot.slane %v3693, 4
      %v4089 = vrot.slane %v3695, 5
      %v4090 = vor.u32 %v4088, %v4089
      %v4091 = vrot.slane %v3703, 4
      %v4092 = vrot.slane %v3699, 5
      %v4093 = vor.u32 %v4091, %v4092
      %v4094 = vsel %vm1628, %v4090, %v4093
      %v4095 = vrot.slane %v3710, 4
      %v4096 = vrot.slane %v3706, 5
      %v4097 = vor.u32 %v4095, %v4096
      %v4098 = vsel %vm1628, %v4093, %v4097
      %v4099 = vrot.slane %v3717, 4
      %v4100 = vrot.slane %v3713, 5
      %v4101 = vor.u32 %v4099, %v4100
      %v4102 = vsel %vm1628, %v4097, %v4101
      %v4103 = vrot.slane %v3724, 4
      %v4104 = vrot.slane %v3720, 5
      %v4105 = vor.u32 %v4103, %v4104
      %v4106 = vsel %vm1628, %v4101, %v4105
      %v4111 = vunpack.c.l.b16 %v4084
      %v4112 = vunpack.c.l.b16 %v4085
      %v4113 = vunpack.c.l.b16 %v4086
      %v4114 = vunpack.c.l.b16 %v4087
      %v4115 = vpack.c.b16 %v4112, %v4111
      %v4116 = vpack.c.b16 %v4114, %v4113
      %v4120 = vsel %vm1000, %v4094, 0
      %v4123 = vsel %vm1000, %v4098, 0
      %v4126 = vsel %vm1000, %v4102, 0
      %v4129 = vsel %vm1000, %v4106, 0
      %v4132 = vsel %vm1000, %v4103, 0
      %4134 = vmatprep.subr.bf16.mxu0 0
      %4135 = vmatpush1.bf16.msra.mxu0 %v4115
      %4136 = vmatprep.subr.bf16.mxu0 0
      %4137 = vmatpush1.bf16.msra.mxu0 %v4116
      %4138 = vmatprep.subr.bf16.mxu0 0
      %4139 = vmatpush1.bf16.msra.mxu0 0
      %4140 = vmatprep.subr.bf16.mxu0 0
      %4141 = vmatpush1.bf16.msra.mxu0 0
      %4142 = vmatprep.subr.bf16.mxu0 0
      %4143 = vmatpush1.bf16.msra.mxu0 0
      %4144 = vmatprep.subr.bf16.mxu0 0
      %4145 = vmatpush1.bf16.msra.mxu0 0
      %4146 = vmatprep.subr.bf16.mxu0 0
      %4147 = vmatpush1.bf16.msra.mxu0 0
      %4148 = vmatprep.subr.bf16.mxu0 0
      %4149 = vmatpush1.bf16.msra.mxu0 0
      %4150 = vmatprep.subr.bf16.mxu0 0
      %4151 = vmatpush1.bf16.msra.mxu0 0
      %4152 = vmatprep.subr.bf16.mxu0 0
      %4153 = vmatpush1.bf16.msra.mxu0 0
      %4154 = vmatprep.subr.bf16.mxu0 0
      %4155 = vmatpush1.bf16.msra.mxu0 0
      %4156 = vmatprep.subr.bf16.mxu0 0
      %4157 = vmatpush1.bf16.msra.mxu0 0
      %4158 = vmatprep.subr.bf16.mxu0 0
      %4159 = vmatpush1.bf16.msra.mxu0 0
      %4160 = vmatprep.subr.bf16.mxu0 0
      %4161 = vmatpush1.bf16.msra.mxu0 0
      %4162 = vmatprep.subr.bf16.mxu0 0
      %4163 = vmatpush1.bf16.msra.mxu0 0
      %4164 = vmatprep.subr.bf16.mxu0 0
      %4165 = vmatpush1.bf16.msra.mxu0 0
      %4166 = vmatprep.mubr.bf16.mxu0 0
      %4167 = vmatmul.mubr.bf16.gmra.mrb[0].mxu0 %v4120
      %v4168 = vpop.f32.mrb[0].mxu0
      %v4169 = vadd.f32 0.0, %v4168
      %v4170 = vpop.f32.mrb[0].mxu0
      %v4171 = vpop.f32.mrb[0].mxu0
      %v4172 = vadd.f32 0.0, %v4171
      %v4173 = vpop.f32.mrb[0].mxu0
      %4174 = vmatprep.mubr.bf16.mxu0 0
      %4175 = vmatmul.mubr.bf16.gmra.mrb[0].mxu0 %v4123
      %v4176 = vpop.f32.mrb[0].mxu0
      %v4177 = vadd.f32 0.0, %v4176
      %v4178 = vpop.f32.mrb[0].mxu0
      %v4179 = vpop.f32.mrb[0].mxu0
      %v4180 = vadd.f32 0.0, %v4179
      %v4181 = vpop.f32.mrb[0].mxu0
      %4182 = vmatprep.mubr.bf16.mxu0 0
      %4183 = vmatmul.mubr.bf16.gmra.mrb[0].mxu0 %v4126
      %v4184 = vpop.f32.mrb[0].mxu0
      %v4185 = vadd.f32 0.0, %v4184
      %v4186 = vpop.f32.mrb[0].mxu0
      %v4187 = vpop.f32.mrb[0].mxu0
      %v4188 = vadd.f32 0.0, %v4187
      %v4189 = vpop.f32.mrb[0].mxu0
      %4190 = vmatprep.mubr.bf16.mxu0 0
      %4191 = vmatmul.mubr.bf16.gmra.mrb[0].mxu0 %v4129
      %v4192 = vpop.f32.mrb[0].mxu0
      %v4193 = vadd.f32 0.0, %v4192
      %v4194 = vpop.f32.mrb[0].mxu0
      %v4195 = vpop.f32.mrb[0].mxu0
      %v4196 = vadd.f32 0.0, %v4195
      %v4197 = vpop.f32.mrb[0].mxu0
      %4198 = vmatprep.mubr.bf16.mxu0 0
      %4199 = vmatmul.mubr.bf16.gmra.mrb[0].mxu0 %v4132
      %v4200 = vpop.f32.mrb[0].mxu0
      %v4201 = vadd.f32 0.0, %v4200
      %v4202 = vpop.f32.mrb[0].mxu0
      %v4203 = vpop.f32.mrb[0].mxu0
      %v4204 = vpop.f32.mrb[0].mxu0
      %4205 = vdwg.mxu0
      %v4206 = vadd.f32 %v4074, %v4169
      %v4207 = vadd.f32 %v4075, %v4172
      %v4208 = vadd.f32 %v4076, %v4177
      %v4209 = vadd.f32 %v4077, %v4180
      %v4210 = vadd.f32 %v4078, %v4185
      %v4211 = vadd.f32 %v4079, %v4188
      %v4212 = vadd.f32 %v4080, %v4193
      %v4213 = vadd.f32 %v4081, %v4196
      %v4214 = vadd.f32 %v4082, %v4201
      %s4215 = scalar_lea.vmem %s2, 368
      %v4216 = vld [vmem:[%s4215] sm:$0xf]
      %v4217 = vld [vmem:[%s4215 + $0x4] sm:$0xf]
      %v4218 = vld [vmem:[%s4215 + $0x8] sm:$0xf]
      %v4219 = vld [vmem:[%s4215 + $0xc] sm:$0xf]
      %v4220 = vrot.slane %v3565, 5
      %v4221 = vrot.slane %v3566, 5
      %v4222 = vsel %vm1795, %v4220, %v4221
      %v4223 = vrot.slane %v3567, 5
      %v4224 = vsel %vm1795, %v4221, %v4223
      %v4225 = vrot.slane %v3568, 5
      %v4226 = vsel %vm1795, %v4223, %v4225
      %v4227 = vrot.slane %v3569, 5
      %v4228 = vsel %vm1795, %v4225, %v4227
      %v4233 = vunpack.c.l.b16 %v4216
      %v4234 = vunpack.c.l.b16 %v4217
      %v4235 = vunpack.c.l.b16 %v4218
      %v4236 = vunpack.c.l.b16 %v4219
      %v4237 = vpack.c.b16 %v4234, %v4233
      %v4238 = vpack.c.b16 %v4236, %v4235
      %v4242 = vsel %vm1000, %v4222, 0
      %v4245 = vsel %vm1000, %v4224, 0
      %v4248 = vsel %vm1000, %v4226, 0
      %v4251 = vsel %vm1000, %v4228, 0
      %v4254 = vsel %vm1000, %v4227, 0
      %4256 = vmatprep.subr.bf16.mxu0 0
      %4257 = vmatpush1.bf16.msra.mxu0 %v4237
      %4258 = vmatprep.subr.bf16.mxu0 0
      %4259 = vmatpush1.bf16.msra.mxu0 %v4238
      %4260 = vmatprep.subr.bf16.mxu0 0
      %4261 = vmatpush1.bf16.msra.mxu0 0
      %4262 = vmatprep.subr.bf16.mxu0 0
      %4263 = vmatpush1.bf16.msra.mxu0 0
      %4264 = vmatprep.subr.bf16.mxu0 0
      %4265 = vmatpush1.bf16.msra.mxu0 0
      %4266 = vmatprep.subr.bf16.mxu0 0
      %4267 = vmatpush1.bf16.msra.mxu0 0
      %4268 = vmatprep.subr.bf16.mxu0 0
      %4269 = vmatpush1.bf16.msra.mxu0 0
      %4270 = vmatprep.subr.bf16.mxu0 0
      %4271 = vmatpush1.bf16.msra.mxu0 0
      %4272 = vmatprep.subr.bf16.mxu0 0
      %4273 = vmatpush1.bf16.msra.mxu0 0
      %4274 = vmatprep.subr.bf16.mxu0 0
      %4275 = vmatpush1.bf16.msra.mxu0 0
      %4276 = vmatprep.subr.bf16.mxu0 0
      %4277 = vmatpush1.bf16.msra.mxu0 0
      %4278 = vmatprep.subr.bf16.mxu0 0
      %4279 = vmatpush1.bf16.msra.mxu0 0
      %4280 = vmatprep.subr.bf16.mxu0 0
      %4281 = vmatpush1.bf16.msra.mxu0 0
      %4282 = vmatprep.subr.bf16.mxu0 0
      %4283 = vmatpush1.bf16.msra.mxu0 0
      %4284 = vmatprep.subr.bf16.mxu0 0
      %4285 = vmatpush1.bf16.msra.mxu0 0
      %4286 = vmatprep.subr.bf16.mxu0 0
      %4287 = vmatpush1.bf16.msra.mxu0 0
      %4288 = vmatprep.mubr.bf16.mxu0 0
      %4289 = vmatmul.mubr.bf16.gmra.mrb[0].mxu0 %v4242
      %v4290 = vpop.f32.mrb[0].mxu0
      %v4291 = vadd.f32 0.0, %v4290
      %v4292 = vpop.f32.mrb[0].mxu0
      %v4293 = vpop.f32.mrb[0].mxu0
      %v4294 = vadd.f32 0.0, %v4293
      %v4295 = vpop.f32.mrb[0].mxu0
      %4296 = vmatprep.mubr.bf16.mxu0 0
      %4297 = vmatmul.mubr.bf16.gmra.mrb[0].mxu0 %v4245
      %v4298 = vpop.f32.mrb[0].mxu0
      %v4299 = vadd.f32 0.0, %v4298
      %v4300 = vpop.f32.mrb[0].mxu0
      %v4301 = vpop.f32.mrb[0].mxu0
      %v4302 = vadd.f32 0.0, %v4301
      %v4303 = vpop.f32.mrb[0].mxu0
      %4304 = vmatprep.mubr.bf16.mxu0 0
      %4305 = vmatmul.mubr.bf16.gmra.mrb[0].mxu0 %v4248
      %v4306 = vpop.f32.mrb[0].mxu0
      %v4307 = vadd.f32 0.0, %v4306
      %v4308 = vpop.f32.mrb[0].mxu0
      %v4309 = vpop.f32.mrb[0].mxu0
      %v4310 = vadd.f32 0.0, %v4309
      %v4311 = vpop.f32.mrb[0].mxu0
      %4312 = vmatprep.mubr.bf16.mxu0 0
      %4313 = vmatmul.mubr.bf16.gmra.mrb[0].mxu0 %v4251
      %v4314 = vpop.f32.mrb[0].mxu0
      %v4315 = vadd.f32 0.0, %v4314
      %v4316 = vpop.f32.mrb[0].mxu0
      %v4317 = vpop.f32.mrb[0].mxu0
      %v4318 = vadd.f32 0.0, %v4317
      %v4319 = vpop.f32.mrb[0].mxu0
      %4320 = vmatprep.mubr.bf16.mxu0 0
      %4321 = vmatmul.mubr.bf16.gmra.mrb[0].mxu0 %v4254
      %v4322 = vpop.f32.mrb[0].mxu0
      %v4323 = vadd.f32 0.0, %v4322
      %v4324 = vpop.f32.mrb[0].mxu0
      %v4325 = vpop.f32.mrb[0].mxu0
      %v4326 = vpop.f32.mrb[0].mxu0
      %4327 = vdwg.mxu0
      %v4328 = vadd.f32 %v4206, %v4291
      %v4329 = vadd.f32 %v4207, %v4294
      %v4330 = vadd.f32 %v4208, %v4299
      %v4331 = vadd.f32 %v4209, %v4302
      %v4332 = vadd.f32 %v4210, %v4307
      %v4333 = vadd.f32 %v4211, %v4310
      %v4334 = vadd.f32 %v4212, %v4315
      %v4335 = vadd.f32 %v4213, %v4318
      %v4336 = vadd.f32 %v4214, %v4323
      %s4337 = scalar_lea.vmem %s2, 384
      %v4338 = vld [vmem:[%s4337] sm:$0xf]
      %v4339 = vld [vmem:[%s4337 + $0x4] sm:$0xf]
      %v4340 = vld [vmem:[%s4337 + $0x8] sm:$0xf]
      %v4341 = vld [vmem:[%s4337 + $0xc] sm:$0xf]
      %v4346 = vunpack.c.l.b16 %v4338
      %v4347 = vunpack.c.l.b16 %v4339
      %v4348 = vunpack.c.l.b16 %v4340
      %v4349 = vunpack.c.l.b16 %v4341
      %v4350 = vpack.c.b16 %v4347, %v4346
      %v4351 = vpack.c.b16 %v4349, %v4348
      %v4355 = vsel %vm1000, %v3570, 0
      %4357 = vmatprep.subr.bf16.mxu0 0
      %4358 = vmatpush1.bf16.msra.mxu0 %v4350
      %4359 = vmatprep.subr.bf16.mxu0 0
      %4360 = vmatpush1.bf16.msra.mxu0 %v4351
      %4361 = vmatprep.subr.bf16.mxu0 0
      %4362 = vmatpush1.bf16.msra.mxu0 0
      %4363 = vmatprep.subr.bf16.mxu0 0
      %4364 = vmatpush1.bf16.msra.mxu0 0
      %4365 = vmatprep.subr.bf16.mxu0 0
      %4366 = vmatpush1.bf16.msra.mxu0 0
      %4367 = vmatprep.subr.bf16.mxu0 0
      %4368 = vmatpush1.bf16.msra.mxu0 0
      %4369 = vmatprep.subr.bf16.mxu0 0
      %4370 = vmatpush1.bf16.msra.mxu0 0
      %4371 = vmatprep.subr.bf16.mxu0 0
      %4372 = vmatpush1.bf16.msra.mxu0 0
      %4373 = vmatprep.subr.bf16.mxu0 0
      %4374 = vmatpush1.bf16.msra.mxu0 0
      %4375 = vmatprep.subr.bf16.mxu0 0
      %4376 = vmatpush1.bf16.msra.mxu0 0
      %4377 = vmatprep.subr.bf16.mxu0 0
      %4378 = vmatpush1.bf16.msra.mxu0 0
      %4379 = vmatprep.subr.bf16.mxu0 0
      %4380 = vmatpush1.bf16.msra.mxu0 0
      %4381 = vmatprep.subr.bf16.mxu0 0
      %4382 = vmatpush1.bf16.msra.mxu0 0
      %4383 = vmatprep.subr.bf16.mxu0 0
      %4384 = vmatpush1.bf16.msra.mxu0 0
      %4385 = vmatprep.subr.bf16.mxu0 0
      %4386 = vmatpush1.bf16.msra.mxu0 0
      %4387 = vmatprep.subr.bf16.mxu0 0
      %4388 = vmatpush1.bf16.msra.mxu0 0
      %4389 = vmatprep.mubr.bf16.mxu0 0
      %4390 = vmatmul.mubr.bf16.gmra.mrb[0].mxu0 %v3596
      %v4391 = vpop.f32.mrb[0].mxu0
      %v4392 = vadd.f32 0.0, %v4391
      %v4393 = vpop.f32.mrb[0].mxu0
      %v4394 = vpop.f32.mrb[0].mxu0
      %v4395 = vadd.f32 0.0, %v4394
      %v4396 = vpop.f32.mrb[0].mxu0
      %4397 = vmatprep.mubr.bf16.mxu0 0
      %4398 = vmatmul.mubr.bf16.gmra.mrb[0].mxu0 %v3599
      %v4399 = vpop.f32.mrb[0].mxu0
      %v4400 = vadd.f32 0.0, %v4399
      %v4401 = vpop.f32.mrb[0].mxu0
      %v4402 = vpop.f32.mrb[0].mxu0
      %v4403 = vadd.f32 0.0, %v4402
      %v4404 = vpop.f32.mrb[0].mxu0
      %4405 = vmatprep.mubr.bf16.mxu0 0
      %4406 = vmatmul.mubr.bf16.gmra.mrb[0].mxu0 %v3602
      %v4407 = vpop.f32.mrb[0].mxu0
      %v4408 = vadd.f32 0.0, %v4407
      %v4409 = vpop.f32.mrb[0].mxu0
      %v4410 = vpop.f32.mrb[0].mxu0
      %v4411 = vadd.f32 0.0, %v4410
      %v4412 = vpop.f32.mrb[0].mxu0
      %4413 = vmatprep.mubr.bf16.mxu0 0
      %4414 = vmatmul.mubr.bf16.gmra.mrb[0].mxu0 %v3605
      %v4415 = vpop.f32.mrb[0].mxu0
      %v4416 = vadd.f32 0.0, %v4415
      %v4417 = vpop.f32.mrb[0].mxu0
      %v4418 = vpop.f32.mrb[0].mxu0
      %v4419 = vadd.f32 0.0, %v4418
      %v4420 = vpop.f32.mrb[0].mxu0
      %4421 = vmatprep.mubr.bf16.mxu0 0
      %4422 = vmatmul.mubr.bf16.gmra.mrb[0].mxu0 %v4355
      %v4423 = vpop.f32.mrb[0].mxu0
      %v4424 = vadd.f32 0.0, %v4423
      %v4425 = vpop.f32.mrb[0].mxu0
      %v4426 = vpop.f32.mrb[0].mxu0
      %v4427 = vpop.f32.mrb[0].mxu0
      %4428 = vdwg.mxu0
      %v4429 = vadd.f32 %v4328, %v4392
      %v4430 = vadd.f32 %v4329, %v4395
      %v4431 = vadd.f32 %v4330, %v4400
      %v4432 = vadd.f32 %v4331, %v4403
      %v4433 = vadd.f32 %v4332, %v4408
      %v4434 = vadd.f32 %v4333, %v4411
      %v4435 = vadd.f32 %v4334, %v4416
      %v4436 = vadd.f32 %v4335, %v4419
      %v4437 = vadd.f32 %v4336, %v4424
      %s4438 = scalar_lea.vmem %s2, 400
      %v4439 = vld [vmem:[%s4438] sm:$0xf]
      %v4440 = vld [vmem:[%s4438 + $0x4] sm:$0xf]
      %v4441 = vld [vmem:[%s4438 + $0x8] sm:$0xf]
      %v4442 = vld [vmem:[%s4438 + $0xc] sm:$0xf]
      %v4443 = vor.u32 %v3724, %v3722
      %v4444 = vshll.u32 %v3570, 16
      %v4446 = vrot.slane %v4444, 1
      %v4447 = vsel %vm407, %v4443, %v4446
      %v4448 = vshrl.u32 %v3570, 16
      %v4454 = vunpack.c.l.b16 %v4439
      %v4455 = vunpack.c.l.b16 %v4440
      %v4456 = vunpack.c.l.b16 %v4441
      %v4457 = vunpack.c.l.b16 %v4442
      %v4458 = vpack.c.b16 %v4455, %v4454
      %v4459 = vpack.c.b16 %v4457, %v4456
      %v4463 = vsel %vm1000, %v4447, 0
      %v4466 = vsel %vm1000, %v4448, 0
      %4468 = vmatprep.subr.bf16.mxu0 0
      %4469 = vmatpush1.bf16.msra.mxu0 %v4458
      %4470 = vmatprep.subr.bf16.mxu0 0
      %4471 = vmatpush1.bf16.msra.mxu0 %v4459
      %4472 = vmatprep.subr.bf16.mxu0 0
      %4473 = vmatpush1.bf16.msra.mxu0 0
      %4474 = vmatprep.subr.bf16.mxu0 0
      %4475 = vmatpush1.bf16.msra.mxu0 0
      %4476 = vmatprep.subr.bf16.mxu0 0
      %4477 = vmatpush1.bf16.msra.mxu0 0
      %4478 = vmatprep.subr.bf16.mxu0 0
      %4479 = vmatpush1.bf16.msra.mxu0 0
      %4480 = vmatprep.subr.bf16.mxu0 0
      %4481 = vmatpush1.bf16.msra.mxu0 0
      %4482 = vmatprep.subr.bf16.mxu0 0
      %4483 = vmatpush1.bf16.msra.mxu0 0
      %4484 = vmatprep.subr.bf16.mxu0 0
      %4485 = vmatpush1.bf16.msra.mxu0 0
      %4486 = vmatprep.subr.bf16.mxu0 0
      %4487 = vmatpush1.bf16.msra.mxu0 0
      %4488 = vmatprep.subr.bf16.mxu0 0
      %4489 = vmatpush1.bf16.msra.mxu0 0
      %4490 = vmatprep.subr.bf16.mxu0 0
      %4491 = vmatpush1.bf16.msra.mxu0 0
      %4492 = vmatprep.subr.bf16.mxu0 0
      %4493 = vmatpush1.bf16.msra.mxu0 0
      %4494 = vmatprep.subr.bf16.mxu0 0
      %4495 = vmatpush1.bf16.msra.mxu0 0
      %4496 = vmatprep.subr.bf16.mxu0 0
      %4497 = vmatpush1.bf16.msra.mxu0 0
      %4498 = vmatprep.subr.bf16.mxu0 0
      %4499 = vmatpush1.bf16.msra.mxu0 0
      %4500 = vmatprep.mubr.bf16.mxu0 0
      %4501 = vmatmul.mubr.bf16.gmra.mrb[0].mxu0 %v3742
      %v4502 = vpop.f32.mrb[0].mxu0
      %v4503 = vadd.f32 0.0, %v4502
      %v4504 = vpop.f32.mrb[0].mxu0
      %v4505 = vpop.f32.mrb[0].mxu0
      %v4506 = vadd.f32 0.0, %v4505
      %v4507 = vpop.f32.mrb[0].mxu0
      %4508 = vmatprep.mubr.bf16.mxu0 0
      %4509 = vmatmul.mubr.bf16.gmra.mrb[0].mxu0 %v3745
      %v4510 = vpop.f32.mrb[0].mxu0
      %v4511 = vadd.f32 0.0, %v4510
      %v4512 = vpop.f32.mrb[0].mxu0
      %v4513 = vpop.f32.mrb[0].mxu0
      %v4514 = vadd.f32 0.0, %v4513
      %v4515 = vpop.f32.mrb[0].mxu0
      %4516 = vmatprep.mubr.bf16.mxu0 0
      %4517 = vmatmul.mubr.bf16.gmra.mrb[0].mxu0 %v3748
      %v4518 = vpop.f32.mrb[0].mxu0
      %v4519 = vadd.f32 0.0, %v4518
      %v4520 = vpop.f32.mrb[0].mxu0
      %v4521 = vpop.f32.mrb[0].mxu0
      %v4522 = vadd.f32 0.0, %v4521
      %v4523 = vpop.f32.mrb[0].mxu0
      %4524 = vmatprep.mubr.bf16.mxu0 0
      %4525 = vmatmul.mubr.bf16.gmra.mrb[0].mxu0 %v4463
      %v4526 = vpop.f32.mrb[0].mxu0
      %v4527 = vadd.f32 0.0, %v4526
      %v4528 = vpop.f32.mrb[0].mxu0
      %v4529 = vpop.f32.mrb[0].mxu0
      %v4530 = vadd.f32 0.0, %v4529
      %v4531 = vpop.f32.mrb[0].mxu0
      %4532 = vmatprep.mubr.bf16.mxu0 0
      %4533 = vmatmul.mubr.bf16.gmra.mrb[0].mxu0 %v4466
      %v4534 = vpop.f32.mrb[0].mxu0
      %v4535 = vadd.f32 0.0, %v4534
      %v4536 = vpop.f32.mrb[0].mxu0
      %v4537 = vpop.f32.mrb[0].mxu0
      %v4538 = vpop.f32.mrb[0].mxu0
      %4539 = vdwg.mxu0
      %v4540 = vadd.f32 %v4429, %v4503
      %v4541 = vadd.f32 %v4430, %v4506
      %v4542 = vadd.f32 %v4431, %v4511
      %v4543 = vadd.f32 %v4432, %v4514
      %v4544 = vadd.f32 %v4433, %v4519
      %v4545 = vadd.f32 %v4434, %v4522
      %v4546 = vadd.f32 %v4435, %v4527
      %v4547 = vadd.f32 %v4436, %v4530
      %v4548 = vadd.f32 %v4437, %v4535
      %s4549 = scalar_lea.vmem %s2, 416
      %v4550 = vld [vmem:[%s4549] sm:$0xf]
      %v4551 = vld [vmem:[%s4549 + $0x4] sm:$0xf]
      %v4552 = vld [vmem:[%s4549 + $0x8] sm:$0xf]
      %v4553 = vld [vmem:[%s4549 + $0xc] sm:$0xf]
      %v4555 = vrot.slane %v3570, 1
      %v4556 = vsel %vm1322, %v3851, %v4555
      %v4561 = vunpack.c.l.b16 %v4550
      %v4562 = vunpack.c.l.b16 %v4551
      %v4563 = vunpack.c.l.b16 %v4552
      %v4564 = vunpack.c.l.b16 %v4553
      %v4565 = vpack.c.b16 %v4562, %v4561
      %v4566 = vpack.c.b16 %v4564, %v4563
      %v4570 = vsel %vm1000, %v4556, 0
      %v4573 = vsel %vm1000, %v4555, 0
      %4575 = vmatprep.subr.bf16.mxu0 0
      %4576 = vmatpush1.bf16.msra.mxu0 %v4565
      %4577 = vmatprep.subr.bf16.mxu0 0
      %4578 = vmatpush1.bf16.msra.mxu0 %v4566
      %4579 = vmatprep.subr.bf16.mxu0 0
      %4580 = vmatpush1.bf16.msra.mxu0 0
      %4581 = vmatprep.subr.bf16.mxu0 0
      %4582 = vmatpush1.bf16.msra.mxu0 0
      %4583 = vmatprep.subr.bf16.mxu0 0
      %4584 = vmatpush1.bf16.msra.mxu0 0
      %4585 = vmatprep.subr.bf16.mxu0 0
      %4586 = vmatpush1.bf16.msra.mxu0 0
      %4587 = vmatprep.subr.bf16.mxu0 0
      %4588 = vmatpush1.bf16.msra.mxu0 0
      %4589 = vmatprep.subr.bf16.mxu0 0
      %4590 = vmatpush1.bf16.msra.mxu0 0
      %4591 = vmatprep.subr.bf16.mxu0 0
      %4592 = vmatpush1.bf16.msra.mxu0 0
      %4593 = vmatprep.subr.bf16.mxu0 0
      %4594 = vmatpush1.bf16.msra.mxu0 0
      %4595 = vmatprep.subr.bf16.mxu0 0
      %4596 = vmatpush1.bf16.msra.mxu0 0
      %4597 = vmatprep.subr.bf16.mxu0 0
      %4598 = vmatpush1.bf16.msra.mxu0 0
      %4599 = vmatprep.subr.bf16.mxu0 0
      %4600 = vmatpush1.bf16.msra.mxu0 0
      %4601 = vmatprep.subr.bf16.mxu0 0
      %4602 = vmatpush1.bf16.msra.mxu0 0
      %4603 = vmatprep.subr.bf16.mxu0 0
      %4604 = vmatpush1.bf16.msra.mxu0 0
      %4605 = vmatprep.subr.bf16.mxu0 0
      %4606 = vmatpush1.bf16.msra.mxu0 0
      %4607 = vmatprep.mubr.bf16.mxu0 0
      %4608 = vmatmul.mubr.bf16.gmra.mrb[0].mxu0 %v3869
      %v4609 = vpop.f32.mrb[0].mxu0
      %v4610 = vadd.f32 0.0, %v4609
      %v4611 = vpop.f32.mrb[0].mxu0
      %v4612 = vpop.f32.mrb[0].mxu0
      %v4613 = vadd.f32 0.0, %v4612
      %v4614 = vpop.f32.mrb[0].mxu0
      %4615 = vmatprep.mubr.bf16.mxu0 0
      %4616 = vmatmul.mubr.bf16.gmra.mrb[0].mxu0 %v3872
      %v4617 = vpop.f32.mrb[0].mxu0
      %v4618 = vadd.f32 0.0, %v4617
      %v4619 = vpop.f32.mrb[0].mxu0
      %v4620 = vpop.f32.mrb[0].mxu0
      %v4621 = vadd.f32 0.0, %v4620
      %v4622 = vpop.f32.mrb[0].mxu0
      %4623 = vmatprep.mubr.bf16.mxu0 0
      %4624 = vmatmul.mubr.bf16.gmra.mrb[0].mxu0 %v3875
      %v4625 = vpop.f32.mrb[0].mxu0
      %v4626 = vadd.f32 0.0, %v4625
      %v4627 = vpop.f32.mrb[0].mxu0
      %v4628 = vpop.f32.mrb[0].mxu0
      %v4629 = vadd.f32 0.0, %v4628
      %v4630 = vpop.f32.mrb[0].mxu0
      %4631 = vmatprep.mubr.bf16.mxu0 0
      %4632 = vmatmul.mubr.bf16.gmra.mrb[0].mxu0 %v4570
      %v4633 = vpop.f32.mrb[0].mxu0
      %v4634 = vadd.f32 0.0, %v4633
      %v4635 = vpop.f32.mrb[0].mxu0
      %v4636 = vpop.f32.mrb[0].mxu0
      %v4637 = vadd.f32 0.0, %v4636
      %v4638 = vpop.f32.mrb[0].mxu0
      %4639 = vmatprep.mubr.bf16.mxu0 0
      %4640 = vmatmul.mubr.bf16.gmra.mrb[0].mxu0 %v4573
      %v4641 = vpop.f32.mrb[0].mxu0
      %v4642 = vadd.f32 0.0, %v4641
      %v4643 = vpop.f32.mrb[0].mxu0
      %v4644 = vpop.f32.mrb[0].mxu0
      %v4645 = vpop.f32.mrb[0].mxu0
      %4646 = vdwg.mxu0
      %v4647 = vadd.f32 %v4540, %v4610
      %v4648 = vadd.f32 %v4541, %v4613
      %v4649 = vadd.f32 %v4542, %v4618
      %v4650 = vadd.f32 %v4543, %v4621
      %v4651 = vadd.f32 %v4544, %v4626
      %v4652 = vadd.f32 %v4545, %v4629
      %v4653 = vadd.f32 %v4546, %v4634
      %v4654 = vadd.f32 %v4547, %v4637
      %v4655 = vadd.f32 %v4548, %v4642
      %v4656 = vmax.f32 %v4647, 0.0
      %v4657 = vmax.f32 %v4648, 0.0
      %v4658 = vmax.f32 %v4649, 0.0
      %v4659 = vmax.f32 %v4650, 0.0
      %v4660 = vmax.f32 %v4651, 0.0
      %v4661 = vmax.f32 %v4652, 0.0
      %v4662 = vmax.f32 %v4653, 0.0
      %v4663 = vmax.f32 %v4654, 0.0
      %v4664 = vmax.f32 %v4655, 0.0
      %4665 = vst [vmem:[%s199] sm:$0xff] %v4656
      %4666 = vst [vmem:[%s199 + $0x8] sm:$0xff] %v4657
      %4667 = vst [vmem:[%s199 + $0x10] sm:$0xff] %v4658
      %4668 = vst [vmem:[%s199 + $0x18] sm:$0xff] %v4659
      %4669 = vst [vmem:[%s199 + $0x20] sm:$0xff] %v4660
      %4670 = vst [vmem:[%s199 + $0x28] sm:$0xff] %v4661
      %4671 = vst [vmem:[%s199 + $0x30] sm:$0xff] %v4662
      %4672 = vst [vmem:[%s199 + $0x38] sm:$0xff] %v4663
      %4673 = vst [vmem:[%s199 + $0x40] sm:$0x1] %v4664
      %p4674 = scmp.lt.s32.totalorder %s15, 1
      %s4675 = scalar_select %p4674, %s15, 1
      %s4676 = smul.addr %s4675, 9
      %s4677 = smul.addr %s4676, 8
      %s4678 = scalar_lea.vmem %s4, %s4677
      // Predicated region
      $region37: #{encoder_forward.1} parent=35 // pred_check
        %p4679 = pneg %p122
      $region38: #{encoder_forward.1} parent=35 // pred_check_branch
        %4681 = sbr.rel (%p4679) target = $region40
      $region39: #{encoder_forward.1} parent=35 // pred_region
        _
      $region40: #{encoder_forward.1} parent=35 // pred_fallthru
        _
    $region36: #{encoder_forward.1} parent=5 // pred_fallthru
      _
    %p4682 = scmp.le.s32.totalorder 2, %s10
    // Predicated region
    $region41: #{encoder_forward.1} parent=5 // pred_check
      %p4683 = pneg %p4682
    $region42: #{encoder_forward.1} parent=5 // pred_check_branch
      %4685 = sbr.rel (%p4683) target = $region44
    $region43: #{encoder_forward.1} parent=5 // pred_region
      %s4686 = ssub.s32 %s10, 2
      // Predicated region
      $region45: #{encoder_forward.1} parent=43 // pred_check
        %p4687 = pneg %p128
      $region46: #{encoder_forward.1} parent=43 // pred_check_branch
        %4689 = sbr.rel (%p4687) target = $region48
      $region47: #{encoder_forward.1} parent=43 // pred_region
        %p4690 = scmp.lt.s32.totalorder %s16, 1
        %s4691 = scalar_select %p4690, %s16, 1
        %s4692 = smul.addr %s4691, 9
        %s4693 = smul.addr %s4692, 8
        %s4694 = scalar_lea.vmem %s4, %s4693
      $region48: #{encoder_forward.1} parent=43 // pred_fallthru
        _
    $region44: #{encoder_forward.1} parent=5 // pred_fallthru
      _
  $region6: #{encoder_forward.1} parent=0 // loop_footer
    %s14 = sadd.s32 1, %s10
  $region7: #{encoder_forward.1} parent=0 // loop_footer_branch
    %9 = sbr.rel target = $region3
  $region8: #{encoder_forward.1} parent=0 // loop_exit
    _

</llo_original>
